<compile_context>
chip_gen: v5e
topology: v5e:2x2
jax: 0.10.0
libtpu: 0.0.40
codegen_flags: <defaults>
</compile_context>

<pallas_src>
import math

import jax
import jax.numpy as jnp
from jax.experimental import pallas as pl
from jax.experimental.pallas import tpu as pltpu


INPUT_DIM = 150
NUM_CLASSES = 3
PAD_IN = 256      # layer-1 K axis padded to an MXU / lane-aligned size
PAD_OUT = 128     # lane-dense output width inside the kernel (sliced to 3 outside)
HIDDEN = (1024, 512, 256, 128)


def mlp_kernel(x_ref,
               w1_ref, b1_ref,
               w2_ref, b2_ref,
               w3_ref, b3_ref,
               w4_ref, b4_ref,
               w5_ref, b5_ref,
               out_ref):
    # bf16 MXU inputs, f32 accumulation, f32 bias / ReLU.
    h = x_ref[...]  # (TM, PAD_IN) bf16

    h = jnp.dot(h, w1_ref[...], preferred_element_type=jnp.float32) + b1_ref[...]
    h = jnp.maximum(h, 0.0).astype(jnp.bfloat16)

    h = jnp.dot(h, w2_ref[...], preferred_element_type=jnp.float32) + b2_ref[...]
    h = jnp.maximum(h, 0.0).astype(jnp.bfloat16)

    h = jnp.dot(h, w3_ref[...], preferred_element_type=jnp.float32) + b3_ref[...]
    h = jnp.maximum(h, 0.0).astype(jnp.bfloat16)

    h = jnp.dot(h, w4_ref[...], preferred_element_type=jnp.float32) + b4_ref[...]
    h = jnp.maximum(h, 0.0).astype(jnp.bfloat16)

    out = jnp.dot(h, w5_ref[...], preferred_element_type=jnp.float32) + b5_ref[...]
    out_ref[...] = out.astype(out_ref.dtype)


def prepare_params(params_f32):
    """Pad + cast f32 (in, out)-layout params for the kernel.

    Layer 1: input axis zero-padded 150 -> PAD_IN.
    Layer 5: output axis zero-padded NUM_CLASSES -> PAD_OUT (W and b).
    Weights -> bf16, biases stay f32.
    """
    prepped = []
    last = len(params_f32) - 1
    for i, (W, b) in enumerate(params_f32):
        if i == 0:
            W = jnp.pad(W, ((0, PAD_IN - W.shape[0]), (0, 0)))
        if i == last:
            W = jnp.pad(W, ((0, 0), (0, PAD_OUT - W.shape[1])))
            b = jnp.pad(b, ((0, 0), (0, PAD_OUT - b.shape[1])))
        prepped.append((W.astype(jnp.bfloat16), b.astype(jnp.float32)))
    return prepped


def classification_model_forward(x, prepped_params, tm=128):
    """x: (B, INPUT_DIM) f32.  prepped_params: output of prepare_params()."""
    B, in_dim = x.shape

    # Batch tile: full MXU-friendly 128 rows for large batches; for tiny batches use
    # the smallest legal (multiple-of-8) tile so B is not padded all the way to 128.
    tm_eff = min(tm, max(8, ((B + 7) // 8) * 8))
    b_pad = ((B + tm_eff - 1) // tm_eff) * tm_eff

    xp = jnp.pad(x, ((0, b_pad - B), (0, PAD_IN - in_dim))).astype(jnp.bfloat16)

    flat_args = [xp]
    in_specs = [pl.BlockSpec((tm_eff, PAD_IN), lambda i: (i, 0))]
    for W, b in prepped_params:
        flat_args.append(W)
        flat_args.append(b)
        # Constant index maps: weights/biases DMA'd once, VMEM-resident across tiles.
        in_specs.append(pl.BlockSpec(W.shape, lambda i: (0, 0)))
        in_specs.append(pl.BlockSpec(b.shape, lambda i: (0, 0)))

    out_padded = pl.pallas_call(
        mlp_kernel,
        out_shape=jax.ShapeDtypeStruct((b_pad, PAD_OUT), jnp.float32),
        grid=(b_pad // tm_eff,),
        in_specs=in_specs,
        out_specs=pl.BlockSpec((tm_eff, PAD_OUT), lambda i: (i, 0)),
        compiler_params=pltpu.CompilerParams(
            dimension_semantics=("parallel",),
            vmem_limit_bytes=32 << 20,
        ),
    )(*flat_args)

    return out_padded[:B, :NUM_CLASSES]


def init_linear(key, in_dim, out_dim):
    """Deterministic init mimicking PyTorch nn.Linear defaults (uniform +/- 1/sqrt(fan_in))."""
    kw, kb = jax.random.split(key)
    bound = 1.0 / math.sqrt(in_dim)
    # Stored as (in, out) so the kernel computes x @ W.
    W = jax.random.uniform(kw, (in_dim, out_dim), jnp.float32, -bound, bound)
    b = jax.random.uniform(kb, (1, out_dim), jnp.float32, -bound, bound)
    return W, b


def reference_forward_bf16(x, params_f32):
    """Pure-JAX reference with the same numerics as the kernel:
    bf16 matmul inputs, f32 accumulation, f32 bias / ReLU."""
    h = x.astype(jnp.bfloat16)
    for i, (W, b) in enumerate(params_f32):
        h = jnp.dot(h, W.astype(jnp.bfloat16),
                    preferred_element_type=jnp.float32) + b
        if i < len(params_f32) - 1:
            h = jnp.maximum(h, 0.0).astype(jnp.bfloat16)
    return h


if __name__ == "__main__":
    batch = 8

    key = jax.random.PRNGKey(0)
    k_x, k1, k2, k3, k4, k5 = jax.random.split(key, 6)

    x = jax.random.normal(k_x, (batch, INPUT_DIM), dtype=jnp.float32)

    dims = [INPUT_DIM, *HIDDEN, NUM_CLASSES]
    layer_keys = [k1, k2, k3, k4, k5]
    params_f32 = [init_linear(layer_keys[i], dims[i], dims[i + 1]) for i in range(5)]

    prepped = prepare_params(params_f32)

    out = classification_model_forward(x, prepped)
    out = jax.block_until_ready(out)

    # Sanity check against a plain-JAX reference of the same (bf16-weight) math.
    ref = reference_forward_bf16(x, params_f32)
    assert out.shape == (batch, NUM_CLASSES)
    max_diff = jnp.max(jnp.abs(out - ref))
    assert jnp.allclose(out, ref, atol=2e-2, rtol=2e-2), f"max abs diff = {max_diff}"

    print("KERNEL_OK")
</pallas_src>

<mosaic_0001>
module attributes {stable_mosaic.version = 11 : i64} {
  func.func @mlp_kernel(%arg0: i32, %arg1: memref<8x256xbf16, #tpu.memory_space<vmem>>, %arg2: memref<256x1024xbf16, #tpu.memory_space<vmem>>, %arg3: memref<1x1024xf32, #tpu.memory_space<vmem>>, %arg4: memref<1024x512xbf16, #tpu.memory_space<vmem>>, %arg5: memref<1x512xf32, #tpu.memory_space<vmem>>, %arg6: memref<512x256xbf16, #tpu.memory_space<vmem>>, %arg7: memref<1x256xf32, #tpu.memory_space<vmem>>, %arg8: memref<256x128xbf16, #tpu.memory_space<vmem>>, %arg9: memref<1x128xf32, #tpu.memory_space<vmem>>, %arg10: memref<128x128xbf16, #tpu.memory_space<vmem>>, %arg11: memref<1x128xf32, #tpu.memory_space<vmem>>, %arg12: memref<8x128xf32, #tpu.memory_space<vmem>>) attributes {dimension_semantics = [#tpu.dimension_semantics<parallel>], iteration_bounds = array<i64: 1>, scalar_prefetch = 0 : i64, scratch_operands = 0 : i64, tpu.core_type = #tpu.core_type<tc>, window_params = [{transform_indices = @transform_0, window_bounds = array<i64: 8, 256>}, {pipeline_mode = #tpu.pipeline_mode<synchronous>, transform_indices = @transform_1, window_bounds = array<i64: 256, 1024>}, {pipeline_mode = #tpu.pipeline_mode<synchronous>, transform_indices = @transform_2, window_bounds = array<i64: 1, 1024>}, {pipeline_mode = #tpu.pipeline_mode<synchronous>, transform_indices = @transform_3, window_bounds = array<i64: 1024, 512>}, {pipeline_mode = #tpu.pipeline_mode<synchronous>, transform_indices = @transform_4, window_bounds = array<i64: 1, 512>}, {pipeline_mode = #tpu.pipeline_mode<synchronous>, transform_indices = @transform_5, window_bounds = array<i64: 512, 256>}, {pipeline_mode = #tpu.pipeline_mode<synchronous>, transform_indices = @transform_6, window_bounds = array<i64: 1, 256>}, {pipeline_mode = #tpu.pipeline_mode<synchronous>, transform_indices = @transform_7, window_bounds = array<i64: 256, 128>}, {pipeline_mode = #tpu.pipeline_mode<synchronous>, transform_indices = @transform_8, window_bounds = array<i64: 1, 128>}, {pipeline_mode = #tpu.pipeline_mode<synchronous>, transform_indices = @transform_9, window_bounds = array<i64: 128, 128>}, {pipeline_mode = #tpu.pipeline_mode<synchronous>, transform_indices = @transform_10, window_bounds = array<i64: 1, 128>}, {transform_indices = @transform_11, window_bounds = array<i64: 8, 128>}]} {
    %c0 = arith.constant 0 : index
    %c0_0 = arith.constant 0 : index
    %0 = vector.load %arg1[%c0, %c0_0] : memref<8x256xbf16, #tpu.memory_space<vmem>>, vector<8x256xbf16>
    %c0_1 = arith.constant 0 : index
    %c0_2 = arith.constant 0 : index
    %1 = vector.load %arg2[%c0_1, %c0_2] : memref<256x1024xbf16, #tpu.memory_space<vmem>>, vector<256x1024xbf16>
    %cst = arith.constant dense<0.000000e+00> : vector<8x1024xf32>
    %2 = tpu.matmul %0, %1, %cst {dimension_numbers = #tpu.dot_dimension_numbers<[1], [0], [0], [1], [0, 0, 1, 1], [], []>} : vector<8x256xbf16>, vector<256x1024xbf16>, vector<8x1024xf32> -> vector<8x1024xf32>
    %c0_3 = arith.constant 0 : index
    %c0_4 = arith.constant 0 : index
    %3 = vector.load %arg3[%c0_3, %c0_4] : memref<1x1024xf32, #tpu.memory_space<vmem>>, vector<1x1024xf32>
    %4 = vector.broadcast %3 : vector<1x1024xf32> to vector<8x1024xf32>
    %5 = arith.addf %2, %4 : vector<8x1024xf32>
    %cst_5 = arith.constant 0.000000e+00 : f32
    %6 = vector.broadcast %cst_5 : f32 to vector<8x1024xf32>
    %7 = arith.maximumf %5, %6 : vector<8x1024xf32>
    %8 = arith.truncf %7 : vector<8x1024xf32> to vector<8x1024xbf16>
    %c0_6 = arith.constant 0 : index
    %c0_7 = arith.constant 0 : index
    %9 = vector.load %arg4[%c0_6, %c0_7] : memref<1024x512xbf16, #tpu.memory_space<vmem>>, vector<1024x512xbf16>
    %cst_8 = arith.constant dense<0.000000e+00> : vector<8x512xf32>
    %10 = tpu.matmul %8, %9, %cst_8 {dimension_numbers = #tpu.dot_dimension_numbers<[1], [0], [0], [1], [0, 0, 1, 1], [], []>} : vector<8x1024xbf16>, vector<1024x512xbf16>, vector<8x512xf32> -> vector<8x512xf32>
    %c0_9 = arith.constant 0 : index
    %c0_10 = arith.constant 0 : index
    %11 = vector.load %arg5[%c0_9, %c0_10] : memref<1x512xf32, #tpu.memory_space<vmem>>, vector<1x512xf32>
    %12 = vector.broadcast %11 : vector<1x512xf32> to vector<8x512xf32>
    %13 = arith.addf %10, %12 : vector<8x512xf32>
    %cst_11 = arith.constant 0.000000e+00 : f32
    %14 = vector.broadcast %cst_11 : f32 to vector<8x512xf32>
    %15 = arith.maximumf %13, %14 : vector<8x512xf32>
    %16 = arith.truncf %15 : vector<8x512xf32> to vector<8x512xbf16>
    %c0_12 = arith.constant 0 : index
    %c0_13 = arith.constant 0 : index
    %17 = vector.load %arg6[%c0_12, %c0_13] : memref<512x256xbf16, #tpu.memory_space<vmem>>, vector<512x256xbf16>
    %cst_14 = arith.constant dense<0.000000e+00> : vector<8x256xf32>
    %18 = tpu.matmul %16, %17, %cst_14 {dimension_numbers = #tpu.dot_dimension_numbers<[1], [0], [0], [1], [0, 0, 1, 1], [], []>} : vector<8x512xbf16>, vector<512x256xbf16>, vector<8x256xf32> -> vector<8x256xf32>
    %c0_15 = arith.constant 0 : index
    %c0_16 = arith.constant 0 : index
    %19 = vector.load %arg7[%c0_15, %c0_16] : memref<1x256xf32, #tpu.memory_space<vmem>>, vector<1x256xf32>
    %20 = vector.broadcast %19 : vector<1x256xf32> to vector<8x256xf32>
    %21 = arith.addf %18, %20 : vector<8x256xf32>
    %cst_17 = arith.constant 0.000000e+00 : f32
    %22 = vector.broadcast %cst_17 : f32 to vector<8x256xf32>
    %23 = arith.maximumf %21, %22 : vector<8x256xf32>
    %24 = arith.truncf %23 : vector<8x256xf32> to vector<8x256xbf16>
    %c0_18 = arith.constant 0 : index
    %c0_19 = arith.constant 0 : index
    %25 = vector.load %arg8[%c0_18, %c0_19] : memref<256x128xbf16, #tpu.memory_space<vmem>>, vector<256x128xbf16>
    %cst_20 = arith.constant dense<0.000000e+00> : vector<8x128xf32>
    %26 = tpu.matmul %24, %25, %cst_20 {dimension_numbers = #tpu.dot_dimension_numbers<[1], [0], [0], [1], [0, 0, 1, 1], [], []>} : vector<8x256xbf16>, vector<256x128xbf16>, vector<8x128xf32> -> vector<8x128xf32>
    %c0_21 = arith.constant 0 : index
    %c0_22 = arith.constant 0 : index
    %27 = vector.load %arg9[%c0_21, %c0_22] : memref<1x128xf32, #tpu.memory_space<vmem>>, vector<1x128xf32>
    %28 = vector.broadcast %27 : vector<1x128xf32> to vector<8x128xf32>
    %29 = arith.addf %26, %28 : vector<8x128xf32>
    %cst_23 = arith.constant 0.000000e+00 : f32
    %30 = vector.broadcast %cst_23 : f32 to vector<8x128xf32>
    %31 = arith.maximumf %29, %30 : vector<8x128xf32>
    %32 = arith.truncf %31 : vector<8x128xf32> to vector<8x128xbf16>
    %c0_24 = arith.constant 0 : index
    %c0_25 = arith.constant 0 : index
    %33 = vector.load %arg10[%c0_24, %c0_25] : memref<128x128xbf16, #tpu.memory_space<vmem>>, vector<128x128xbf16>
    %cst_26 = arith.constant dense<0.000000e+00> : vector<8x128xf32>
    %34 = tpu.matmul %32, %33, %cst_26 {dimension_numbers = #tpu.dot_dimension_numbers<[1], [0], [0], [1], [0, 0, 1, 1], [], []>} : vector<8x128xbf16>, vector<128x128xbf16>, vector<8x128xf32> -> vector<8x128xf32>
    %c0_27 = arith.constant 0 : index
    %c0_28 = arith.constant 0 : index
    %35 = vector.load %arg11[%c0_27, %c0_28] : memref<1x128xf32, #tpu.memory_space<vmem>>, vector<1x128xf32>
    %36 = vector.broadcast %35 : vector<1x128xf32> to vector<8x128xf32>
    %37 = arith.addf %34, %36 : vector<8x128xf32>
    %c0_29 = arith.constant 0 : index
    %c0_30 = arith.constant 0 : index
    %38 = vector.load %arg12[%c0_29, %c0_30] : memref<8x128xf32, #tpu.memory_space<vmem>>, vector<8x128xf32>
    tpu.vector_store %arg12[%c0_29, %c0_30], %37 {strides = array<i32>} : memref<8x128xf32, #tpu.memory_space<vmem>>, vector<8x128xf32>,
    return
  }
  func.func @transform_0(%arg0: i32) -> (i32, i32) {
    %c0_i32 = arith.constant 0 : i32
    %c0_i32_0 = arith.constant 0 : i32
    return %arg0, %c0_i32 : i32, i32
  }
  func.func @transform_1(%arg0: i32) -> (i32, i32) {
    %c0_i32 = arith.constant 0 : i32
    %c0_i32_0 = arith.constant 0 : i32
    %c0_i32_1 = arith.constant 0 : i32
    return %c0_i32, %c0_i32_0 : i32, i32
  }
  func.func @transform_2(%arg0: i32) -> (i32, i32) {
    %c0_i32 = arith.constant 0 : i32
    %c0_i32_0 = arith.constant 0 : i32
    %c0_i32_1 = arith.constant 0 : i32
    return %c0_i32, %c0_i32_0 : i32, i32
  }
  func.func @transform_3(%arg0: i32) -> (i32, i32) {
    %c0_i32 = arith.constant 0 : i32
    %c0_i32_0 = arith.constant 0 : i32
    %c0_i32_1 = arith.constant 0 : i32
    return %c0_i32, %c0_i32_0 : i32, i32
  }
  func.func @transform_4(%arg0: i32) -> (i32, i32) {
    %c0_i32 = arith.constant 0 : i32
    %c0_i32_0 = arith.constant 0 : i32
    %c0_i32_1 = arith.constant 0 : i32
    return %c0_i32, %c0_i32_0 : i32, i32
  }
  func.func @transform_5(%arg0: i32) -> (i32, i32) {
    %c0_i32 = arith.constant 0 : i32
    %c0_i32_0 = arith.constant 0 : i32
    %c0_i32_1 = arith.constant 0 : i32
    return %c0_i32, %c0_i32_0 : i32, i32
  }
  func.func @transform_6(%arg0: i32) -> (i32, i32) {
    %c0_i32 = arith.constant 0 : i32
    %c0_i32_0 = arith.constant 0 : i32
    %c0_i32_1 = arith.constant 0 : i32
    return %c0_i32, %c0_i32_0 : i32, i32
  }
  func.func @transform_7(%arg0: i32) -> (i32, i32) {
    %c0_i32 = arith.constant 0 : i32
    %c0_i32_0 = arith.constant 0 : i32
    %c0_i32_1 = arith.constant 0 : i32
    return %c0_i32, %c0_i32_0 : i32, i32
  }
  func.func @transform_8(%arg0: i32) -> (i32, i32) {
    %c0_i32 = arith.constant 0 : i32
    %c0_i32_0 = arith.constant 0 : i32
    %c0_i32_1 = arith.constant 0 : i32
    return %c0_i32, %c0_i32_0 : i32, i32
  }
  func.func @transform_9(%arg0: i32) -> (i32, i32) {
    %c0_i32 = arith.constant 0 : i32
    %c0_i32_0 = arith.constant 0 : i32
    %c0_i32_1 = arith.constant 0 : i32
    return %c0_i32, %c0_i32_0 : i32, i32
  }
  func.func @transform_10(%arg0: i32) -> (i32, i32) {
    %c0_i32 = arith.constant 0 : i32
    %c0_i32_0 = arith.constant 0 : i32
    %c0_i32_1 = arith.constant 0 : i32
    return %c0_i32, %c0_i32_0 : i32, i32
  }
  func.func @transform_11(%arg0: i32) -> (i32, i32) {
    %c0_i32 = arith.constant 0 : i32
    %c0_i32_0 = arith.constant 0 : i32
    return %arg0, %c0_i32 : i32, i32
  }
}

</mosaic_0001>

<llo_original>
// kernel: tpu_custom_call.1
$region0: #{tpu_custom_call.1}
  #allocation0 [shape = 'u32[]', space=smem, size = 0x4, offset = 0x4, fixed_abs, tag = 'smem constant byte address 0x4 - core index']
  #allocation1 [shape = 'u32[72,128]{1,0:T(1,128)}', space=vmem, size = 0x9000, scoped, tag = 'internal scratch']
  %s0 = inlined_call_operand.hbm [shape: bf16[8,256], index: 0, kind: input, shape index: {}]
  %s1 = inlined_call_operand.hbm [shape: bf16[256,1024], index: 1, kind: input, shape index: {}]
  %s2 = inlined_call_operand.hbm [shape: f32[1,1024], index: 2, kind: input, shape index: {}]
  %s3 = inlined_call_operand.hbm [shape: bf16[1024,512], index: 3, kind: input, shape index: {}]
  %s4 = inlined_call_operand.hbm [shape: f32[1,512], index: 4, kind: input, shape index: {}]
  %s5 = inlined_call_operand.hbm [shape: bf16[512,256], index: 5, kind: input, shape index: {}]
  %s6 = inlined_call_operand.vmem [shape: f32[1,256], index: 6, kind: input, shape index: {}]
  %s7 = inlined_call_operand.hbm [shape: bf16[256,128], index: 7, kind: input, shape index: {}]
  %s8 = inlined_call_operand.vmem [shape: f32[1,128], index: 8, kind: input, shape index: {}]
  %s9 = inlined_call_operand.hbm [shape: bf16[128,128], index: 9, kind: input, shape index: {}]
  %s10 = inlined_call_operand.vmem [shape: f32[1,128], index: 10, kind: input, shape index: {}]
  %s11 = inlined_call_operand.hbm [shape: f32[8,128], index: 11, kind: output, shape index: {}]
  %s12 = sld [smem:[#allocation0]]
  $region86: #{tpu_custom_call.1} parent=0
    _
  %s14 = ssub.s32 1, %s12
  %s15 = scalar_select 0, %s14, %s12
  $region1: #{tpu_custom_call.1} parent=0
    #allocation2 [shape = 'u8[4096]{0}', space=vmem, size = 0x1000, scoped, tag = 'input window, operand 0, single buffered']
    #allocation3 [shape = 's32[1]{0}', space=sflag, size = 0x4, scoped, tag = 'scoped memory for tpu_custom_call.1']
    #allocation4 [shape = 's32[1]{0}', space=sflag, size = 0x4, scoped, tag = 'scoped memory for tpu_custom_call.1']
    #allocation5 [shape = 'u8[524288]{0}', space=vmem, size = 0x80000, scoped, tag = 'input window, operand 1, single buffered']
    #allocation6 [shape = 's32[1]{0}', space=sflag, size = 0x4, scoped, tag = 'scoped memory for tpu_custom_call.1']
    #allocation7 [shape = 'u8[4096]{0}', space=vmem, size = 0x1000, scoped, tag = 'input window, operand 2, single buffered']
    #allocation8 [shape = 'u8[1048576]{0}', space=vmem, size = 0x100000, scoped, tag = 'input window, operand 3, single buffered']
    #allocation9 [shape = 's32[1]{0}', space=sflag, size = 0x4, scoped, tag = 'scoped memory for tpu_custom_call.1']
    #allocation10 [shape = 'u8[2048]{0}', space=vmem, size = 0x800, scoped, tag = 'input window, operand 4, single buffered']
    #allocation11 [shape = 'u8[262144]{0}', space=vmem, size = 0x40000, scoped, tag = 'input window, operand 5, single buffered']
    #allocation12 [shape = 's32[1]{0}', space=sflag, size = 0x4, scoped, tag = 'scoped memory for tpu_custom_call.1']
    #allocation13 [shape = 'u8[65536]{0}', space=vmem, size = 0x10000, scoped, tag = 'input window, operand 7, single buffered']
    #allocation14 [shape = 'u8[32768]{0}', space=vmem, size = 0x8000, scoped, tag = 'input window, operand 9, single buffered']
    #allocation15 [shape = 's32[1]{0}', space=sflag, size = 0x4, scoped, tag = 'scoped memory for tpu_custom_call.1']
    #allocation16 [shape = 'u8[4096]{0}', space=vmem, size = 0x1000, scoped, tag = 'output window, operand 0, single buffered']
    %16 = vsyncpa [#allocation3], 0
    %17 = vsyncpa [#allocation6], 0
    %18 = vsyncpa [#allocation9], 0
    %19 = vsyncpa [#allocation12], 0
    %20 = vsyncpa [#allocation15], 0
    %21 = vsyncpa [#allocation4], 0
    // Predicated region
    $region2: #{tpu_custom_call.1} parent=1 // pred_check
      _
    $region3: #{tpu_custom_call.1} parent=1 // pred_check_branch
      %23 = sbr.rel (0) target = $region5
    $region4: #{tpu_custom_call.1} parent=1 // pred_region
      %25 = vsyncadd [#allocation3], 0
      %s27 = sshll.u32 %s0, 4
      %s28 = int_to_ptr.hbm [resolvable:$true] %s27
      %s29 = sshll.u32 [#allocation2], 4
      %s30 = int_to_ptr.vmem [resolvable:$true] %s29
      %32 = dma.hbm_to_vmem [thread:$0]  %s28, 128, %s30, [#allocation3]
    $region5: #{tpu_custom_call.1} parent=1 // pred_fallthru
      _
    // Predicated region
    $region6: #{tpu_custom_call.1} parent=1 // pred_check
      _
    $region7: #{tpu_custom_call.1} parent=1 // pred_check_branch
      %34 = sbr.rel (0) target = $region9
    $region8: #{tpu_custom_call.1} parent=1 // pred_region
      %36 = vsyncadd [#allocation6], 0
      %s37 = sshll.u32 %s1, 4
      %s38 = int_to_ptr.hbm [resolvable:$true] %s37
      %s39 = sshll.u32 [#allocation5], 4
      %s40 = int_to_ptr.vmem [resolvable:$true] %s39
      %45 = dma.hbm_to_vmem [thread:$0]  %s38, 16384, %s40, [#allocation6], 512, 512, 32
    $region9: #{tpu_custom_call.1} parent=1 // pred_fallthru
      _
    // Predicated region
    $region10: #{tpu_custom_call.1} parent=1 // pred_check
      _
    $region11: #{tpu_custom_call.1} parent=1 // pred_check_branch
      %47 = sbr.rel (0) target = $region13
    $region12: #{tpu_custom_call.1} parent=1 // pred_region
      %49 = vsyncadd [#allocation6], 0
      %s51 = sshll.u32 %s2, 4
      %s52 = int_to_ptr.hbm [resolvable:$true] %s51
      %s53 = sshll.u32 [#allocation7], 4
      %s54 = int_to_ptr.vmem [resolvable:$true] %s53
      %56 = dma.hbm_to_vmem [thread:$0]  %s52, 128, %s54, [#allocation6]
    $region13: #{tpu_custom_call.1} parent=1 // pred_fallthru
      _
    // Predicated region
    $region14: #{tpu_custom_call.1} parent=1 // pred_check
      _
    $region15: #{tpu_custom_call.1} parent=1 // pred_check_branch
      %58 = sbr.rel (0) target = $region17
    $region16: #{tpu_custom_call.1} parent=1 // pred_region
      %60 = vsyncadd [#allocation9], 0
      %s61 = sshll.u32 %s3, 4
      %s62 = int_to_ptr.hbm [resolvable:$true] %s61
      %s63 = sshll.u32 [#allocation8], 4
      %s64 = int_to_ptr.vmem [resolvable:$true] %s63
      %69 = dma.hbm_to_vmem [thread:$0]  %s62, 32768, %s64, [#allocation9], 256, 256, 16
    $region17: #{tpu_custom_call.1} parent=1 // pred_fallthru
      _
    // Predicated region
    $region18: #{tpu_custom_call.1} parent=1 // pred_check
      _
    $region19: #{tpu_custom_call.1} parent=1 // pred_check_branch
      %71 = sbr.rel (0) target = $region21
    $region20: #{tpu_custom_call.1} parent=1 // pred_region
      %73 = vsyncadd [#allocation9], 0
      %s75 = sshll.u32 %s4, 4
      %s76 = int_to_ptr.hbm [resolvable:$true] %s75
      %s77 = sshll.u32 [#allocation10], 4
      %s78 = int_to_ptr.vmem [resolvable:$true] %s77
      %80 = dma.hbm_to_vmem [thread:$0]  %s76, 64, %s78, [#allocation9]
    $region21: #{tpu_custom_call.1} parent=1 // pred_fallthru
      _
    // Predicated region
    $region22: #{tpu_custom_call.1} parent=1 // pred_check
      _
    $region23: #{tpu_custom_call.1} parent=1 // pred_check_branch
      %82 = sbr.rel (0) target = $region25
    $region24: #{tpu_custom_call.1} parent=1 // pred_region
      %84 = vsyncadd [#allocation12], 0
      %s85 = sshll.u32 %s5, 4
      %s86 = int_to_ptr.hbm [resolvable:$true] %s85
      %s87 = sshll.u32 [#allocation11], 4
      %s88 = int_to_ptr.vmem [resolvable:$true] %s87
      %93 = dma.hbm_to_vmem [thread:$0]  %s86, 8192, %s88, [#allocation12], 128, 128, 8
    $region25: #{tpu_custom_call.1} parent=1 // pred_fallthru
      _
    // Predicated region
    $region26: #{tpu_custom_call.1} parent=1 // pred_check
      _
    $region27: #{tpu_custom_call.1} parent=1 // pred_check_branch
      %95 = sbr.rel (0) target = $region29
    $region28: #{tpu_custom_call.1} parent=1 // pred_region
      _
    $region29: #{tpu_custom_call.1} parent=1 // pred_fallthru
      _
    // Predicated region
    $region30: #{tpu_custom_call.1} parent=1 // pred_check
      _
    $region31: #{tpu_custom_call.1} parent=1 // pred_check_branch
      %97 = sbr.rel (0) target = $region33
    $region32: #{tpu_custom_call.1} parent=1 // pred_region
      %99 = vsyncadd [#allocation12], 0
      %s100 = sshll.u32 %s7, 4
      %s101 = int_to_ptr.hbm [resolvable:$true] %s100
      %s102 = sshll.u32 [#allocation13], 4
      %s103 = int_to_ptr.vmem [resolvable:$true] %s102
      %108 = dma.hbm_to_vmem [thread:$0]  %s101, 2048, %s103, [#allocation12], 64, 64, 4
    $region33: #{tpu_custom_call.1} parent=1 // pred_fallthru
      _
    // Predicated region
    $region34: #{tpu_custom_call.1} parent=1 // pred_check
      _
    $region35: #{tpu_custom_call.1} parent=1 // pred_check_branch
      %110 = sbr.rel (0) target = $region37
    $region36: #{tpu_custom_call.1} parent=1 // pred_region
      _
    $region37: #{tpu_custom_call.1} parent=1 // pred_fallthru
      _
    // Predicated region
    $region38: #{tpu_custom_call.1} parent=1 // pred_check
      _
    $region39: #{tpu_custom_call.1} parent=1 // pred_check_branch
      %112 = sbr.rel (0) target = $region41
    $region40: #{tpu_custom_call.1} parent=1 // pred_region
      %114 = vsyncadd [#allocation15], 0
      %s115 = sshll.u32 %s9, 4
      %s116 = int_to_ptr.hbm [resolvable:$true] %s115
      %s117 = sshll.u32 [#allocation14], 4
      %s118 = int_to_ptr.vmem [resolvable:$true] %s117
      %123 = dma.hbm_to_vmem [thread:$0]  %s116, 1024, %s118, [#allocation15], 64, 64, 4
    $region41: #{tpu_custom_call.1} parent=1 // pred_fallthru
      _
    // Predicated region
    $region42: #{tpu_custom_call.1} parent=1 // pred_check
      _
    $region43: #{tpu_custom_call.1} parent=1 // pred_check_branch
      %125 = sbr.rel (0) target = $region45
    $region44: #{tpu_custom_call.1} parent=1 // pred_region
      _
    $region45: #{tpu_custom_call.1} parent=1 // pred_fallthru
      _
    // Predicated region
    $region46: #{tpu_custom_call.1} parent=1 // pred_check
      _
    $region47: #{tpu_custom_call.1} parent=1 // pred_check_branch
      %127 = sbr.rel (0) target = $region49
    $region48: #{tpu_custom_call.1} parent=1 // pred_region
      %129 = dma.done [#allocation3], 128
    $region49: #{tpu_custom_call.1} parent=1 // pred_fallthru
      _
    // Predicated region
    $region50: #{tpu_custom_call.1} parent=1 // pred_check
      _
    $region51: #{tpu_custom_call.1} parent=1 // pred_check_branch
      %131 = sbr.rel (0) target = $region53
    $region52: #{tpu_custom_call.1} parent=1 // pred_region
      %133 = dma.done [#allocation6], 16384
    $region53: #{tpu_custom_call.1} parent=1 // pred_fallthru
      _
    // Predicated region
    $region54: #{tpu_custom_call.1} parent=1 // pred_check
      _
    $region55: #{tpu_custom_call.1} parent=1 // pred_check_branch
      %135 = sbr.rel (0) target = $region57
    $region56: #{tpu_custom_call.1} parent=1 // pred_region
      %137 = dma.done [#allocation6], 128
    $region57: #{tpu_custom_call.1} parent=1 // pred_fallthru
      _
    // Predicated region
    $region58: #{tpu_custom_call.1} parent=1 // pred_check
      _
    $region59: #{tpu_custom_call.1} parent=1 // pred_check_branch
      %139 = sbr.rel (0) target = $region61
    $region60: #{tpu_custom_call.1} parent=1 // pred_region
      %141 = dma.done [#allocation9], 32768
    $region61: #{tpu_custom_call.1} parent=1 // pred_fallthru
      _
    // Predicated region
    $region62: #{tpu_custom_call.1} parent=1 // pred_check
      _
    $region63: #{tpu_custom_call.1} parent=1 // pred_check_branch
      %143 = sbr.rel (0) target = $region65
    $region64: #{tpu_custom_call.1} parent=1 // pred_region
      %145 = dma.done [#allocation9], 64
    $region65: #{tpu_custom_call.1} parent=1 // pred_fallthru
      _
    // Predicated region
    $region66: #{tpu_custom_call.1} parent=1 // pred_check
      _
    $region67: #{tpu_custom_call.1} parent=1 // pred_check_branch
      %147 = sbr.rel (0) target = $region69
    $region68: #{tpu_custom_call.1} parent=1 // pred_region
      %149 = dma.done [#allocation12], 8192
    $region69: #{tpu_custom_call.1} parent=1 // pred_fallthru
      _
    // Predicated region
    $region70: #{tpu_custom_call.1} parent=1 // pred_check
      _
    $region71: #{tpu_custom_call.1} parent=1 // pred_check_branch
      %151 = sbr.rel (0) target = $region73
    $region72: #{tpu_custom_call.1} parent=1 // pred_region
      %153 = dma.done [#allocation12], 2048
    $region73: #{tpu_custom_call.1} parent=1 // pred_fallthru
      _
    // Predicated region
    $region74: #{tpu_custom_call.1} parent=1 // pred_check
      _
    $region75: #{tpu_custom_call.1} parent=1 // pred_check_branch
      %155 = sbr.rel (0) target = $region77
    $region76: #{tpu_custom_call.1} parent=1 // pred_region
      %157 = dma.done [#allocation15], 1024
    $region77: #{tpu_custom_call.1} parent=1 // pred_fallthru
      _
    %v158 = vld [vmem:[#allocation2] sm:$0xff]
    %v159 = vld [vmem:[#allocation5] sm:$0xff]
    %v160 = vld [vmem:[#allocation5 + $0x8] sm:$0xff]
    %v161 = vld [vmem:[#allocation5 + $0x10] sm:$0xff]
    %v162 = vld [vmem:[#allocation5 + $0x18] sm:$0xff]
    %v163 = vld [vmem:[#allocation5 + $0x20] sm:$0xff]
    %v164 = vld [vmem:[#allocation5 + $0x28] sm:$0xff]
    %v165 = vld [vmem:[#allocation5 + $0x30] sm:$0xff]
    %v166 = vld [vmem:[#allocation5 + $0x38] sm:$0xff]
    %v167 = vld [vmem:[#allocation5 + $0x40] sm:$0xff]
    %v168 = vld [vmem:[#allocation5 + $0x48] sm:$0xff]
    %v169 = vld [vmem:[#allocation5 + $0x50] sm:$0xff]
    %v170 = vld [vmem:[#allocation5 + $0x58] sm:$0xff]
    %v171 = vld [vmem:[#allocation5 + $0x60] sm:$0xff]
    %v172 = vld [vmem:[#allocation5 + $0x68] sm:$0xff]
    %v173 = vld [vmem:[#allocation5 + $0x70] sm:$0xff]
    %v174 = vld [vmem:[#allocation5 + $0x78] sm:$0xff]
    %v175 = vld [vmem:[#allocation5 + $0x80] sm:$0xff]
    %v176 = vld [vmem:[#allocation5 + $0x88] sm:$0xff]
    %v177 = vld [vmem:[#allocation5 + $0x90] sm:$0xff]
    %v178 = vld [vmem:[#allocation5 + $0x98] sm:$0xff]
    %v179 = vld [vmem:[#allocation5 + $0xa0] sm:$0xff]
    %v180 = vld [vmem:[#allocation5 + $0xa8] sm:$0xff]
    %v181 = vld [vmem:[#allocation5 + $0xb0] sm:$0xff]
    %v182 = vld [vmem:[#allocation5 + $0xb8] sm:$0xff]
    %v183 = vld [vmem:[#allocation5 + $0xc0] sm:$0xff]
    %v184 = vld [vmem:[#allocation5 + $0xc8] sm:$0xff]
    %v185 = vld [vmem:[#allocation5 + $0xd0] sm:$0xff]
    %v186 = vld [vmem:[#allocation5 + $0xd8] sm:$0xff]
    %v187 = vld [vmem:[#allocation5 + $0xe0] sm:$0xff]
    %v188 = vld [vmem:[#allocation5 + $0xe8] sm:$0xff]
    %v189 = vld [vmem:[#allocation5 + $0xf0] sm:$0xff]
    %v190 = vld [vmem:[#allocation5 + $0xf8] sm:$0xff]
    %v191 = vld [vmem:[#allocation5 + $0x100] sm:$0xff]
    %v192 = vld [vmem:[#allocation5 + $0x108] sm:$0xff]
    %v193 = vld [vmem:[#allocation5 + $0x110] sm:$0xff]
    %v194 = vld [vmem:[#allocation5 + $0x118] sm:$0xff]
    %v195 = vld [vmem:[#allocation5 + $0x120] sm:$0xff]
    %v196 = vld [vmem:[#allocation5 + $0x128] sm:$0xff]
    %v197 = vld [vmem:[#allocation5 + $0x130] sm:$0xff]
    %v198 = vld [vmem:[#allocation5 + $0x138] sm:$0xff]
    %v199 = vld [vmem:[#allocation5 + $0x140] sm:$0xff]
    %v200 = vld [vmem:[#allocation5 + $0x148] sm:$0xff]
    %v201 = vld [vmem:[#allocation5 + $0x150] sm:$0xff]
    %v202 = vld [vmem:[#allocation5 + $0x158] sm:$0xff]
    %v203 = vld [vmem:[#allocation5 + $0x160] sm:$0xff]
    %v204 = vld [vmem:[#allocation5 + $0x168] sm:$0xff]
    %v205 = vld [vmem:[#allocation5 + $0x170] sm:$0xff]
    %v206 = vld [vmem:[#allocation5 + $0x178] sm:$0xff]
    %v207 = vld [vmem:[#allocation5 + $0x180] sm:$0xff]
    %v208 = vld [vmem:[#allocation5 + $0x188] sm:$0xff]
    %v209 = vld [vmem:[#allocation5 + $0x190] sm:$0xff]
    %v210 = vld [vmem:[#allocation5 + $0x198] sm:$0xff]
    %v211 = vld [vmem:[#allocation5 + $0x1a0] sm:$0xff]
    %v212 = vld [vmem:[#allocation5 + $0x1a8] sm:$0xff]
    %v213 = vld [vmem:[#allocation5 + $0x1b0] sm:$0xff]
    %v214 = vld [vmem:[#allocation5 + $0x1b8] sm:$0xff]
    %v215 = vld [vmem:[#allocation5 + $0x1c0] sm:$0xff]
    %v216 = vld [vmem:[#allocation5 + $0x1c8] sm:$0xff]
    %v217 = vld [vmem:[#allocation5 + $0x1d0] sm:$0xff]
    %v218 = vld [vmem:[#allocation5 + $0x1d8] sm:$0xff]
    %v219 = vld [vmem:[#allocation5 + $0x1e0] sm:$0xff]
    %v220 = vld [vmem:[#allocation5 + $0x1e8] sm:$0xff]
    %v221 = vld [vmem:[#allocation5 + $0x1f0] sm:$0xff]
    %v222 = vld [vmem:[#allocation5 + $0x1f8] sm:$0xff]
    %v223 = vld [vmem:[#allocation5 + $0x200] sm:$0xff]
    %v224 = vld [vmem:[#allocation5 + $0x208] sm:$0xff]
    %v225 = vld [vmem:[#allocation5 + $0x210] sm:$0xff]
    %v226 = vld [vmem:[#allocation5 + $0x218] sm:$0xff]
    %v227 = vld [vmem:[#allocation5 + $0x220] sm:$0xff]
    %v228 = vld [vmem:[#allocation5 + $0x228] sm:$0xff]
    %v229 = vld [vmem:[#allocation5 + $0x230] sm:$0xff]
    %v230 = vld [vmem:[#allocation5 + $0x238] sm:$0xff]
    %v231 = vld [vmem:[#allocation5 + $0x240] sm:$0xff]
    %v232 = vld [vmem:[#allocation5 + $0x248] sm:$0xff]
    %v233 = vld [vmem:[#allocation5 + $0x250] sm:$0xff]
    %v234 = vld [vmem:[#allocation5 + $0x258] sm:$0xff]
    %v235 = vld [vmem:[#allocation5 + $0x260] sm:$0xff]
    %v236 = vld [vmem:[#allocation5 + $0x268] sm:$0xff]
    %v237 = vld [vmem:[#allocation5 + $0x270] sm:$0xff]
    %v238 = vld [vmem:[#allocation5 + $0x278] sm:$0xff]
    %v239 = vld [vmem:[#allocation5 + $0x280] sm:$0xff]
    %v240 = vld [vmem:[#allocation5 + $0x288] sm:$0xff]
    %v241 = vld [vmem:[#allocation5 + $0x290] sm:$0xff]
    %v242 = vld [vmem:[#allocation5 + $0x298] sm:$0xff]
    %v243 = vld [vmem:[#allocation5 + $0x2a0] sm:$0xff]
    %v244 = vld [vmem:[#allocation5 + $0x2a8] sm:$0xff]
    %v245 = vld [vmem:[#allocation5 + $0x2b0] sm:$0xff]
    %v246 = vld [vmem:[#allocation5 + $0x2b8] sm:$0xff]
    %v247 = vld [vmem:[#allocation5 + $0x2c0] sm:$0xff]
    %v248 = vld [vmem:[#allocation5 + $0x2c8] sm:$0xff]
    %v249 = vld [vmem:[#allocation5 + $0x2d0] sm:$0xff]
    %v250 = vld [vmem:[#allocation5 + $0x2d8] sm:$0xff]
    %v251 = vld [vmem:[#allocation5 + $0x2e0] sm:$0xff]
    %v252 = vld [vmem:[#allocation5 + $0x2e8] sm:$0xff]
    %v253 = vld [vmem:[#allocation5 + $0x2f0] sm:$0xff]
    %v254 = vld [vmem:[#allocation5 + $0x2f8] sm:$0xff]
    %v255 = vld [vmem:[#allocation5 + $0x300] sm:$0xff]
    %v256 = vld [vmem:[#allocation5 + $0x308] sm:$0xff]
    %v257 = vld [vmem:[#allocation5 + $0x310] sm:$0xff]
    %v258 = vld [vmem:[#allocation5 + $0x318] sm:$0xff]
    %v259 = vld [vmem:[#allocation5 + $0x320] sm:$0xff]
    %v260 = vld [vmem:[#allocation5 + $0x328] sm:$0xff]
    %v261 = vld [vmem:[#allocation5 + $0x330] sm:$0xff]
    %v262 = vld [vmem:[#allocation5 + $0x338] sm:$0xff]
    %v263 = vld [vmem:[#allocation5 + $0x340] sm:$0xff]
    %v264 = vld [vmem:[#allocation5 + $0x348] sm:$0xff]
    %v265 = vld [vmem:[#allocation5 + $0x350] sm:$0xff]
    %v266 = vld [vmem:[#allocation5 + $0x358] sm:$0xff]
    %v267 = vld [vmem:[#allocation5 + $0x360] sm:$0xff]
    %v268 = vld [vmem:[#allocation5 + $0x368] sm:$0xff]
    %v269 = vld [vmem:[#allocation5 + $0x370] sm:$0xff]
    %v270 = vld [vmem:[#allocation5 + $0x378] sm:$0xff]
    %v271 = vld [vmem:[#allocation5 + $0x380] sm:$0xff]
    %v272 = vld [vmem:[#allocation5 + $0x388] sm:$0xff]
    %v273 = vld [vmem:[#allocation5 + $0x390] sm:$0xff]
    %v274 = vld [vmem:[#allocation5 + $0x398] sm:$0xff]
    %v275 = vld [vmem:[#allocation5 + $0x3a0] sm:$0xff]
    %v276 = vld [vmem:[#allocation5 + $0x3a8] sm:$0xff]
    %v277 = vld [vmem:[#allocation5 + $0x3b0] sm:$0xff]
    %v278 = vld [vmem:[#allocation5 + $0x3b8] sm:$0xff]
    %v279 = vld [vmem:[#allocation5 + $0x3c0] sm:$0xff]
    %v280 = vld [vmem:[#allocation5 + $0x3c8] sm:$0xff]
    %v281 = vld [vmem:[#allocation5 + $0x3d0] sm:$0xff]
    %v282 = vld [vmem:[#allocation5 + $0x3d8] sm:$0xff]
    %v283 = vld [vmem:[#allocation5 + $0x3e0] sm:$0xff]
    %v284 = vld [vmem:[#allocation5 + $0x3e8] sm:$0xff]
    %v285 = vld [vmem:[#allocation5 + $0x3f0] sm:$0xff]
    %v286 = vld [vmem:[#allocation5 + $0x3f8] sm:$0xff]
    %v287 = vld [vmem:[#allocation7] sm:$0xff]
    %v289 = vperm.slane %v287, 0
    %v290 = vperm.slane %v287, 1
    %v291 = vperm.slane %v287, 2
    %v292 = vperm.slane %v287, 3
    %v293 = vperm.slane %v287, 4
    %v294 = vperm.slane %v287, 5
    %v295 = vperm.slane %v287, 6
    %v296 = vperm.slane %v287, 7
    %v306 = vunpack.c.l.b16 %v158
    %v307 = vunpack.c.h.b16 %v158
    %v308 = vpack.c.b16 %v306, %v306
    %v309 = vpack.c.b16 %v307, %v307
    %v440 = vunpack.c.l.b16 %v159
    %v441 = vunpack.c.h.b16 %v159
    %v442 = vunpack.c.l.b16 %v160
    %v443 = vunpack.c.h.b16 %v160
    %v444 = vunpack.c.l.b16 %v161
    %v445 = vunpack.c.h.b16 %v161
    %v446 = vunpack.c.l.b16 %v162
    %v447 = vunpack.c.h.b16 %v162
    %v448 = vunpack.c.l.b16 %v163
    %v449 = vunpack.c.h.b16 %v163
    %v450 = vunpack.c.l.b16 %v164
    %v451 = vunpack.c.h.b16 %v164
    %v452 = vunpack.c.l.b16 %v165
    %v453 = vunpack.c.h.b16 %v165
    %v454 = vunpack.c.l.b16 %v166
    %v455 = vunpack.c.h.b16 %v166
    %v456 = vunpack.c.l.b16 %v167
    %v457 = vunpack.c.h.b16 %v167
    %v458 = vunpack.c.l.b16 %v168
    %v459 = vunpack.c.h.b16 %v168
    %v460 = vunpack.c.l.b16 %v169
    %v461 = vunpack.c.h.b16 %v169
    %v462 = vunpack.c.l.b16 %v170
    %v463 = vunpack.c.h.b16 %v170
    %v464 = vunpack.c.l.b16 %v171
    %v465 = vunpack.c.h.b16 %v171
    %v466 = vunpack.c.l.b16 %v172
    %v467 = vunpack.c.h.b16 %v172
    %v468 = vunpack.c.l.b16 %v173
    %v469 = vunpack.c.h.b16 %v173
    %v470 = vunpack.c.l.b16 %v174
    %v471 = vunpack.c.h.b16 %v174
    %v472 = vunpack.c.l.b16 %v175
    %v473 = vunpack.c.h.b16 %v175
    %v474 = vunpack.c.l.b16 %v176
    %v475 = vunpack.c.h.b16 %v176
    %v476 = vunpack.c.l.b16 %v177
    %v477 = vunpack.c.h.b16 %v177
    %v478 = vunpack.c.l.b16 %v178
    %v479 = vunpack.c.h.b16 %v178
    %v480 = vunpack.c.l.b16 %v179
    %v481 = vunpack.c.h.b16 %v179
    %v482 = vunpack.c.l.b16 %v180
    %v483 = vunpack.c.h.b16 %v180
    %v484 = vunpack.c.l.b16 %v181
    %v485 = vunpack.c.h.b16 %v181
    %v486 = vunpack.c.l.b16 %v182
    %v487 = vunpack.c.h.b16 %v182
    %v488 = vunpack.c.l.b16 %v183
    %v489 = vunpack.c.h.b16 %v183
    %v490 = vunpack.c.l.b16 %v184
    %v491 = vunpack.c.h.b16 %v184
    %v492 = vunpack.c.l.b16 %v185
    %v493 = vunpack.c.h.b16 %v185
    %v494 = vunpack.c.l.b16 %v186
    %v495 = vunpack.c.h.b16 %v186
    %v496 = vunpack.c.l.b16 %v187
    %v497 = vunpack.c.h.b16 %v187
    %v498 = vunpack.c.l.b16 %v188
    %v499 = vunpack.c.h.b16 %v188
    %v500 = vunpack.c.l.b16 %v189
    %v501 = vunpack.c.h.b16 %v189
    %v502 = vunpack.c.l.b16 %v190
    %v503 = vunpack.c.h.b16 %v190
    %v504 = vunpack.c.l.b16 %v191
    %v505 = vunpack.c.h.b16 %v191
    %v506 = vunpack.c.l.b16 %v192
    %v507 = vunpack.c.h.b16 %v192
    %v508 = vunpack.c.l.b16 %v193
    %v509 = vunpack.c.h.b16 %v193
    %v510 = vunpack.c.l.b16 %v194
    %v511 = vunpack.c.h.b16 %v194
    %v512 = vunpack.c.l.b16 %v195
    %v513 = vunpack.c.h.b16 %v195
    %v514 = vunpack.c.l.b16 %v196
    %v515 = vunpack.c.h.b16 %v196
    %v516 = vunpack.c.l.b16 %v197
    %v517 = vunpack.c.h.b16 %v197
    %v518 = vunpack.c.l.b16 %v198
    %v519 = vunpack.c.h.b16 %v198
    %v520 = vunpack.c.l.b16 %v199
    %v521 = vunpack.c.h.b16 %v199
    %v522 = vunpack.c.l.b16 %v200
    %v523 = vunpack.c.h.b16 %v200
    %v524 = vunpack.c.l.b16 %v201
    %v525 = vunpack.c.h.b16 %v201
    %v526 = vunpack.c.l.b16 %v202
    %v527 = vunpack.c.h.b16 %v202
    %v528 = vunpack.c.l.b16 %v203
    %v529 = vunpack.c.h.b16 %v203
    %v530 = vunpack.c.l.b16 %v204
    %v531 = vunpack.c.h.b16 %v204
    %v532 = vunpack.c.l.b16 %v205
    %v533 = vunpack.c.h.b16 %v205
    %v534 = vunpack.c.l.b16 %v206
    %v535 = vunpack.c.h.b16 %v206
    %v536 = vunpack.c.l.b16 %v207
    %v537 = vunpack.c.h.b16 %v207
    %v538 = vunpack.c.l.b16 %v208
    %v539 = vunpack.c.h.b16 %v208
    %v540 = vunpack.c.l.b16 %v209
    %v541 = vunpack.c.h.b16 %v209
    %v542 = vunpack.c.l.b16 %v210
    %v543 = vunpack.c.h.b16 %v210
    %v544 = vunpack.c.l.b16 %v211
    %v545 = vunpack.c.h.b16 %v211
    %v546 = vunpack.c.l.b16 %v212
    %v547 = vunpack.c.h.b16 %v212
    %v548 = vunpack.c.l.b16 %v213
    %v549 = vunpack.c.h.b16 %v213
    %v550 = vunpack.c.l.b16 %v214
    %v551 = vunpack.c.h.b16 %v214
    %v552 = vunpack.c.l.b16 %v215
    %v553 = vunpack.c.h.b16 %v215
    %v554 = vunpack.c.l.b16 %v216
    %v555 = vunpack.c.h.b16 %v216
    %v556 = vunpack.c.l.b16 %v217
    %v557 = vunpack.c.h.b16 %v217
    %v558 = vunpack.c.l.b16 %v218
    %v559 = vunpack.c.h.b16 %v218
    %v560 = vunpack.c.l.b16 %v219
    %v561 = vunpack.c.h.b16 %v219
    %v562 = vunpack.c.l.b16 %v220
    %v563 = vunpack.c.h.b16 %v220
    %v564 = vunpack.c.l.b16 %v221
    %v565 = vunpack.c.h.b16 %v221
    %v566 = vunpack.c.l.b16 %v222
    %v567 = vunpack.c.h.b16 %v222
    %v568 = vunpack.c.l.b16 %v223
    %v569 = vunpack.c.h.b16 %v223
    %v570 = vunpack.c.l.b16 %v224
    %v571 = vunpack.c.h.b16 %v224
    %v572 = vunpack.c.l.b16 %v225
    %v573 = vunpack.c.h.b16 %v225
    %v574 = vunpack.c.l.b16 %v226
    %v575 = vunpack.c.h.b16 %v226
    %v576 = vunpack.c.l.b16 %v227
    %v577 = vunpack.c.h.b16 %v227
    %v578 = vunpack.c.l.b16 %v228
    %v579 = vunpack.c.h.b16 %v228
    %v580 = vunpack.c.l.b16 %v229
    %v581 = vunpack.c.h.b16 %v229
    %v582 = vunpack.c.l.b16 %v230
    %v583 = vunpack.c.h.b16 %v230
    %v584 = vunpack.c.l.b16 %v231
    %v585 = vunpack.c.h.b16 %v231
    %v586 = vunpack.c.l.b16 %v232
    %v587 = vunpack.c.h.b16 %v232
    %v588 = vunpack.c.l.b16 %v233
    %v589 = vunpack.c.h.b16 %v233
    %v590 = vunpack.c.l.b16 %v234
    %v591 = vunpack.c.h.b16 %v234
    %v592 = vunpack.c.l.b16 %v235
    %v593 = vunpack.c.h.b16 %v235
    %v594 = vunpack.c.l.b16 %v236
    %v595 = vunpack.c.h.b16 %v236
    %v596 = vunpack.c.l.b16 %v237
    %v597 = vunpack.c.h.b16 %v237
    %v598 = vunpack.c.l.b16 %v238
    %v599 = vunpack.c.h.b16 %v238
    %v600 = vunpack.c.l.b16 %v239
    %v601 = vunpack.c.h.b16 %v239
    %v602 = vunpack.c.l.b16 %v240
    %v603 = vunpack.c.h.b16 %v240
    %v604 = vunpack.c.l.b16 %v241
    %v605 = vunpack.c.h.b16 %v241
    %v606 = vunpack.c.l.b16 %v242
    %v607 = vunpack.c.h.b16 %v242
    %v608 = vunpack.c.l.b16 %v243
    %v609 = vunpack.c.h.b16 %v243
    %v610 = vunpack.c.l.b16 %v244
    %v611 = vunpack.c.h.b16 %v244
    %v612 = vunpack.c.l.b16 %v245
    %v613 = vunpack.c.h.b16 %v245
    %v614 = vunpack.c.l.b16 %v246
    %v615 = vunpack.c.h.b16 %v246
    %v616 = vunpack.c.l.b16 %v247
    %v617 = vunpack.c.h.b16 %v247
    %v618 = vunpack.c.l.b16 %v248
    %v619 = vunpack.c.h.b16 %v248
    %v620 = vunpack.c.l.b16 %v249
    %v621 = vunpack.c.h.b16 %v249
    %v622 = vunpack.c.l.b16 %v250
    %v623 = vunpack.c.h.b16 %v250
    %v624 = vunpack.c.l.b16 %v251
    %v625 = vunpack.c.h.b16 %v251
    %v626 = vunpack.c.l.b16 %v252
    %v627 = vunpack.c.h.b16 %v252
    %v628 = vunpack.c.l.b16 %v253
    %v629 = vunpack.c.h.b16 %v253
    %v630 = vunpack.c.l.b16 %v254
    %v631 = vunpack.c.h.b16 %v254
    %v632 = vunpack.c.l.b16 %v255
    %v633 = vunpack.c.h.b16 %v255
    %v634 = vunpack.c.l.b16 %v256
    %v635 = vunpack.c.h.b16 %v256
    %v636 = vunpack.c.l.b16 %v257
    %v637 = vunpack.c.h.b16 %v257
    %v638 = vunpack.c.l.b16 %v258
    %v639 = vunpack.c.h.b16 %v258
    %v640 = vunpack.c.l.b16 %v259
    %v641 = vunpack.c.h.b16 %v259
    %v642 = vunpack.c.l.b16 %v260
    %v643 = vunpack.c.h.b16 %v260
    %v644 = vunpack.c.l.b16 %v261
    %v645 = vunpack.c.h.b16 %v261
    %v646 = vunpack.c.l.b16 %v262
    %v647 = vunpack.c.h.b16 %v262
    %v648 = vunpack.c.l.b16 %v263
    %v649 = vunpack.c.h.b16 %v263
    %v650 = vunpack.c.l.b16 %v264
    %v651 = vunpack.c.h.b16 %v264
    %v652 = vunpack.c.l.b16 %v265
    %v653 = vunpack.c.h.b16 %v265
    %v654 = vunpack.c.l.b16 %v266
    %v655 = vunpack.c.h.b16 %v266
    %v656 = vunpack.c.l.b16 %v267
    %v657 = vunpack.c.h.b16 %v267
    %v658 = vunpack.c.l.b16 %v268
    %v659 = vunpack.c.h.b16 %v268
    %v660 = vunpack.c.l.b16 %v269
    %v661 = vunpack.c.h.b16 %v269
    %v662 = vunpack.c.l.b16 %v270
    %v663 = vunpack.c.h.b16 %v270
    %v664 = vunpack.c.l.b16 %v271
    %v665 = vunpack.c.h.b16 %v271
    %v666 = vunpack.c.l.b16 %v272
    %v667 = vunpack.c.h.b16 %v272
    %v668 = vunpack.c.l.b16 %v273
    %v669 = vunpack.c.h.b16 %v273
    %v670 = vunpack.c.l.b16 %v274
    %v671 = vunpack.c.h.b16 %v274
    %v672 = vunpack.c.l.b16 %v275
    %v673 = vunpack.c.h.b16 %v275
    %v674 = vunpack.c.l.b16 %v276
    %v675 = vunpack.c.h.b16 %v276
    %v676 = vunpack.c.l.b16 %v277
    %v677 = vunpack.c.h.b16 %v277
    %v678 = vunpack.c.l.b16 %v278
    %v679 = vunpack.c.h.b16 %v278
    %v680 = vunpack.c.l.b16 %v279
    %v681 = vunpack.c.h.b16 %v279
    %v682 = vunpack.c.l.b16 %v280
    %v683 = vunpack.c.h.b16 %v280
    %v684 = vunpack.c.l.b16 %v281
    %v685 = vunpack.c.h.b16 %v281
    %v686 = vunpack.c.l.b16 %v282
    %v687 = vunpack.c.h.b16 %v282
    %v688 = vunpack.c.l.b16 %v283
    %v689 = vunpack.c.h.b16 %v283
    %v690 = vunpack.c.l.b16 %v284
    %v691 = vunpack.c.h.b16 %v284
    %v692 = vunpack.c.l.b16 %v285
    %v693 = vunpack.c.h.b16 %v285
    %v694 = vunpack.c.l.b16 %v286
    %v695 = vunpack.c.h.b16 %v286
    %v696 = vpack.c.b16 %v448, %v440
    %v697 = vpack.c.b16 %v449, %v441
    %v698 = vpack.c.b16 %v450, %v442
    %v699 = vpack.c.b16 %v451, %v443
    %v700 = vpack.c.b16 %v452, %v444
    %v701 = vpack.c.b16 %v453, %v445
    %v702 = vpack.c.b16 %v454, %v446
    %v703 = vpack.c.b16 %v455, %v447
    %v704 = vpack.c.b16 %v464, %v456
    %v705 = vpack.c.b16 %v465, %v457
    %v706 = vpack.c.b16 %v466, %v458
    %v707 = vpack.c.b16 %v467, %v459
    %v708 = vpack.c.b16 %v468, %v460
    %v709 = vpack.c.b16 %v469, %v461
    %v710 = vpack.c.b16 %v470, %v462
    %v711 = vpack.c.b16 %v471, %v463
    %v712 = vpack.c.b16 %v480, %v472
    %v713 = vpack.c.b16 %v481, %v473
    %v714 = vpack.c.b16 %v482, %v474
    %v715 = vpack.c.b16 %v483, %v475
    %v716 = vpack.c.b16 %v484, %v476
    %v717 = vpack.c.b16 %v485, %v477
    %v718 = vpack.c.b16 %v486, %v478
    %v719 = vpack.c.b16 %v487, %v479
    %v720 = vpack.c.b16 %v496, %v488
    %v721 = vpack.c.b16 %v497, %v489
    %v722 = vpack.c.b16 %v498, %v490
    %v723 = vpack.c.b16 %v499, %v491
    %v724 = vpack.c.b16 %v500, %v492
    %v725 = vpack.c.b16 %v501, %v493
    %v726 = vpack.c.b16 %v502, %v494
    %v727 = vpack.c.b16 %v503, %v495
    %v728 = vpack.c.b16 %v512, %v504
    %v729 = vpack.c.b16 %v513, %v505
    %v730 = vpack.c.b16 %v514, %v506
    %v731 = vpack.c.b16 %v515, %v507
    %v732 = vpack.c.b16 %v516, %v508
    %v733 = vpack.c.b16 %v517, %v509
    %v734 = vpack.c.b16 %v518, %v510
    %v735 = vpack.c.b16 %v519, %v511
    %v736 = vpack.c.b16 %v528, %v520
    %v737 = vpack.c.b16 %v529, %v521
    %v738 = vpack.c.b16 %v530, %v522
    %v739 = vpack.c.b16 %v531, %v523
    %v740 = vpack.c.b16 %v532, %v524
    %v741 = vpack.c.b16 %v533, %v525
    %v742 = vpack.c.b16 %v534, %v526
    %v743 = vpack.c.b16 %v535, %v527
    %v744 = vpack.c.b16 %v544, %v536
    %v745 = vpack.c.b16 %v545, %v537
    %v746 = vpack.c.b16 %v546, %v538
    %v747 = vpack.c.b16 %v547, %v539
    %v748 = vpack.c.b16 %v548, %v540
    %v749 = vpack.c.b16 %v549, %v541
    %v750 = vpack.c.b16 %v550, %v542
    %v751 = vpack.c.b16 %v551, %v543
    %v752 = vpack.c.b16 %v560, %v552
    %v753 = vpack.c.b16 %v561, %v553
    %v754 = vpack.c.b16 %v562, %v554
    %v755 = vpack.c.b16 %v563, %v555
    %v756 = vpack.c.b16 %v564, %v556
    %v757 = vpack.c.b16 %v565, %v557
    %v758 = vpack.c.b16 %v566, %v558
    %v759 = vpack.c.b16 %v567, %v559
    %v760 = vpack.c.b16 %v576, %v568
    %v761 = vpack.c.b16 %v577, %v569
    %v762 = vpack.c.b16 %v578, %v570
    %v763 = vpack.c.b16 %v579, %v571
    %v764 = vpack.c.b16 %v580, %v572
    %v765 = vpack.c.b16 %v581, %v573
    %v766 = vpack.c.b16 %v582, %v574
    %v767 = vpack.c.b16 %v583, %v575
    %v768 = vpack.c.b16 %v592, %v584
    %v769 = vpack.c.b16 %v593, %v585
    %v770 = vpack.c.b16 %v594, %v586
    %v771 = vpack.c.b16 %v595, %v587
    %v772 = vpack.c.b16 %v596, %v588
    %v773 = vpack.c.b16 %v597, %v589
    %v774 = vpack.c.b16 %v598, %v590
    %v775 = vpack.c.b16 %v599, %v591
    %v776 = vpack.c.b16 %v608, %v600
    %v777 = vpack.c.b16 %v609, %v601
    %v778 = vpack.c.b16 %v610, %v602
    %v779 = vpack.c.b16 %v611, %v603
    %v780 = vpack.c.b16 %v612, %v604
    %v781 = vpack.c.b16 %v613, %v605
    %v782 = vpack.c.b16 %v614, %v606
    %v783 = vpack.c.b16 %v615, %v607
    %v784 = vpack.c.b16 %v624, %v616
    %v785 = vpack.c.b16 %v625, %v617
    %v786 = vpack.c.b16 %v626, %v618
    %v787 = vpack.c.b16 %v627, %v619
    %v788 = vpack.c.b16 %v628, %v620
    %v789 = vpack.c.b16 %v629, %v621
    %v790 = vpack.c.b16 %v630, %v622
    %v791 = vpack.c.b16 %v631, %v623
    %v792 = vpack.c.b16 %v640, %v632
    %v793 = vpack.c.b16 %v641, %v633
    %v794 = vpack.c.b16 %v642, %v634
    %v795 = vpack.c.b16 %v643, %v635
    %v796 = vpack.c.b16 %v644, %v636
    %v797 = vpack.c.b16 %v645, %v637
    %v798 = vpack.c.b16 %v646, %v638
    %v799 = vpack.c.b16 %v647, %v639
    %v800 = vpack.c.b16 %v656, %v648
    %v801 = vpack.c.b16 %v657, %v649
    %v802 = vpack.c.b16 %v658, %v650
    %v803 = vpack.c.b16 %v659, %v651
    %v804 = vpack.c.b16 %v660, %v652
    %v805 = vpack.c.b16 %v661, %v653
    %v806 = vpack.c.b16 %v662, %v654
    %v807 = vpack.c.b16 %v663, %v655
    %v808 = vpack.c.b16 %v672, %v664
    %v809 = vpack.c.b16 %v673, %v665
    %v810 = vpack.c.b16 %v674, %v666
    %v811 = vpack.c.b16 %v675, %v667
    %v812 = vpack.c.b16 %v676, %v668
    %v813 = vpack.c.b16 %v677, %v669
    %v814 = vpack.c.b16 %v678, %v670
    %v815 = vpack.c.b16 %v679, %v671
    %v816 = vpack.c.b16 %v688, %v680
    %v817 = vpack.c.b16 %v689, %v681
    %v818 = vpack.c.b16 %v690, %v682
    %v819 = vpack.c.b16 %v691, %v683
    %v820 = vpack.c.b16 %v692, %v684
    %v821 = vpack.c.b16 %v693, %v685
    %v822 = vpack.c.b16 %v694, %v686
    %v823 = vpack.c.b16 %v695, %v687
    %952 = vmatpush.bf16.msra.mxu0 %v752
    %953 = vmatpush.bf16.msra.mxu0 %v744
    %954 = vmatpush.bf16.msra.mxu0 %v736
    %955 = vmatpush.bf16.msra.mxu0 %v728
    %956 = vmatpush.bf16.msra.mxu0 %v720
    %957 = vmatpush.bf16.msra.mxu0 %v712
    %958 = vmatpush.bf16.msra.mxu0 %v704
    %959 = vmatpush.bf16.msra.mxu0 %v696
    %960 = vmatmul.bf16.gmra.mxu0 %v308
    %v961 = vpop.f32.mrf.mxu0
    %v962 = vadd.f32 %v289, %v961
    %v963 = vpop.f32.mrf.mxu0
    %964 = vdwg.mxu0
    %965 = vmatpush.bf16.msra.mxu0 %v816
    %966 = vmatpush.bf16.msra.mxu0 %v808
    %967 = vmatpush.bf16.msra.mxu0 %v800
    %968 = vmatpush.bf16.msra.mxu0 %v792
    %969 = vmatpush.bf16.msra.mxu0 %v784
    %970 = vmatpush.bf16.msra.mxu0 %v776
    %971 = vmatpush.bf16.msra.mxu0 %v768
    %972 = vmatpush.bf16.msra.mxu0 %v760
    %973 = vmatmul.bf16.gmra.mxu0 %v309
    %v974 = vpop.f32.mrf.mxu0
    %v975 = vadd.f32 %v962, %v974
    %v976 = vpop.f32.mrf.mxu0
    %977 = vdwg.mxu0
    %978 = vmatpush.bf16.msra.mxu0 %v753
    %979 = vmatpush.bf16.msra.mxu0 %v745
    %980 = vmatpush.bf16.msra.mxu0 %v737
    %981 = vmatpush.bf16.msra.mxu0 %v729
    %982 = vmatpush.bf16.msra.mxu0 %v721
    %983 = vmatpush.bf16.msra.mxu0 %v713
    %984 = vmatpush.bf16.msra.mxu0 %v705
    %985 = vmatpush.bf16.msra.mxu0 %v697
    %986 = vmatmul.bf16.gmra.mxu0 %v308
    %v987 = vpop.f32.mrf.mxu0
    %v988 = vadd.f32 %v290, %v987
    %v989 = vpop.f32.mrf.mxu0
    %990 = vdwg.mxu0
    %991 = vmatpush.bf16.msra.mxu0 %v817
    %992 = vmatpush.bf16.msra.mxu0 %v809
    %993 = vmatpush.bf16.msra.mxu0 %v801
    %994 = vmatpush.bf16.msra.mxu0 %v793
    %995 = vmatpush.bf16.msra.mxu0 %v785
    %996 = vmatpush.bf16.msra.mxu0 %v777
    %997 = vmatpush.bf16.msra.mxu0 %v769
    %998 = vmatpush.bf16.msra.mxu0 %v761
    %999 = vmatmul.bf16.gmra.mxu0 %v309
    %v1000 = vpop.f32.mrf.mxu0
    %v1001 = vadd.f32 %v988, %v1000
    %v1002 = vpop.f32.mrf.mxu0
    %1003 = vdwg.mxu0
    %1004 = vmatpush.bf16.msra.mxu0 %v754
    %1005 = vmatpush.bf16.msra.mxu0 %v746
    %1006 = vmatpush.bf16.msra.mxu0 %v738
    %1007 = vmatpush.bf16.msra.mxu0 %v730
    %1008 = vmatpush.bf16.msra.mxu0 %v722
    %1009 = vmatpush.bf16.msra.mxu0 %v714
    %1010 = vmatpush.bf16.msra.mxu0 %v706
    %1011 = vmatpush.bf16.msra.mxu0 %v698
    %1012 = vmatmul.bf16.gmra.mxu0 %v308
    %v1013 = vpop.f32.mrf.mxu0
    %v1014 = vadd.f32 %v291, %v1013
    %v1015 = vpop.f32.mrf.mxu0
    %1016 = vdwg.mxu0
    %1017 = vmatpush.bf16.msra.mxu0 %v818
    %1018 = vmatpush.bf16.msra.mxu0 %v810
    %1019 = vmatpush.bf16.msra.mxu0 %v802
    %1020 = vmatpush.bf16.msra.mxu0 %v794
    %1021 = vmatpush.bf16.msra.mxu0 %v786
    %1022 = vmatpush.bf16.msra.mxu0 %v778
    %1023 = vmatpush.bf16.msra.mxu0 %v770
    %1024 = vmatpush.bf16.msra.mxu0 %v762
    %1025 = vmatmul.bf16.gmra.mxu0 %v309
    %v1026 = vpop.f32.mrf.mxu0
    %v1027 = vadd.f32 %v1014, %v1026
    %v1028 = vpop.f32.mrf.mxu0
    %1029 = vdwg.mxu0
    %1030 = vmatpush.bf16.msra.mxu0 %v755
    %1031 = vmatpush.bf16.msra.mxu0 %v747
    %1032 = vmatpush.bf16.msra.mxu0 %v739
    %1033 = vmatpush.bf16.msra.mxu0 %v731
    %1034 = vmatpush.bf16.msra.mxu0 %v723
    %1035 = vmatpush.bf16.msra.mxu0 %v715
    %1036 = vmatpush.bf16.msra.mxu0 %v707
    %1037 = vmatpush.bf16.msra.mxu0 %v699
    %1038 = vmatmul.bf16.gmra.mxu0 %v308
    %v1039 = vpop.f32.mrf.mxu0
    %v1040 = vadd.f32 %v292, %v1039
    %v1041 = vpop.f32.mrf.mxu0
    %1042 = vdwg.mxu0
    %1043 = vmatpush.bf16.msra.mxu0 %v819
    %1044 = vmatpush.bf16.msra.mxu0 %v811
    %1045 = vmatpush.bf16.msra.mxu0 %v803
    %1046 = vmatpush.bf16.msra.mxu0 %v795
    %1047 = vmatpush.bf16.msra.mxu0 %v787
    %1048 = vmatpush.bf16.msra.mxu0 %v779
    %1049 = vmatpush.bf16.msra.mxu0 %v771
    %1050 = vmatpush.bf16.msra.mxu0 %v763
    %1051 = vmatmul.bf16.gmra.mxu0 %v309
    %v1052 = vpop.f32.mrf.mxu0
    %v1053 = vadd.f32 %v1040, %v1052
    %v1054 = vpop.f32.mrf.mxu0
    %1055 = vdwg.mxu0
    %1056 = vmatpush.bf16.msra.mxu0 %v756
    %1057 = vmatpush.bf16.msra.mxu0 %v748
    %1058 = vmatpush.bf16.msra.mxu0 %v740
    %1059 = vmatpush.bf16.msra.mxu0 %v732
    %1060 = vmatpush.bf16.msra.mxu0 %v724
    %1061 = vmatpush.bf16.msra.mxu0 %v716
    %1062 = vmatpush.bf16.msra.mxu0 %v708
    %1063 = vmatpush.bf16.msra.mxu0 %v700
    %1064 = vmatmul.bf16.gmra.mxu0 %v308
    %v1065 = vpop.f32.mrf.mxu0
    %v1066 = vadd.f32 %v293, %v1065
    %v1067 = vpop.f32.mrf.mxu0
    %1068 = vdwg.mxu0
    %1069 = vmatpush.bf16.msra.mxu0 %v820
    %1070 = vmatpush.bf16.msra.mxu0 %v812
    %1071 = vmatpush.bf16.msra.mxu0 %v804
    %1072 = vmatpush.bf16.msra.mxu0 %v796
    %1073 = vmatpush.bf16.msra.mxu0 %v788
    %1074 = vmatpush.bf16.msra.mxu0 %v780
    %1075 = vmatpush.bf16.msra.mxu0 %v772
    %1076 = vmatpush.bf16.msra.mxu0 %v764
    %1077 = vmatmul.bf16.gmra.mxu0 %v309
    %v1078 = vpop.f32.mrf.mxu0
    %v1079 = vadd.f32 %v1066, %v1078
    %v1080 = vpop.f32.mrf.mxu0
    %1081 = vdwg.mxu0
    %1082 = vmatpush.bf16.msra.mxu0 %v757
    %1083 = vmatpush.bf16.msra.mxu0 %v749
    %1084 = vmatpush.bf16.msra.mxu0 %v741
    %1085 = vmatpush.bf16.msra.mxu0 %v733
    %1086 = vmatpush.bf16.msra.mxu0 %v725
    %1087 = vmatpush.bf16.msra.mxu0 %v717
    %1088 = vmatpush.bf16.msra.mxu0 %v709
    %1089 = vmatpush.bf16.msra.mxu0 %v701
    %1090 = vmatmul.bf16.gmra.mxu0 %v308
    %v1091 = vpop.f32.mrf.mxu0
    %v1092 = vadd.f32 %v294, %v1091
    %v1093 = vpop.f32.mrf.mxu0
    %1094 = vdwg.mxu0
    %1095 = vmatpush.bf16.msra.mxu0 %v821
    %1096 = vmatpush.bf16.msra.mxu0 %v813
    %1097 = vmatpush.bf16.msra.mxu0 %v805
    %1098 = vmatpush.bf16.msra.mxu0 %v797
    %1099 = vmatpush.bf16.msra.mxu0 %v789
    %1100 = vmatpush.bf16.msra.mxu0 %v781
    %1101 = vmatpush.bf16.msra.mxu0 %v773
    %1102 = vmatpush.bf16.msra.mxu0 %v765
    %1103 = vmatmul.bf16.gmra.mxu0 %v309
    %v1104 = vpop.f32.mrf.mxu0
    %v1105 = vadd.f32 %v1092, %v1104
    %v1106 = vpop.f32.mrf.mxu0
    %1107 = vdwg.mxu0
    %1108 = vmatpush.bf16.msra.mxu0 %v758
    %1109 = vmatpush.bf16.msra.mxu0 %v750
    %1110 = vmatpush.bf16.msra.mxu0 %v742
    %1111 = vmatpush.bf16.msra.mxu0 %v734
    %1112 = vmatpush.bf16.msra.mxu0 %v726
    %1113 = vmatpush.bf16.msra.mxu0 %v718
    %1114 = vmatpush.bf16.msra.mxu0 %v710
    %1115 = vmatpush.bf16.msra.mxu0 %v702
    %1116 = vmatmul.bf16.gmra.mxu0 %v308
    %v1117 = vpop.f32.mrf.mxu0
    %v1118 = vadd.f32 %v295, %v1117
    %v1119 = vpop.f32.mrf.mxu0
    %1120 = vdwg.mxu0
    %1121 = vmatpush.bf16.msra.mxu0 %v822
    %1122 = vmatpush.bf16.msra.mxu0 %v814
    %1123 = vmatpush.bf16.msra.mxu0 %v806
    %1124 = vmatpush.bf16.msra.mxu0 %v798
    %1125 = vmatpush.bf16.msra.mxu0 %v790
    %1126 = vmatpush.bf16.msra.mxu0 %v782
    %1127 = vmatpush.bf16.msra.mxu0 %v774
    %1128 = vmatpush.bf16.msra.mxu0 %v766
    %1129 = vmatmul.bf16.gmra.mxu0 %v309
    %v1130 = vpop.f32.mrf.mxu0
    %v1131 = vadd.f32 %v1118, %v1130
    %v1132 = vpop.f32.mrf.mxu0
    %1133 = vdwg.mxu0
    %1134 = vmatpush.bf16.msra.mxu0 %v759
    %1135 = vmatpush.bf16.msra.mxu0 %v751
    %1136 = vmatpush.bf16.msra.mxu0 %v743
    %1137 = vmatpush.bf16.msra.mxu0 %v735
    %1138 = vmatpush.bf16.msra.mxu0 %v727
    %1139 = vmatpush.bf16.msra.mxu0 %v719
    %1140 = vmatpush.bf16.msra.mxu0 %v711
    %1141 = vmatpush.bf16.msra.mxu0 %v703
    %1142 = vmatmul.bf16.gmra.mxu0 %v308
    %v1143 = vpop.f32.mrf.mxu0
    %v1144 = vadd.f32 %v296, %v1143
    %v1145 = vpop.f32.mrf.mxu0
    %1146 = vdwg.mxu0
    %1147 = vmatpush.bf16.msra.mxu0 %v823
    %1148 = vmatpush.bf16.msra.mxu0 %v815
    %1149 = vmatpush.bf16.msra.mxu0 %v807
    %1150 = vmatpush.bf16.msra.mxu0 %v799
    %1151 = vmatpush.bf16.msra.mxu0 %v791
    %1152 = vmatpush.bf16.msra.mxu0 %v783
    %1153 = vmatpush.bf16.msra.mxu0 %v775
    %1154 = vmatpush.bf16.msra.mxu0 %v767
    %1155 = vmatmul.bf16.gmra.mxu0 %v309
    %v1156 = vpop.f32.mrf.mxu0
    %v1157 = vadd.f32 %v1144, %v1156
    %v1158 = vpop.f32.mrf.mxu0
    %1159 = vdwg.mxu0
    %v1160 = vmax.f32 %v975, 0.0
    %v1161 = vmax.f32 %v1001, 0.0
    %v1162 = vmax.f32 %v1027, 0.0
    %v1163 = vmax.f32 %v1053, 0.0
    %v1164 = vmax.f32 %v1079, 0.0
    %v1165 = vmax.f32 %v1105, 0.0
    %v1166 = vmax.f32 %v1131, 0.0
    %v1167 = vmax.f32 %v1157, 0.0
    %v1168 = vpack.c.bf16 %v1160, %v1160
    %v1169 = vpack.c.bf16 %v1161, %v1161
    %v1170 = vpack.c.bf16 %v1162, %v1162
    %v1171 = vpack.c.bf16 %v1163, %v1163
    %v1172 = vpack.c.bf16 %v1164, %v1164
    %v1173 = vpack.c.bf16 %v1165, %v1165
    %v1174 = vpack.c.bf16 %v1166, %v1166
    %v1175 = vpack.c.bf16 %v1167, %v1167
    %v1176 = vld [vmem:[#allocation8] sm:$0xff]
    %v1177 = vld [vmem:[#allocation8 + $0x8] sm:$0xff]
    %v1178 = vld [vmem:[#allocation8 + $0x10] sm:$0xff]
    %v1179 = vld [vmem:[#allocation8 + $0x18] sm:$0xff]
    %v1180 = vld [vmem:[#allocation8 + $0x20] sm:$0xff]
    %v1181 = vld [vmem:[#allocation8 + $0x28] sm:$0xff]
    %v1182 = vld [vmem:[#allocation8 + $0x30] sm:$0xff]
    %v1183 = vld [vmem:[#allocation8 + $0x38] sm:$0xff]
    %v1184 = vld [vmem:[#allocation8 + $0x40] sm:$0xff]
    %v1185 = vld [vmem:[#allocation8 + $0x48] sm:$0xff]
    %v1186 = vld [vmem:[#allocation8 + $0x50] sm:$0xff]
    %v1187 = vld [vmem:[#allocation8 + $0x58] sm:$0xff]
    %v1188 = vld [vmem:[#allocation8 + $0x60] sm:$0xff]
    %v1189 = vld [vmem:[#allocation8 + $0x68] sm:$0xff]
    %v1190 = vld [vmem:[#allocation8 + $0x70] sm:$0xff]
    %v1191 = vld [vmem:[#allocation8 + $0x78] sm:$0xff]
    %v1192 = vld [vmem:[#allocation8 + $0x80] sm:$0xff]
    %v1193 = vld [vmem:[#allocation8 + $0x88] sm:$0xff]
    %v1194 = vld [vmem:[#allocation8 + $0x90] sm:$0xff]
    %v1195 = vld [vmem:[#allocation8 + $0x98] sm:$0xff]
    %v1196 = vld [vmem:[#allocation8 + $0xa0] sm:$0xff]
    %v1197 = vld [vmem:[#allocation8 + $0xa8] sm:$0xff]
    %v1198 = vld [vmem:[#allocation8 + $0xb0] sm:$0xff]
    %v1199 = vld [vmem:[#allocation8 + $0xb8] sm:$0xff]
    %v1200 = vld [vmem:[#allocation8 + $0xc0] sm:$0xff]
    %v1201 = vld [vmem:[#allocation8 + $0xc8] sm:$0xff]
    %v1202 = vld [vmem:[#allocation8 + $0xd0] sm:$0xff]
    %v1203 = vld [vmem:[#allocation8 + $0xd8] sm:$0xff]
    %v1204 = vld [vmem:[#allocation8 + $0xe0] sm:$0xff]
    %v1205 = vld [vmem:[#allocation8 + $0xe8] sm:$0xff]
    %v1206 = vld [vmem:[#allocation8 + $0xf0] sm:$0xff]
    %v1207 = vld [vmem:[#allocation8 + $0xf8] sm:$0xff]
    %v1208 = vld [vmem:[#allocation8 + $0x100] sm:$0xff]
    %v1209 = vld [vmem:[#allocation8 + $0x108] sm:$0xff]
    %v1210 = vld [vmem:[#allocation8 + $0x110] sm:$0xff]
    %v1211 = vld [vmem:[#allocation8 + $0x118] sm:$0xff]
    %v1212 = vld [vmem:[#allocation8 + $0x120] sm:$0xff]
    %v1213 = vld [vmem:[#allocation8 + $0x128] sm:$0xff]
    %v1214 = vld [vmem:[#allocation8 + $0x130] sm:$0xff]
    %v1215 = vld [vmem:[#allocation8 + $0x138] sm:$0xff]
    %v1216 = vld [vmem:[#allocation8 + $0x140] sm:$0xff]
    %v1217 = vld [vmem:[#allocation8 + $0x148] sm:$0xff]
    %v1218 = vld [vmem:[#allocation8 + $0x150] sm:$0xff]
    %v1219 = vld [vmem:[#allocation8 + $0x158] sm:$0xff]
    %v1220 = vld [vmem:[#allocation8 + $0x160] sm:$0xff]
    %v1221 = vld [vmem:[#allocation8 + $0x168] sm:$0xff]
    %v1222 = vld [vmem:[#allocation8 + $0x170] sm:$0xff]
    %v1223 = vld [vmem:[#allocation8 + $0x178] sm:$0xff]
    %v1224 = vld [vmem:[#allocation8 + $0x180] sm:$0xff]
    %v1225 = vld [vmem:[#allocation8 + $0x188] sm:$0xff]
    %v1226 = vld [vmem:[#allocation8 + $0x190] sm:$0xff]
    %v1227 = vld [vmem:[#allocation8 + $0x198] sm:$0xff]
    %v1228 = vld [vmem:[#allocation8 + $0x1a0] sm:$0xff]
    %v1229 = vld [vmem:[#allocation8 + $0x1a8] sm:$0xff]
    %v1230 = vld [vmem:[#allocation8 + $0x1b0] sm:$0xff]
    %v1231 = vld [vmem:[#allocation8 + $0x1b8] sm:$0xff]
    %v1232 = vld [vmem:[#allocation8 + $0x1c0] sm:$0xff]
    %v1233 = vld [vmem:[#allocation8 + $0x1c8] sm:$0xff]
    %v1234 = vld [vmem:[#allocation8 + $0x1d0] sm:$0xff]
    %v1235 = vld [vmem:[#allocation8 + $0x1d8] sm:$0xff]
    %v1236 = vld [vmem:[#allocation8 + $0x1e0] sm:$0xff]
    %v1237 = vld [vmem:[#allocation8 + $0x1e8] sm:$0xff]
    %v1238 = vld [vmem:[#allocation8 + $0x1f0] sm:$0xff]
    %v1239 = vld [vmem:[#allocation8 + $0x1f8] sm:$0xff]
    %v1240 = vld [vmem:[#allocation8 + $0x200] sm:$0xff]
    %v1241 = vld [vmem:[#allocation8 + $0x208] sm:$0xff]
    %v1242 = vld [vmem:[#allocation8 + $0x210] sm:$0xff]
    %v1243 = vld [vmem:[#allocation8 + $0x218] sm:$0xff]
    %v1244 = vld [vmem:[#allocation8 + $0x220] sm:$0xff]
    %v1245 = vld [vmem:[#allocation8 + $0x228] sm:$0xff]
    %v1246 = vld [vmem:[#allocation8 + $0x230] sm:$0xff]
    %v1247 = vld [vmem:[#allocation8 + $0x238] sm:$0xff]
    %v1248 = vld [vmem:[#allocation8 + $0x240] sm:$0xff]
    %v1249 = vld [vmem:[#allocation8 + $0x248] sm:$0xff]
    %v1250 = vld [vmem:[#allocation8 + $0x250] sm:$0xff]
    %v1251 = vld [vmem:[#allocation8 + $0x258] sm:$0xff]
    %v1252 = vld [vmem:[#allocation8 + $0x260] sm:$0xff]
    %v1253 = vld [vmem:[#allocation8 + $0x268] sm:$0xff]
    %v1254 = vld [vmem:[#allocation8 + $0x270] sm:$0xff]
    %v1255 = vld [vmem:[#allocation8 + $0x278] sm:$0xff]
    %v1256 = vld [vmem:[#allocation8 + $0x280] sm:$0xff]
    %v1257 = vld [vmem:[#allocation8 + $0x288] sm:$0xff]
    %v1258 = vld [vmem:[#allocation8 + $0x290] sm:$0xff]
    %v1259 = vld [vmem:[#allocation8 + $0x298] sm:$0xff]
    %v1260 = vld [vmem:[#allocation8 + $0x2a0] sm:$0xff]
    %v1261 = vld [vmem:[#allocation8 + $0x2a8] sm:$0xff]
    %v1262 = vld [vmem:[#allocation8 + $0x2b0] sm:$0xff]
    %v1263 = vld [vmem:[#allocation8 + $0x2b8] sm:$0xff]
    %v1264 = vld [vmem:[#allocation8 + $0x2c0] sm:$0xff]
    %v1265 = vld [vmem:[#allocation8 + $0x2c8] sm:$0xff]
    %v1266 = vld [vmem:[#allocation8 + $0x2d0] sm:$0xff]
    %v1267 = vld [vmem:[#allocation8 + $0x2d8] sm:$0xff]
    %v1268 = vld [vmem:[#allocation8 + $0x2e0] sm:$0xff]
    %v1269 = vld [vmem:[#allocation8 + $0x2e8] sm:$0xff]
    %v1270 = vld [vmem:[#allocation8 + $0x2f0] sm:$0xff]
    %v1271 = vld [vmem:[#allocation8 + $0x2f8] sm:$0xff]
    %v1272 = vld [vmem:[#allocation8 + $0x300] sm:$0xff]
    %v1273 = vld [vmem:[#allocation8 + $0x308] sm:$0xff]
    %v1274 = vld [vmem:[#allocation8 + $0x310] sm:$0xff]
    %v1275 = vld [vmem:[#allocation8 + $0x318] sm:$0xff]
    %v1276 = vld [vmem:[#allocation8 + $0x320] sm:$0xff]
    %v1277 = vld [vmem:[#allocation8 + $0x328] sm:$0xff]
    %v1278 = vld [vmem:[#allocation8 + $0x330] sm:$0xff]
    %v1279 = vld [vmem:[#allocation8 + $0x338] sm:$0xff]
    %v1280 = vld [vmem:[#allocation8 + $0x340] sm:$0xff]
    %v1281 = vld [vmem:[#allocation8 + $0x348] sm:$0xff]
    %v1282 = vld [vmem:[#allocation8 + $0x350] sm:$0xff]
    %v1283 = vld [vmem:[#allocation8 + $0x358] sm:$0xff]
    %v1284 = vld [vmem:[#allocation8 + $0x360] sm:$0xff]
    %v1285 = vld [vmem:[#allocation8 + $0x368] sm:$0xff]
    %v1286 = vld [vmem:[#allocation8 + $0x370] sm:$0xff]
    %v1287 = vld [vmem:[#allocation8 + $0x378] sm:$0xff]
    %v1288 = vld [vmem:[#allocation8 + $0x380] sm:$0xff]
    %v1289 = vld [vmem:[#allocation8 + $0x388] sm:$0xff]
    %v1290 = vld [vmem:[#allocation8 + $0x390] sm:$0xff]
    %v1291 = vld [vmem:[#allocation8 + $0x398] sm:$0xff]
    %v1292 = vld [vmem:[#allocation8 + $0x3a0] sm:$0xff]
    %v1293 = vld [vmem:[#allocation8 + $0x3a8] sm:$0xff]
    %v1294 = vld [vmem:[#allocation8 + $0x3b0] sm:$0xff]
    %v1295 = vld [vmem:[#allocation8 + $0x3b8] sm:$0xff]
    %v1296 = vld [vmem:[#allocation8 + $0x3c0] sm:$0xff]
    %v1297 = vld [vmem:[#allocation8 + $0x3c8] sm:$0xff]
    %v1298 = vld [vmem:[#allocation8 + $0x3d0] sm:$0xff]
    %v1299 = vld [vmem:[#allocation8 + $0x3d8] sm:$0xff]
    %v1300 = vld [vmem:[#allocation8 + $0x3e0] sm:$0xff]
    %v1301 = vld [vmem:[#allocation8 + $0x3e8] sm:$0xff]
    %v1302 = vld [vmem:[#allocation8 + $0x3f0] sm:$0xff]
    %v1303 = vld [vmem:[#allocation8 + $0x3f8] sm:$0xff]
    %v1304 = vld [vmem:[#allocation8 + $0x400] sm:$0xff]
    %v1305 = vld [vmem:[#allocation8 + $0x408] sm:$0xff]
    %v1306 = vld [vmem:[#allocation8 + $0x410] sm:$0xff]
    %v1307 = vld [vmem:[#allocation8 + $0x418] sm:$0xff]
    %v1308 = vld [vmem:[#allocation8 + $0x420] sm:$0xff]
    %v1309 = vld [vmem:[#allocation8 + $0x428] sm:$0xff]
    %v1310 = vld [vmem:[#allocation8 + $0x430] sm:$0xff]
    %v1311 = vld [vmem:[#allocation8 + $0x438] sm:$0xff]
    %v1312 = vld [vmem:[#allocation8 + $0x440] sm:$0xff]
    %v1313 = vld [vmem:[#allocation8 + $0x448] sm:$0xff]
    %v1314 = vld [vmem:[#allocation8 + $0x450] sm:$0xff]
    %v1315 = vld [vmem:[#allocation8 + $0x458] sm:$0xff]
    %v1316 = vld [vmem:[#allocation8 + $0x460] sm:$0xff]
    %v1317 = vld [vmem:[#allocation8 + $0x468] sm:$0xff]
    %v1318 = vld [vmem:[#allocation8 + $0x470] sm:$0xff]
    %v1319 = vld [vmem:[#allocation8 + $0x478] sm:$0xff]
    %v1320 = vld [vmem:[#allocation8 + $0x480] sm:$0xff]
    %v1321 = vld [vmem:[#allocation8 + $0x488] sm:$0xff]
    %v1322 = vld [vmem:[#allocation8 + $0x490] sm:$0xff]
    %v1323 = vld [vmem:[#allocation8 + $0x498] sm:$0xff]
    %v1324 = vld [vmem:[#allocation8 + $0x4a0] sm:$0xff]
    %v1325 = vld [vmem:[#allocation8 + $0x4a8] sm:$0xff]
    %v1326 = vld [vmem:[#allocation8 + $0x4b0] sm:$0xff]
    %v1327 = vld [vmem:[#allocation8 + $0x4b8] sm:$0xff]
    %v1328 = vld [vmem:[#allocation8 + $0x4c0] sm:$0xff]
    %v1329 = vld [vmem:[#allocation8 + $0x4c8] sm:$0xff]
    %v1330 = vld [vmem:[#allocation8 + $0x4d0] sm:$0xff]
    %v1331 = vld [vmem:[#allocation8 + $0x4d8] sm:$0xff]
    %v1332 = vld [vmem:[#allocation8 + $0x4e0] sm:$0xff]
    %v1333 = vld [vmem:[#allocation8 + $0x4e8] sm:$0xff]
    %v1334 = vld [vmem:[#allocation8 + $0x4f0] sm:$0xff]
    %v1335 = vld [vmem:[#allocation8 + $0x4f8] sm:$0xff]
    %v1336 = vld [vmem:[#allocation8 + $0x500] sm:$0xff]
    %v1337 = vld [vmem:[#allocation8 + $0x508] sm:$0xff]
    %v1338 = vld [vmem:[#allocation8 + $0x510] sm:$0xff]
    %v1339 = vld [vmem:[#allocation8 + $0x518] sm:$0xff]
    %v1340 = vld [vmem:[#allocation8 + $0x520] sm:$0xff]
    %v1341 = vld [vmem:[#allocation8 + $0x528] sm:$0xff]
    %v1342 = vld [vmem:[#allocation8 + $0x530] sm:$0xff]
    %v1343 = vld [vmem:[#allocation8 + $0x538] sm:$0xff]
    %v1344 = vld [vmem:[#allocation8 + $0x540] sm:$0xff]
    %v1345 = vld [vmem:[#allocation8 + $0x548] sm:$0xff]
    %v1346 = vld [vmem:[#allocation8 + $0x550] sm:$0xff]
    %v1347 = vld [vmem:[#allocation8 + $0x558] sm:$0xff]
    %v1348 = vld [vmem:[#allocation8 + $0x560] sm:$0xff]
    %v1349 = vld [vmem:[#allocation8 + $0x568] sm:$0xff]
    %v1350 = vld [vmem:[#allocation8 + $0x570] sm:$0xff]
    %v1351 = vld [vmem:[#allocation8 + $0x578] sm:$0xff]
    %v1352 = vld [vmem:[#allocation8 + $0x580] sm:$0xff]
    %v1353 = vld [vmem:[#allocation8 + $0x588] sm:$0xff]
    %v1354 = vld [vmem:[#allocation8 + $0x590] sm:$0xff]
    %v1355 = vld [vmem:[#allocation8 + $0x598] sm:$0xff]
    %v1356 = vld [vmem:[#allocation8 + $0x5a0] sm:$0xff]
    %v1357 = vld [vmem:[#allocation8 + $0x5a8] sm:$0xff]
    %v1358 = vld [vmem:[#allocation8 + $0x5b0] sm:$0xff]
    %v1359 = vld [vmem:[#allocation8 + $0x5b8] sm:$0xff]
    %v1360 = vld [vmem:[#allocation8 + $0x5c0] sm:$0xff]
    %v1361 = vld [vmem:[#allocation8 + $0x5c8] sm:$0xff]
    %v1362 = vld [vmem:[#allocation8 + $0x5d0] sm:$0xff]
    %v1363 = vld [vmem:[#allocation8 + $0x5d8] sm:$0xff]
    %v1364 = vld [vmem:[#allocation8 + $0x5e0] sm:$0xff]
    %v1365 = vld [vmem:[#allocation8 + $0x5e8] sm:$0xff]
    %v1366 = vld [vmem:[#allocation8 + $0x5f0] sm:$0xff]
    %v1367 = vld [vmem:[#allocation8 + $0x5f8] sm:$0xff]
    %v1368 = vld [vmem:[#allocation8 + $0x600] sm:$0xff]
    %v1369 = vld [vmem:[#allocation8 + $0x608] sm:$0xff]
    %v1370 = vld [vmem:[#allocation8 + $0x610] sm:$0xff]
    %v1371 = vld [vmem:[#allocation8 + $0x618] sm:$0xff]
    %v1372 = vld [vmem:[#allocation8 + $0x620] sm:$0xff]
    %v1373 = vld [vmem:[#allocation8 + $0x628] sm:$0xff]
    %v1374 = vld [vmem:[#allocation8 + $0x630] sm:$0xff]
    %v1375 = vld [vmem:[#allocation8 + $0x638] sm:$0xff]
    %v1376 = vld [vmem:[#allocation8 + $0x640] sm:$0xff]
    %v1377 = vld [vmem:[#allocation8 + $0x648] sm:$0xff]
    %v1378 = vld [vmem:[#allocation8 + $0x650] sm:$0xff]
    %v1379 = vld [vmem:[#allocation8 + $0x658] sm:$0xff]
    %v1380 = vld [vmem:[#allocation8 + $0x660] sm:$0xff]
    %v1381 = vld [vmem:[#allocation8 + $0x668] sm:$0xff]
    %v1382 = vld [vmem:[#allocation8 + $0x670] sm:$0xff]
    %v1383 = vld [vmem:[#allocation8 + $0x678] sm:$0xff]
    %v1384 = vld [vmem:[#allocation8 + $0x680] sm:$0xff]
    %v1385 = vld [vmem:[#allocation8 + $0x688] sm:$0xff]
    %v1386 = vld [vmem:[#allocation8 + $0x690] sm:$0xff]
    %v1387 = vld [vmem:[#allocation8 + $0x698] sm:$0xff]
    %v1388 = vld [vmem:[#allocation8 + $0x6a0] sm:$0xff]
    %v1389 = vld [vmem:[#allocation8 + $0x6a8] sm:$0xff]
    %v1390 = vld [vmem:[#allocation8 + $0x6b0] sm:$0xff]
    %v1391 = vld [vmem:[#allocation8 + $0x6b8] sm:$0xff]
    %v1392 = vld [vmem:[#allocation8 + $0x6c0] sm:$0xff]
    %v1393 = vld [vmem:[#allocation8 + $0x6c8] sm:$0xff]
    %v1394 = vld [vmem:[#allocation8 + $0x6d0] sm:$0xff]
    %v1395 = vld [vmem:[#allocation8 + $0x6d8] sm:$0xff]
    %v1396 = vld [vmem:[#allocation8 + $0x6e0] sm:$0xff]
    %v1397 = vld [vmem:[#allocation8 + $0x6e8] sm:$0xff]
    %v1398 = vld [vmem:[#allocation8 + $0x6f0] sm:$0xff]
    %v1399 = vld [vmem:[#allocation8 + $0x6f8] sm:$0xff]
    %v1400 = vld [vmem:[#allocation8 + $0x700] sm:$0xff]
    %v1401 = vld [vmem:[#allocation8 + $0x708] sm:$0xff]
    %v1402 = vld [vmem:[#allocation8 + $0x710] sm:$0xff]
    %v1403 = vld [vmem:[#allocation8 + $0x718] sm:$0xff]
    %v1404 = vld [vmem:[#allocation8 + $0x720] sm:$0xff]
    %v1405 = vld [vmem:[#allocation8 + $0x728] sm:$0xff]
    %v1406 = vld [vmem:[#allocation8 + $0x730] sm:$0xff]
    %v1407 = vld [vmem:[#allocation8 + $0x738] sm:$0xff]
    %v1408 = vld [vmem:[#allocation8 + $0x740] sm:$0xff]
    %v1409 = vld [vmem:[#allocation8 + $0x748] sm:$0xff]
    %v1410 = vld [vmem:[#allocation8 + $0x750] sm:$0xff]
    %v1411 = vld [vmem:[#allocation8 + $0x758] sm:$0xff]
    %v1412 = vld [vmem:[#allocation8 + $0x760] sm:$0xff]
    %v1413 = vld [vmem:[#allocation8 + $0x768] sm:$0xff]
    %v1414 = vld [vmem:[#allocation8 + $0x770] sm:$0xff]
    %v1415 = vld [vmem:[#allocation8 + $0x778] sm:$0xff]
    %v1416 = vld [vmem:[#allocation8 + $0x780] sm:$0xff]
    %v1417 = vld [vmem:[#allocation8 + $0x788] sm:$0xff]
    %v1418 = vld [vmem:[#allocation8 + $0x790] sm:$0xff]
    %v1419 = vld [vmem:[#allocation8 + $0x798] sm:$0xff]
    %v1420 = vld [vmem:[#allocation8 + $0x7a0] sm:$0xff]
    %v1421 = vld [vmem:[#allocation8 + $0x7a8] sm:$0xff]
    %v1422 = vld [vmem:[#allocation8 + $0x7b0] sm:$0xff]
    %v1423 = vld [vmem:[#allocation8 + $0x7b8] sm:$0xff]
    %v1424 = vld [vmem:[#allocation8 + $0x7c0] sm:$0xff]
    %v1425 = vld [vmem:[#allocation8 + $0x7c8] sm:$0xff]
    %v1426 = vld [vmem:[#allocation8 + $0x7d0] sm:$0xff]
    %v1427 = vld [vmem:[#allocation8 + $0x7d8] sm:$0xff]
    %v1428 = vld [vmem:[#allocation8 + $0x7e0] sm:$0xff]
    %v1429 = vld [vmem:[#allocation8 + $0x7e8] sm:$0xff]
    %v1430 = vld [vmem:[#allocation8 + $0x7f0] sm:$0xff]
    %v1431 = vld [vmem:[#allocation8 + $0x7f8] sm:$0xff]
    %v1432 = vld [vmem:[#allocation10] sm:$0xf]
    %v1434 = vperm.slane %v1432, 0
    %v1435 = vperm.slane %v1432, 1
    %v1436 = vperm.slane %v1432, 2
    %v1437 = vperm.slane %v1432, 3
    %v1698 = vunpack.c.l.b16 %v1176
    %v1699 = vunpack.c.h.b16 %v1176
    %v1700 = vunpack.c.l.b16 %v1177
    %v1701 = vunpack.c.h.b16 %v1177
    %v1702 = vunpack.c.l.b16 %v1178
    %v1703 = vunpack.c.h.b16 %v1178
    %v1704 = vunpack.c.l.b16 %v1179
    %v1705 = vunpack.c.h.b16 %v1179
    %v1706 = vunpack.c.l.b16 %v1180
    %v1707 = vunpack.c.h.b16 %v1180
    %v1708 = vunpack.c.l.b16 %v1181
    %v1709 = vunpack.c.h.b16 %v1181
    %v1710 = vunpack.c.l.b16 %v1182
    %v1711 = vunpack.c.h.b16 %v1182
    %v1712 = vunpack.c.l.b16 %v1183
    %v1713 = vunpack.c.h.b16 %v1183
    %v1714 = vunpack.c.l.b16 %v1184
    %v1715 = vunpack.c.h.b16 %v1184
    %v1716 = vunpack.c.l.b16 %v1185
    %v1717 = vunpack.c.h.b16 %v1185
    %v1718 = vunpack.c.l.b16 %v1186
    %v1719 = vunpack.c.h.b16 %v1186
    %v1720 = vunpack.c.l.b16 %v1187
    %v1721 = vunpack.c.h.b16 %v1187
    %v1722 = vunpack.c.l.b16 %v1188
    %v1723 = vunpack.c.h.b16 %v1188
    %v1724 = vunpack.c.l.b16 %v1189
    %v1725 = vunpack.c.h.b16 %v1189
    %v1726 = vunpack.c.l.b16 %v1190
    %v1727 = vunpack.c.h.b16 %v1190
    %v1728 = vunpack.c.l.b16 %v1191
    %v1729 = vunpack.c.h.b16 %v1191
    %v1730 = vunpack.c.l.b16 %v1192
    %v1731 = vunpack.c.h.b16 %v1192
    %v1732 = vunpack.c.l.b16 %v1193
    %v1733 = vunpack.c.h.b16 %v1193
    %v1734 = vunpack.c.l.b16 %v1194
    %v1735 = vunpack.c.h.b16 %v1194
    %v1736 = vunpack.c.l.b16 %v1195
    %v1737 = vunpack.c.h.b16 %v1195
    %v1738 = vunpack.c.l.b16 %v1196
    %v1739 = vunpack.c.h.b16 %v1196
    %v1740 = vunpack.c.l.b16 %v1197
    %v1741 = vunpack.c.h.b16 %v1197
    %v1742 = vunpack.c.l.b16 %v1198
    %v1743 = vunpack.c.h.b16 %v1198
    %v1744 = vunpack.c.l.b16 %v1199
    %v1745 = vunpack.c.h.b16 %v1199
    %v1746 = vunpack.c.l.b16 %v1200
    %v1747 = vunpack.c.h.b16 %v1200
    %v1748 = vunpack.c.l.b16 %v1201
    %v1749 = vunpack.c.h.b16 %v1201
    %v1750 = vunpack.c.l.b16 %v1202
    %v1751 = vunpack.c.h.b16 %v1202
    %v1752 = vunpack.c.l.b16 %v1203
    %v1753 = vunpack.c.h.b16 %v1203
    %v1754 = vunpack.c.l.b16 %v1204
    %v1755 = vunpack.c.h.b16 %v1204
    %v1756 = vunpack.c.l.b16 %v1205
    %v1757 = vunpack.c.h.b16 %v1205
    %v1758 = vunpack.c.l.b16 %v1206
    %v1759 = vunpack.c.h.b16 %v1206
    %v1760 = vunpack.c.l.b16 %v1207
    %v1761 = vunpack.c.h.b16 %v1207
    %v1762 = vunpack.c.l.b16 %v1208
    %v1763 = vunpack.c.h.b16 %v1208
    %v1764 = vunpack.c.l.b16 %v1209
    %v1765 = vunpack.c.h.b16 %v1209
    %v1766 = vunpack.c.l.b16 %v1210
    %v1767 = vunpack.c.h.b16 %v1210
    %v1768 = vunpack.c.l.b16 %v1211
    %v1769 = vunpack.c.h.b16 %v1211
    %v1770 = vunpack.c.l.b16 %v1212
    %v1771 = vunpack.c.h.b16 %v1212
    %v1772 = vunpack.c.l.b16 %v1213
    %v1773 = vunpack.c.h.b16 %v1213
    %v1774 = vunpack.c.l.b16 %v1214
    %v1775 = vunpack.c.h.b16 %v1214
    %v1776 = vunpack.c.l.b16 %v1215
    %v1777 = vunpack.c.h.b16 %v1215
    %v1778 = vunpack.c.l.b16 %v1216
    %v1779 = vunpack.c.h.b16 %v1216
    %v1780 = vunpack.c.l.b16 %v1217
    %v1781 = vunpack.c.h.b16 %v1217
    %v1782 = vunpack.c.l.b16 %v1218
    %v1783 = vunpack.c.h.b16 %v1218
    %v1784 = vunpack.c.l.b16 %v1219
    %v1785 = vunpack.c.h.b16 %v1219
    %v1786 = vunpack.c.l.b16 %v1220
    %v1787 = vunpack.c.h.b16 %v1220
    %v1788 = vunpack.c.l.b16 %v1221
    %v1789 = vunpack.c.h.b16 %v1221
    %v1790 = vunpack.c.l.b16 %v1222
    %v1791 = vunpack.c.h.b16 %v1222
    %v1792 = vunpack.c.l.b16 %v1223
    %v1793 = vunpack.c.h.b16 %v1223
    %v1794 = vunpack.c.l.b16 %v1224
    %v1795 = vunpack.c.h.b16 %v1224
    %v1796 = vunpack.c.l.b16 %v1225
    %v1797 = vunpack.c.h.b16 %v1225
    %v1798 = vunpack.c.l.b16 %v1226
    %v1799 = vunpack.c.h.b16 %v1226
    %v1800 = vunpack.c.l.b16 %v1227
    %v1801 = vunpack.c.h.b16 %v1227
    %v1802 = vunpack.c.l.b16 %v1228
    %v1803 = vunpack.c.h.b16 %v1228
    %v1804 = vunpack.c.l.b16 %v1229
    %v1805 = vunpack.c.h.b16 %v1229
    %v1806 = vunpack.c.l.b16 %v1230
    %v1807 = vunpack.c.h.b16 %v1230
    %v1808 = vunpack.c.l.b16 %v1231
    %v1809 = vunpack.c.h.b16 %v1231
    %v1810 = vunpack.c.l.b16 %v1232
    %v1811 = vunpack.c.h.b16 %v1232
    %v1812 = vunpack.c.l.b16 %v1233
    %v1813 = vunpack.c.h.b16 %v1233
    %v1814 = vunpack.c.l.b16 %v1234
    %v1815 = vunpack.c.h.b16 %v1234
    %v1816 = vunpack.c.l.b16 %v1235
    %v1817 = vunpack.c.h.b16 %v1235
    %v1818 = vunpack.c.l.b16 %v1236
    %v1819 = vunpack.c.h.b16 %v1236
    %v1820 = vunpack.c.l.b16 %v1237
    %v1821 = vunpack.c.h.b16 %v1237
    %v1822 = vunpack.c.l.b16 %v1238
    %v1823 = vunpack.c.h.b16 %v1238
    %v1824 = vunpack.c.l.b16 %v1239
    %v1825 = vunpack.c.h.b16 %v1239
    %v1826 = vunpack.c.l.b16 %v1240
    %v1827 = vunpack.c.h.b16 %v1240
    %v1828 = vunpack.c.l.b16 %v1241
    %v1829 = vunpack.c.h.b16 %v1241
    %v1830 = vunpack.c.l.b16 %v1242
    %v1831 = vunpack.c.h.b16 %v1242
    %v1832 = vunpack.c.l.b16 %v1243
    %v1833 = vunpack.c.h.b16 %v1243
    %v1834 = vunpack.c.l.b16 %v1244
    %v1835 = vunpack.c.h.b16 %v1244
    %v1836 = vunpack.c.l.b16 %v1245
    %v1837 = vunpack.c.h.b16 %v1245
    %v1838 = vunpack.c.l.b16 %v1246
    %v1839 = vunpack.c.h.b16 %v1246
    %v1840 = vunpack.c.l.b16 %v1247
    %v1841 = vunpack.c.h.b16 %v1247
    %v1842 = vunpack.c.l.b16 %v1248
    %v1843 = vunpack.c.h.b16 %v1248
    %v1844 = vunpack.c.l.b16 %v1249
    %v1845 = vunpack.c.h.b16 %v1249
    %v1846 = vunpack.c.l.b16 %v1250
    %v1847 = vunpack.c.h.b16 %v1250
    %v1848 = vunpack.c.l.b16 %v1251
    %v1849 = vunpack.c.h.b16 %v1251
    %v1850 = vunpack.c.l.b16 %v1252
    %v1851 = vunpack.c.h.b16 %v1252
    %v1852 = vunpack.c.l.b16 %v1253
    %v1853 = vunpack.c.h.b16 %v1253
    %v1854 = vunpack.c.l.b16 %v1254
    %v1855 = vunpack.c.h.b16 %v1254
    %v1856 = vunpack.c.l.b16 %v1255
    %v1857 = vunpack.c.h.b16 %v1255
    %v1858 = vunpack.c.l.b16 %v1256
    %v1859 = vunpack.c.h.b16 %v1256
    %v1860 = vunpack.c.l.b16 %v1257
    %v1861 = vunpack.c.h.b16 %v1257
    %v1862 = vunpack.c.l.b16 %v1258
    %v1863 = vunpack.c.h.b16 %v1258
    %v1864 = vunpack.c.l.b16 %v1259
    %v1865 = vunpack.c.h.b16 %v1259
    %v1866 = vunpack.c.l.b16 %v1260
    %v1867 = vunpack.c.h.b16 %v1260
    %v1868 = vunpack.c.l.b16 %v1261
    %v1869 = vunpack.c.h.b16 %v1261
    %v1870 = vunpack.c.l.b16 %v1262
    %v1871 = vunpack.c.h.b16 %v1262
    %v1872 = vunpack.c.l.b16 %v1263
    %v1873 = vunpack.c.h.b16 %v1263
    %v1874 = vunpack.c.l.b16 %v1264
    %v1875 = vunpack.c.h.b16 %v1264
    %v1876 = vunpack.c.l.b16 %v1265
    %v1877 = vunpack.c.h.b16 %v1265
    %v1878 = vunpack.c.l.b16 %v1266
    %v1879 = vunpack.c.h.b16 %v1266
    %v1880 = vunpack.c.l.b16 %v1267
    %v1881 = vunpack.c.h.b16 %v1267
    %v1882 = vunpack.c.l.b16 %v1268
    %v1883 = vunpack.c.h.b16 %v1268
    %v1884 = vunpack.c.l.b16 %v1269
    %v1885 = vunpack.c.h.b16 %v1269
    %v1886 = vunpack.c.l.b16 %v1270
    %v1887 = vunpack.c.h.b16 %v1270
    %v1888 = vunpack.c.l.b16 %v1271
    %v1889 = vunpack.c.h.b16 %v1271
    %v1890 = vunpack.c.l.b16 %v1272
    %v1891 = vunpack.c.h.b16 %v1272
    %v1892 = vunpack.c.l.b16 %v1273
    %v1893 = vunpack.c.h.b16 %v1273
    %v1894 = vunpack.c.l.b16 %v1274
    %v1895 = vunpack.c.h.b16 %v1274
    %v1896 = vunpack.c.l.b16 %v1275
    %v1897 = vunpack.c.h.b16 %v1275
    %v1898 = vunpack.c.l.b16 %v1276
    %v1899 = vunpack.c.h.b16 %v1276
    %v1900 = vunpack.c.l.b16 %v1277
    %v1901 = vunpack.c.h.b16 %v1277
    %v1902 = vunpack.c.l.b16 %v1278
    %v1903 = vunpack.c.h.b16 %v1278
    %v1904 = vunpack.c.l.b16 %v1279
    %v1905 = vunpack.c.h.b16 %v1279
    %v1906 = vunpack.c.l.b16 %v1280
    %v1907 = vunpack.c.h.b16 %v1280
    %v1908 = vunpack.c.l.b16 %v1281
    %v1909 = vunpack.c.h.b16 %v1281
    %v1910 = vunpack.c.l.b16 %v1282
    %v1911 = vunpack.c.h.b16 %v1282
    %v1912 = vunpack.c.l.b16 %v1283
    %v1913 = vunpack.c.h.b16 %v1283
    %v1914 = vunpack.c.l.b16 %v1284
    %v1915 = vunpack.c.h.b16 %v1284
    %v1916 = vunpack.c.l.b16 %v1285
    %v1917 = vunpack.c.h.b16 %v1285
    %v1918 = vunpack.c.l.b16 %v1286
    %v1919 = vunpack.c.h.b16 %v1286
    %v1920 = vunpack.c.l.b16 %v1287
    %v1921 = vunpack.c.h.b16 %v1287
    %v1922 = vunpack.c.l.b16 %v1288
    %v1923 = vunpack.c.h.b16 %v1288
    %v1924 = vunpack.c.l.b16 %v1289
    %v1925 = vunpack.c.h.b16 %v1289
    %v1926 = vunpack.c.l.b16 %v1290
    %v1927 = vunpack.c.h.b16 %v1290
    %v1928 = vunpack.c.l.b16 %v1291
    %v1929 = vunpack.c.h.b16 %v1291
    %v1930 = vunpack.c.l.b16 %v1292
    %v1931 = vunpack.c.h.b16 %v1292
    %v1932 = vunpack.c.l.b16 %v1293
    %v1933 = vunpack.c.h.b16 %v1293
    %v1934 = vunpack.c.l.b16 %v1294
    %v1935 = vunpack.c.h.b16 %v1294
    %v1936 = vunpack.c.l.b16 %v1295
    %v1937 = vunpack.c.h.b16 %v1295
    %v1938 = vunpack.c.l.b16 %v1296
    %v1939 = vunpack.c.h.b16 %v1296
    %v1940 = vunpack.c.l.b16 %v1297
    %v1941 = vunpack.c.h.b16 %v1297
    %v1942 = vunpack.c.l.b16 %v1298
    %v1943 = vunpack.c.h.b16 %v1298
    %v1944 = vunpack.c.l.b16 %v1299
    %v1945 = vunpack.c.h.b16 %v1299
    %v1946 = vunpack.c.l.b16 %v1300
    %v1947 = vunpack.c.h.b16 %v1300
    %v1948 = vunpack.c.l.b16 %v1301
    %v1949 = vunpack.c.h.b16 %v1301
    %v1950 = vunpack.c.l.b16 %v1302
    %v1951 = vunpack.c.h.b16 %v1302
    %v1952 = vunpack.c.l.b16 %v1303
    %v1953 = vunpack.c.h.b16 %v1303
    %v1954 = vunpack.c.l.b16 %v1304
    %v1955 = vunpack.c.h.b16 %v1304
    %v1956 = vunpack.c.l.b16 %v1305
    %v1957 = vunpack.c.h.b16 %v1305
    %v1958 = vunpack.c.l.b16 %v1306
    %v1959 = vunpack.c.h.b16 %v1306
    %v1960 = vunpack.c.l.b16 %v1307
    %v1961 = vunpack.c.h.b16 %v1307
    %v1962 = vunpack.c.l.b16 %v1308
    %v1963 = vunpack.c.h.b16 %v1308
    %v1964 = vunpack.c.l.b16 %v1309
    %v1965 = vunpack.c.h.b16 %v1309
    %v1966 = vunpack.c.l.b16 %v1310
    %v1967 = vunpack.c.h.b16 %v1310
    %v1968 = vunpack.c.l.b16 %v1311
    %v1969 = vunpack.c.h.b16 %v1311
    %v1970 = vunpack.c.l.b16 %v1312
    %v1971 = vunpack.c.h.b16 %v1312
    %v1972 = vunpack.c.l.b16 %v1313
    %v1973 = vunpack.c.h.b16 %v1313
    %v1974 = vunpack.c.l.b16 %v1314
    %v1975 = vunpack.c.h.b16 %v1314
    %v1976 = vunpack.c.l.b16 %v1315
    %v1977 = vunpack.c.h.b16 %v1315
    %v1978 = vunpack.c.l.b16 %v1316
    %v1979 = vunpack.c.h.b16 %v1316
    %v1980 = vunpack.c.l.b16 %v1317
    %v1981 = vunpack.c.h.b16 %v1317
    %v1982 = vunpack.c.l.b16 %v1318
    %v1983 = vunpack.c.h.b16 %v1318
    %v1984 = vunpack.c.l.b16 %v1319
    %v1985 = vunpack.c.h.b16 %v1319
    %v1986 = vunpack.c.l.b16 %v1320
    %v1987 = vunpack.c.h.b16 %v1320
    %v1988 = vunpack.c.l.b16 %v1321
    %v1989 = vunpack.c.h.b16 %v1321
    %v1990 = vunpack.c.l.b16 %v1322
    %v1991 = vunpack.c.h.b16 %v1322
    %v1992 = vunpack.c.l.b16 %v1323
    %v1993 = vunpack.c.h.b16 %v1323
    %v1994 = vunpack.c.l.b16 %v1324
    %v1995 = vunpack.c.h.b16 %v1324
    %v1996 = vunpack.c.l.b16 %v1325
    %v1997 = vunpack.c.h.b16 %v1325
    %v1998 = vunpack.c.l.b16 %v1326
    %v1999 = vunpack.c.h.b16 %v1326
    %v2000 = vunpack.c.l.b16 %v1327
    %v2001 = vunpack.c.h.b16 %v1327
    %v2002 = vunpack.c.l.b16 %v1328
    %v2003 = vunpack.c.h.b16 %v1328
    %v2004 = vunpack.c.l.b16 %v1329
    %v2005 = vunpack.c.h.b16 %v1329
    %v2006 = vunpack.c.l.b16 %v1330
    %v2007 = vunpack.c.h.b16 %v1330
    %v2008 = vunpack.c.l.b16 %v1331
    %v2009 = vunpack.c.h.b16 %v1331
    %v2010 = vunpack.c.l.b16 %v1332
    %v2011 = vunpack.c.h.b16 %v1332
    %v2012 = vunpack.c.l.b16 %v1333
    %v2013 = vunpack.c.h.b16 %v1333
    %v2014 = vunpack.c.l.b16 %v1334
    %v2015 = vunpack.c.h.b16 %v1334
    %v2016 = vunpack.c.l.b16 %v1335
    %v2017 = vunpack.c.h.b16 %v1335
    %v2018 = vunpack.c.l.b16 %v1336
    %v2019 = vunpack.c.h.b16 %v1336
    %v2020 = vunpack.c.l.b16 %v1337
    %v2021 = vunpack.c.h.b16 %v1337
    %v2022 = vunpack.c.l.b16 %v1338
    %v2023 = vunpack.c.h.b16 %v1338
    %v2024 = vunpack.c.l.b16 %v1339
    %v2025 = vunpack.c.h.b16 %v1339
    %v2026 = vunpack.c.l.b16 %v1340
    %v2027 = vunpack.c.h.b16 %v1340
    %v2028 = vunpack.c.l.b16 %v1341
    %v2029 = vunpack.c.h.b16 %v1341
    %v2030 = vunpack.c.l.b16 %v1342
    %v2031 = vunpack.c.h.b16 %v1342
    %v2032 = vunpack.c.l.b16 %v1343
    %v2033 = vunpack.c.h.b16 %v1343
    %v2034 = vunpack.c.l.b16 %v1344
    %v2035 = vunpack.c.h.b16 %v1344
    %v2036 = vunpack.c.l.b16 %v1345
    %v2037 = vunpack.c.h.b16 %v1345
    %v2038 = vunpack.c.l.b16 %v1346
    %v2039 = vunpack.c.h.b16 %v1346
    %v2040 = vunpack.c.l.b16 %v1347
    %v2041 = vunpack.c.h.b16 %v1347
    %v2042 = vunpack.c.l.b16 %v1348
    %v2043 = vunpack.c.h.b16 %v1348
    %v2044 = vunpack.c.l.b16 %v1349
    %v2045 = vunpack.c.h.b16 %v1349
    %v2046 = vunpack.c.l.b16 %v1350
    %v2047 = vunpack.c.h.b16 %v1350
    %v2048 = vunpack.c.l.b16 %v1351
    %v2049 = vunpack.c.h.b16 %v1351
    %v2050 = vunpack.c.l.b16 %v1352
    %v2051 = vunpack.c.h.b16 %v1352
    %v2052 = vunpack.c.l.b16 %v1353
    %v2053 = vunpack.c.h.b16 %v1353
    %v2054 = vunpack.c.l.b16 %v1354
    %v2055 = vunpack.c.h.b16 %v1354
    %v2056 = vunpack.c.l.b16 %v1355
    %v2057 = vunpack.c.h.b16 %v1355
    %v2058 = vunpack.c.l.b16 %v1356
    %v2059 = vunpack.c.h.b16 %v1356
    %v2060 = vunpack.c.l.b16 %v1357
    %v2061 = vunpack.c.h.b16 %v1357
    %v2062 = vunpack.c.l.b16 %v1358
    %v2063 = vunpack.c.h.b16 %v1358
    %v2064 = vunpack.c.l.b16 %v1359
    %v2065 = vunpack.c.h.b16 %v1359
    %v2066 = vunpack.c.l.b16 %v1360
    %v2067 = vunpack.c.h.b16 %v1360
    %v2068 = vunpack.c.l.b16 %v1361
    %v2069 = vunpack.c.h.b16 %v1361
    %v2070 = vunpack.c.l.b16 %v1362
    %v2071 = vunpack.c.h.b16 %v1362
    %v2072 = vunpack.c.l.b16 %v1363
    %v2073 = vunpack.c.h.b16 %v1363
    %v2074 = vunpack.c.l.b16 %v1364
    %v2075 = vunpack.c.h.b16 %v1364
    %v2076 = vunpack.c.l.b16 %v1365
    %v2077 = vunpack.c.h.b16 %v1365
    %v2078 = vunpack.c.l.b16 %v1366
    %v2079 = vunpack.c.h.b16 %v1366
    %v2080 = vunpack.c.l.b16 %v1367
    %v2081 = vunpack.c.h.b16 %v1367
    %v2082 = vunpack.c.l.b16 %v1368
    %v2083 = vunpack.c.h.b16 %v1368
    %v2084 = vunpack.c.l.b16 %v1369
    %v2085 = vunpack.c.h.b16 %v1369
    %v2086 = vunpack.c.l.b16 %v1370
    %v2087 = vunpack.c.h.b16 %v1370
    %v2088 = vunpack.c.l.b16 %v1371
    %v2089 = vunpack.c.h.b16 %v1371
    %v2090 = vunpack.c.l.b16 %v1372
    %v2091 = vunpack.c.h.b16 %v1372
    %v2092 = vunpack.c.l.b16 %v1373
    %v2093 = vunpack.c.h.b16 %v1373
    %v2094 = vunpack.c.l.b16 %v1374
    %v2095 = vunpack.c.h.b16 %v1374
    %v2096 = vunpack.c.l.b16 %v1375
    %v2097 = vunpack.c.h.b16 %v1375
    %v2098 = vunpack.c.l.b16 %v1376
    %v2099 = vunpack.c.h.b16 %v1376
    %v2100 = vunpack.c.l.b16 %v1377
    %v2101 = vunpack.c.h.b16 %v1377
    %v2102 = vunpack.c.l.b16 %v1378
    %v2103 = vunpack.c.h.b16 %v1378
    %v2104 = vunpack.c.l.b16 %v1379
    %v2105 = vunpack.c.h.b16 %v1379
    %v2106 = vunpack.c.l.b16 %v1380
    %v2107 = vunpack.c.h.b16 %v1380
    %v2108 = vunpack.c.l.b16 %v1381
    %v2109 = vunpack.c.h.b16 %v1381
    %v2110 = vunpack.c.l.b16 %v1382
    %v2111 = vunpack.c.h.b16 %v1382
    %v2112 = vunpack.c.l.b16 %v1383
    %v2113 = vunpack.c.h.b16 %v1383
    %v2114 = vunpack.c.l.b16 %v1384
    %v2115 = vunpack.c.h.b16 %v1384
    %v2116 = vunpack.c.l.b16 %v1385
    %v2117 = vunpack.c.h.b16 %v1385
    %v2118 = vunpack.c.l.b16 %v1386
    %v2119 = vunpack.c.h.b16 %v1386
    %v2120 = vunpack.c.l.b16 %v1387
    %v2121 = vunpack.c.h.b16 %v1387
    %v2122 = vunpack.c.l.b16 %v1388
    %v2123 = vunpack.c.h.b16 %v1388
    %v2124 = vunpack.c.l.b16 %v1389
    %v2125 = vunpack.c.h.b16 %v1389
    %v2126 = vunpack.c.l.b16 %v1390
    %v2127 = vunpack.c.h.b16 %v1390
    %v2128 = vunpack.c.l.b16 %v1391
    %v2129 = vunpack.c.h.b16 %v1391
    %v2130 = vunpack.c.l.b16 %v1392
    %v2131 = vunpack.c.h.b16 %v1392
    %v2132 = vunpack.c.l.b16 %v1393
    %v2133 = vunpack.c.h.b16 %v1393
    %v2134 = vunpack.c.l.b16 %v1394
    %v2135 = vunpack.c.h.b16 %v1394
    %v2136 = vunpack.c.l.b16 %v1395
    %v2137 = vunpack.c.h.b16 %v1395
    %v2138 = vunpack.c.l.b16 %v1396
    %v2139 = vunpack.c.h.b16 %v1396
    %v2140 = vunpack.c.l.b16 %v1397
    %v2141 = vunpack.c.h.b16 %v1397
    %v2142 = vunpack.c.l.b16 %v1398
    %v2143 = vunpack.c.h.b16 %v1398
    %v2144 = vunpack.c.l.b16 %v1399
    %v2145 = vunpack.c.h.b16 %v1399
    %v2146 = vunpack.c.l.b16 %v1400
    %v2147 = vunpack.c.h.b16 %v1400
    %v2148 = vunpack.c.l.b16 %v1401
    %v2149 = vunpack.c.h.b16 %v1401
    %v2150 = vunpack.c.l.b16 %v1402
    %v2151 = vunpack.c.h.b16 %v1402
    %v2152 = vunpack.c.l.b16 %v1403
    %v2153 = vunpack.c.h.b16 %v1403
    %v2154 = vunpack.c.l.b16 %v1404
    %v2155 = vunpack.c.h.b16 %v1404
    %v2156 = vunpack.c.l.b16 %v1405
    %v2157 = vunpack.c.h.b16 %v1405
    %v2158 = vunpack.c.l.b16 %v1406
    %v2159 = vunpack.c.h.b16 %v1406
    %v2160 = vunpack.c.l.b16 %v1407
    %v2161 = vunpack.c.h.b16 %v1407
    %v2162 = vunpack.c.l.b16 %v1408
    %v2163 = vunpack.c.h.b16 %v1408
    %v2164 = vunpack.c.l.b16 %v1409
    %v2165 = vunpack.c.h.b16 %v1409
    %v2166 = vunpack.c.l.b16 %v1410
    %v2167 = vunpack.c.h.b16 %v1410
    %v2168 = vunpack.c.l.b16 %v1411
    %v2169 = vunpack.c.h.b16 %v1411
    %v2170 = vunpack.c.l.b16 %v1412
    %v2171 = vunpack.c.h.b16 %v1412
    %v2172 = vunpack.c.l.b16 %v1413
    %v2173 = vunpack.c.h.b16 %v1413
    %v2174 = vunpack.c.l.b16 %v1414
    %v2175 = vunpack.c.h.b16 %v1414
    %v2176 = vunpack.c.l.b16 %v1415
    %v2177 = vunpack.c.h.b16 %v1415
    %v2178 = vunpack.c.l.b16 %v1416
    %v2179 = vunpack.c.h.b16 %v1416
    %v2180 = vunpack.c.l.b16 %v1417
    %v2181 = vunpack.c.h.b16 %v1417
    %v2182 = vunpack.c.l.b16 %v1418
    %v2183 = vunpack.c.h.b16 %v1418
    %v2184 = vunpack.c.l.b16 %v1419
    %v2185 = vunpack.c.h.b16 %v1419
    %v2186 = vunpack.c.l.b16 %v1420
    %v2187 = vunpack.c.h.b16 %v1420
    %v2188 = vunpack.c.l.b16 %v1421
    %v2189 = vunpack.c.h.b16 %v1421
    %v2190 = vunpack.c.l.b16 %v1422
    %v2191 = vunpack.c.h.b16 %v1422
    %v2192 = vunpack.c.l.b16 %v1423
    %v2193 = vunpack.c.h.b16 %v1423
    %v2194 = vunpack.c.l.b16 %v1424
    %v2195 = vunpack.c.h.b16 %v1424
    %v2196 = vunpack.c.l.b16 %v1425
    %v2197 = vunpack.c.h.b16 %v1425
    %v2198 = vunpack.c.l.b16 %v1426
    %v2199 = vunpack.c.h.b16 %v1426
    %v2200 = vunpack.c.l.b16 %v1427
    %v2201 = vunpack.c.h.b16 %v1427
    %v2202 = vunpack.c.l.b16 %v1428
    %v2203 = vunpack.c.h.b16 %v1428
    %v2204 = vunpack.c.l.b16 %v1429
    %v2205 = vunpack.c.h.b16 %v1429
    %v2206 = vunpack.c.l.b16 %v1430
    %v2207 = vunpack.c.h.b16 %v1430
    %v2208 = vunpack.c.l.b16 %v1431
    %v2209 = vunpack.c.h.b16 %v1431
    %v2210 = vpack.c.b16 %v1702, %v1698
    %v2211 = vpack.c.b16 %v1703, %v1699
    %v2212 = vpack.c.b16 %v1704, %v1700
    %v2213 = vpack.c.b16 %v1705, %v1701
    %v2214 = vpack.c.b16 %v1710, %v1706
    %v2215 = vpack.c.b16 %v1711, %v1707
    %v2216 = vpack.c.b16 %v1712, %v1708
    %v2217 = vpack.c.b16 %v1713, %v1709
    %v2218 = vpack.c.b16 %v1718, %v1714
    %v2219 = vpack.c.b16 %v1719, %v1715
    %v2220 = vpack.c.b16 %v1720, %v1716
    %v2221 = vpack.c.b16 %v1721, %v1717
    %v2222 = vpack.c.b16 %v1726, %v1722
    %v2223 = vpack.c.b16 %v1727, %v1723
    %v2224 = vpack.c.b16 %v1728, %v1724
    %v2225 = vpack.c.b16 %v1729, %v1725
    %v2226 = vpack.c.b16 %v1734, %v1730
    %v2227 = vpack.c.b16 %v1735, %v1731
    %v2228 = vpack.c.b16 %v1736, %v1732
    %v2229 = vpack.c.b16 %v1737, %v1733
    %v2230 = vpack.c.b16 %v1742, %v1738
    %v2231 = vpack.c.b16 %v1743, %v1739
    %v2232 = vpack.c.b16 %v1744, %v1740
    %v2233 = vpack.c.b16 %v1745, %v1741
    %v2234 = vpack.c.b16 %v1750, %v1746
    %v2235 = vpack.c.b16 %v1751, %v1747
    %v2236 = vpack.c.b16 %v1752, %v1748
    %v2237 = vpack.c.b16 %v1753, %v1749
    %v2238 = vpack.c.b16 %v1758, %v1754
    %v2239 = vpack.c.b16 %v1759, %v1755
    %v2240 = vpack.c.b16 %v1760, %v1756
    %v2241 = vpack.c.b16 %v1761, %v1757
    %v2242 = vpack.c.b16 %v1766, %v1762
    %v2243 = vpack.c.b16 %v1767, %v1763
    %v2244 = vpack.c.b16 %v1768, %v1764
    %v2245 = vpack.c.b16 %v1769, %v1765
    %v2246 = vpack.c.b16 %v1774, %v1770
    %v2247 = vpack.c.b16 %v1775, %v1771
    %v2248 = vpack.c.b16 %v1776, %v1772
    %v2249 = vpack.c.b16 %v1777, %v1773
    %v2250 = vpack.c.b16 %v1782, %v1778
    %v2251 = vpack.c.b16 %v1783, %v1779
    %v2252 = vpack.c.b16 %v1784, %v1780
    %v2253 = vpack.c.b16 %v1785, %v1781
    %v2254 = vpack.c.b16 %v1790, %v1786
    %v2255 = vpack.c.b16 %v1791, %v1787
    %v2256 = vpack.c.b16 %v1792, %v1788
    %v2257 = vpack.c.b16 %v1793, %v1789
    %v2258 = vpack.c.b16 %v1798, %v1794
    %v2259 = vpack.c.b16 %v1799, %v1795
    %v2260 = vpack.c.b16 %v1800, %v1796
    %v2261 = vpack.c.b16 %v1801, %v1797
    %v2262 = vpack.c.b16 %v1806, %v1802
    %v2263 = vpack.c.b16 %v1807, %v1803
    %v2264 = vpack.c.b16 %v1808, %v1804
    %v2265 = vpack.c.b16 %v1809, %v1805
    %v2266 = vpack.c.b16 %v1814, %v1810
    %v2267 = vpack.c.b16 %v1815, %v1811
    %v2268 = vpack.c.b16 %v1816, %v1812
    %v2269 = vpack.c.b16 %v1817, %v1813
    %v2270 = vpack.c.b16 %v1822, %v1818
    %v2271 = vpack.c.b16 %v1823, %v1819
    %v2272 = vpack.c.b16 %v1824, %v1820
    %v2273 = vpack.c.b16 %v1825, %v1821
    %v2274 = vpack.c.b16 %v1830, %v1826
    %v2275 = vpack.c.b16 %v1831, %v1827
    %v2276 = vpack.c.b16 %v1832, %v1828
    %v2277 = vpack.c.b16 %v1833, %v1829
    %v2278 = vpack.c.b16 %v1838, %v1834
    %v2279 = vpack.c.b16 %v1839, %v1835
    %v2280 = vpack.c.b16 %v1840, %v1836
    %v2281 = vpack.c.b16 %v1841, %v1837
    %v2282 = vpack.c.b16 %v1846, %v1842
    %v2283 = vpack.c.b16 %v1847, %v1843
    %v2284 = vpack.c.b16 %v1848, %v1844
    %v2285 = vpack.c.b16 %v1849, %v1845
    %v2286 = vpack.c.b16 %v1854, %v1850
    %v2287 = vpack.c.b16 %v1855, %v1851
    %v2288 = vpack.c.b16 %v1856, %v1852
    %v2289 = vpack.c.b16 %v1857, %v1853
    %v2290 = vpack.c.b16 %v1862, %v1858
    %v2291 = vpack.c.b16 %v1863, %v1859
    %v2292 = vpack.c.b16 %v1864, %v1860
    %v2293 = vpack.c.b16 %v1865, %v1861
    %v2294 = vpack.c.b16 %v1870, %v1866
    %v2295 = vpack.c.b16 %v1871, %v1867
    %v2296 = vpack.c.b16 %v1872, %v1868
    %v2297 = vpack.c.b16 %v1873, %v1869
    %v2298 = vpack.c.b16 %v1878, %v1874
    %v2299 = vpack.c.b16 %v1879, %v1875
    %v2300 = vpack.c.b16 %v1880, %v1876
    %v2301 = vpack.c.b16 %v1881, %v1877
    %v2302 = vpack.c.b16 %v1886, %v1882
    %v2303 = vpack.c.b16 %v1887, %v1883
    %v2304 = vpack.c.b16 %v1888, %v1884
    %v2305 = vpack.c.b16 %v1889, %v1885
    %v2306 = vpack.c.b16 %v1894, %v1890
    %v2307 = vpack.c.b16 %v1895, %v1891
    %v2308 = vpack.c.b16 %v1896, %v1892
    %v2309 = vpack.c.b16 %v1897, %v1893
    %v2310 = vpack.c.b16 %v1902, %v1898
    %v2311 = vpack.c.b16 %v1903, %v1899
    %v2312 = vpack.c.b16 %v1904, %v1900
    %v2313 = vpack.c.b16 %v1905, %v1901
    %v2314 = vpack.c.b16 %v1910, %v1906
    %v2315 = vpack.c.b16 %v1911, %v1907
    %v2316 = vpack.c.b16 %v1912, %v1908
    %v2317 = vpack.c.b16 %v1913, %v1909
    %v2318 = vpack.c.b16 %v1918, %v1914
    %v2319 = vpack.c.b16 %v1919, %v1915
    %v2320 = vpack.c.b16 %v1920, %v1916
    %v2321 = vpack.c.b16 %v1921, %v1917
    %v2322 = vpack.c.b16 %v1926, %v1922
    %v2323 = vpack.c.b16 %v1927, %v1923
    %v2324 = vpack.c.b16 %v1928, %v1924
    %v2325 = vpack.c.b16 %v1929, %v1925
    %v2326 = vpack.c.b16 %v1934, %v1930
    %v2327 = vpack.c.b16 %v1935, %v1931
    %v2328 = vpack.c.b16 %v1936, %v1932
    %v2329 = vpack.c.b16 %v1937, %v1933
    %v2330 = vpack.c.b16 %v1942, %v1938
    %v2331 = vpack.c.b16 %v1943, %v1939
    %v2332 = vpack.c.b16 %v1944, %v1940
    %v2333 = vpack.c.b16 %v1945, %v1941
    %v2334 = vpack.c.b16 %v1950, %v1946
    %v2335 = vpack.c.b16 %v1951, %v1947
    %v2336 = vpack.c.b16 %v1952, %v1948
    %v2337 = vpack.c.b16 %v1953, %v1949
    %v2338 = vpack.c.b16 %v1958, %v1954
    %v2339 = vpack.c.b16 %v1959, %v1955
    %v2340 = vpack.c.b16 %v1960, %v1956
    %v2341 = vpack.c.b16 %v1961, %v1957
    %v2342 = vpack.c.b16 %v1966, %v1962
    %v2343 = vpack.c.b16 %v1967, %v1963
    %v2344 = vpack.c.b16 %v1968, %v1964
    %v2345 = vpack.c.b16 %v1969, %v1965
    %v2346 = vpack.c.b16 %v1974, %v1970
    %v2347 = vpack.c.b16 %v1975, %v1971
    %v2348 = vpack.c.b16 %v1976, %v1972
    %v2349 = vpack.c.b16 %v1977, %v1973
    %v2350 = vpack.c.b16 %v1982, %v1978
    %v2351 = vpack.c.b16 %v1983, %v1979
    %v2352 = vpack.c.b16 %v1984, %v1980
    %v2353 = vpack.c.b16 %v1985, %v1981
    %v2354 = vpack.c.b16 %v1990, %v1986
    %v2355 = vpack.c.b16 %v1991, %v1987
    %v2356 = vpack.c.b16 %v1992, %v1988
    %v2357 = vpack.c.b16 %v1993, %v1989
    %v2358 = vpack.c.b16 %v1998, %v1994
    %v2359 = vpack.c.b16 %v1999, %v1995
    %v2360 = vpack.c.b16 %v2000, %v1996
    %v2361 = vpack.c.b16 %v2001, %v1997
    %v2362 = vpack.c.b16 %v2006, %v2002
    %v2363 = vpack.c.b16 %v2007, %v2003
    %v2364 = vpack.c.b16 %v2008, %v2004
    %v2365 = vpack.c.b16 %v2009, %v2005
    %v2366 = vpack.c.b16 %v2014, %v2010
    %v2367 = vpack.c.b16 %v2015, %v2011
    %v2368 = vpack.c.b16 %v2016, %v2012
    %v2369 = vpack.c.b16 %v2017, %v2013
    %v2370 = vpack.c.b16 %v2022, %v2018
    %v2371 = vpack.c.b16 %v2023, %v2019
    %v2372 = vpack.c.b16 %v2024, %v2020
    %v2373 = vpack.c.b16 %v2025, %v2021
    %v2374 = vpack.c.b16 %v2030, %v2026
    %v2375 = vpack.c.b16 %v2031, %v2027
    %v2376 = vpack.c.b16 %v2032, %v2028
    %v2377 = vpack.c.b16 %v2033, %v2029
    %v2378 = vpack.c.b16 %v2038, %v2034
    %v2379 = vpack.c.b16 %v2039, %v2035
    %v2380 = vpack.c.b16 %v2040, %v2036
    %v2381 = vpack.c.b16 %v2041, %v2037
    %v2382 = vpack.c.b16 %v2046, %v2042
    %v2383 = vpack.c.b16 %v2047, %v2043
    %v2384 = vpack.c.b16 %v2048, %v2044
    %v2385 = vpack.c.b16 %v2049, %v2045
    %v2386 = vpack.c.b16 %v2054, %v2050
    %v2387 = vpack.c.b16 %v2055, %v2051
    %v2388 = vpack.c.b16 %v2056, %v2052
    %v2389 = vpack.c.b16 %v2057, %v2053
    %v2390 = vpack.c.b16 %v2062, %v2058
    %v2391 = vpack.c.b16 %v2063, %v2059
    %v2392 = vpack.c.b16 %v2064, %v2060
    %v2393 = vpack.c.b16 %v2065, %v2061
    %v2394 = vpack.c.b16 %v2070, %v2066
    %v2395 = vpack.c.b16 %v2071, %v2067
    %v2396 = vpack.c.b16 %v2072, %v2068
    %v2397 = vpack.c.b16 %v2073, %v2069
    %v2398 = vpack.c.b16 %v2078, %v2074
    %v2399 = vpack.c.b16 %v2079, %v2075
    %v2400 = vpack.c.b16 %v2080, %v2076
    %v2401 = vpack.c.b16 %v2081, %v2077
    %v2402 = vpack.c.b16 %v2086, %v2082
    %v2403 = vpack.c.b16 %v2087, %v2083
    %v2404 = vpack.c.b16 %v2088, %v2084
    %v2405 = vpack.c.b16 %v2089, %v2085
    %v2406 = vpack.c.b16 %v2094, %v2090
    %v2407 = vpack.c.b16 %v2095, %v2091
    %v2408 = vpack.c.b16 %v2096, %v2092
    %v2409 = vpack.c.b16 %v2097, %v2093
    %v2410 = vpack.c.b16 %v2102, %v2098
    %v2411 = vpack.c.b16 %v2103, %v2099
    %v2412 = vpack.c.b16 %v2104, %v2100
    %v2413 = vpack.c.b16 %v2105, %v2101
    %v2414 = vpack.c.b16 %v2110, %v2106
    %v2415 = vpack.c.b16 %v2111, %v2107
    %v2416 = vpack.c.b16 %v2112, %v2108
    %v2417 = vpack.c.b16 %v2113, %v2109
    %v2418 = vpack.c.b16 %v2118, %v2114
    %v2419 = vpack.c.b16 %v2119, %v2115
    %v2420 = vpack.c.b16 %v2120, %v2116
    %v2421 = vpack.c.b16 %v2121, %v2117
    %v2422 = vpack.c.b16 %v2126, %v2122
    %v2423 = vpack.c.b16 %v2127, %v2123
    %v2424 = vpack.c.b16 %v2128, %v2124
    %v2425 = vpack.c.b16 %v2129, %v2125
    %v2426 = vpack.c.b16 %v2134, %v2130
    %v2427 = vpack.c.b16 %v2135, %v2131
    %v2428 = vpack.c.b16 %v2136, %v2132
    %v2429 = vpack.c.b16 %v2137, %v2133
    %v2430 = vpack.c.b16 %v2142, %v2138
    %v2431 = vpack.c.b16 %v2143, %v2139
    %v2432 = vpack.c.b16 %v2144, %v2140
    %v2433 = vpack.c.b16 %v2145, %v2141
    %v2434 = vpack.c.b16 %v2150, %v2146
    %v2435 = vpack.c.b16 %v2151, %v2147
    %v2436 = vpack.c.b16 %v2152, %v2148
    %v2437 = vpack.c.b16 %v2153, %v2149
    %v2438 = vpack.c.b16 %v2158, %v2154
    %v2439 = vpack.c.b16 %v2159, %v2155
    %v2440 = vpack.c.b16 %v2160, %v2156
    %v2441 = vpack.c.b16 %v2161, %v2157
    %v2442 = vpack.c.b16 %v2166, %v2162
    %v2443 = vpack.c.b16 %v2167, %v2163
    %v2444 = vpack.c.b16 %v2168, %v2164
    %v2445 = vpack.c.b16 %v2169, %v2165
    %v2446 = vpack.c.b16 %v2174, %v2170
    %v2447 = vpack.c.b16 %v2175, %v2171
    %v2448 = vpack.c.b16 %v2176, %v2172
    %v2449 = vpack.c.b16 %v2177, %v2173
    %v2450 = vpack.c.b16 %v2182, %v2178
    %v2451 = vpack.c.b16 %v2183, %v2179
    %v2452 = vpack.c.b16 %v2184, %v2180
    %v2453 = vpack.c.b16 %v2185, %v2181
    %v2454 = vpack.c.b16 %v2190, %v2186
    %v2455 = vpack.c.b16 %v2191, %v2187
    %v2456 = vpack.c.b16 %v2192, %v2188
    %v2457 = vpack.c.b16 %v2193, %v2189
    %v2458 = vpack.c.b16 %v2198, %v2194
    %v2459 = vpack.c.b16 %v2199, %v2195
    %v2460 = vpack.c.b16 %v2200, %v2196
    %v2461 = vpack.c.b16 %v2201, %v2197
    %v2462 = vpack.c.b16 %v2206, %v2202
    %v2463 = vpack.c.b16 %v2207, %v2203
    %v2464 = vpack.c.b16 %v2208, %v2204
    %v2465 = vpack.c.b16 %v2209, %v2205
    %2722 = vmatpush.bf16.msra.mxu0 %v2238
    %2723 = vmatpush.bf16.msra.mxu0 %v2234
    %2724 = vmatpush.bf16.msra.mxu0 %v2230
    %2725 = vmatpush.bf16.msra.mxu0 %v2226
    %2726 = vmatpush.bf16.msra.mxu0 %v2222
    %2727 = vmatpush.bf16.msra.mxu0 %v2218
    %2728 = vmatpush.bf16.msra.mxu0 %v2214
    %2729 = vmatpush.bf16.msra.mxu0 %v2210
    %2730 = vmatmul.bf16.gmra.mxu0 %v1168
    %v2731 = vpop.f32.mrf.mxu0
    %v2732 = vadd.f32 %v1434, %v2731
    %v2733 = vpop.f32.mrf.mxu0
    %2734 = vdwg.mxu0
    %2735 = vmatpush.bf16.msra.mxu0 %v2270
    %2736 = vmatpush.bf16.msra.mxu0 %v2266
    %2737 = vmatpush.bf16.msra.mxu0 %v2262
    %2738 = vmatpush.bf16.msra.mxu0 %v2258
    %2739 = vmatpush.bf16.msra.mxu0 %v2254
    %2740 = vmatpush.bf16.msra.mxu0 %v2250
    %2741 = vmatpush.bf16.msra.mxu0 %v2246
    %2742 = vmatpush.bf16.msra.mxu0 %v2242
    %2743 = vmatmul.bf16.gmra.mxu0 %v1169
    %v2744 = vpop.f32.mrf.mxu0
    %v2745 = vadd.f32 %v2732, %v2744
    %v2746 = vpop.f32.mrf.mxu0
    %2747 = vdwg.mxu0
    %2748 = vmatpush.bf16.msra.mxu0 %v2302
    %2749 = vmatpush.bf16.msra.mxu0 %v2298
    %2750 = vmatpush.bf16.msra.mxu0 %v2294
    %2751 = vmatpush.bf16.msra.mxu0 %v2290
    %2752 = vmatpush.bf16.msra.mxu0 %v2286
    %2753 = vmatpush.bf16.msra.mxu0 %v2282
    %2754 = vmatpush.bf16.msra.mxu0 %v2278
    %2755 = vmatpush.bf16.msra.mxu0 %v2274
    %2756 = vmatmul.bf16.gmra.mxu0 %v1170
    %v2757 = vpop.f32.mrf.mxu0
    %v2758 = vadd.f32 %v2745, %v2757
    %v2759 = vpop.f32.mrf.mxu0
    %2760 = vdwg.mxu0
    %2761 = vmatpush.bf16.msra.mxu0 %v2334
    %2762 = vmatpush.bf16.msra.mxu0 %v2330
    %2763 = vmatpush.bf16.msra.mxu0 %v2326
    %2764 = vmatpush.bf16.msra.mxu0 %v2322
    %2765 = vmatpush.bf16.msra.mxu0 %v2318
    %2766 = vmatpush.bf16.msra.mxu0 %v2314
    %2767 = vmatpush.bf16.msra.mxu0 %v2310
    %2768 = vmatpush.bf16.msra.mxu0 %v2306
    %2769 = vmatmul.bf16.gmra.mxu0 %v1171
    %v2770 = vpop.f32.mrf.mxu0
    %v2771 = vadd.f32 %v2758, %v2770
    %v2772 = vpop.f32.mrf.mxu0
    %2773 = vdwg.mxu0
    %2774 = vmatpush.bf16.msra.mxu0 %v2366
    %2775 = vmatpush.bf16.msra.mxu0 %v2362
    %2776 = vmatpush.bf16.msra.mxu0 %v2358
    %2777 = vmatpush.bf16.msra.mxu0 %v2354
    %2778 = vmatpush.bf16.msra.mxu0 %v2350
    %2779 = vmatpush.bf16.msra.mxu0 %v2346
    %2780 = vmatpush.bf16.msra.mxu0 %v2342
    %2781 = vmatpush.bf16.msra.mxu0 %v2338
    %2782 = vmatmul.bf16.gmra.mxu0 %v1172
    %v2783 = vpop.f32.mrf.mxu0
    %v2784 = vadd.f32 %v2771, %v2783
    %v2785 = vpop.f32.mrf.mxu0
    %2786 = vdwg.mxu0
    %2787 = vmatpush.bf16.msra.mxu0 %v2398
    %2788 = vmatpush.bf16.msra.mxu0 %v2394
    %2789 = vmatpush.bf16.msra.mxu0 %v2390
    %2790 = vmatpush.bf16.msra.mxu0 %v2386
    %2791 = vmatpush.bf16.msra.mxu0 %v2382
    %2792 = vmatpush.bf16.msra.mxu0 %v2378
    %2793 = vmatpush.bf16.msra.mxu0 %v2374
    %2794 = vmatpush.bf16.msra.mxu0 %v2370
    %2795 = vmatmul.bf16.gmra.mxu0 %v1173
    %v2796 = vpop.f32.mrf.mxu0
    %v2797 = vadd.f32 %v2784, %v2796
    %v2798 = vpop.f32.mrf.mxu0
    %2799 = vdwg.mxu0
    %2800 = vmatpush.bf16.msra.mxu0 %v2430
    %2801 = vmatpush.bf16.msra.mxu0 %v2426
    %2802 = vmatpush.bf16.msra.mxu0 %v2422
    %2803 = vmatpush.bf16.msra.mxu0 %v2418
    %2804 = vmatpush.bf16.msra.mxu0 %v2414
    %2805 = vmatpush.bf16.msra.mxu0 %v2410
    %2806 = vmatpush.bf16.msra.mxu0 %v2406
    %2807 = vmatpush.bf16.msra.mxu0 %v2402
    %2808 = vmatmul.bf16.gmra.mxu0 %v1174
    %v2809 = vpop.f32.mrf.mxu0
    %v2810 = vadd.f32 %v2797, %v2809
    %v2811 = vpop.f32.mrf.mxu0
    %2812 = vdwg.mxu0
    %2813 = vmatpush.bf16.msra.mxu0 %v2462
    %2814 = vmatpush.bf16.msra.mxu0 %v2458
    %2815 = vmatpush.bf16.msra.mxu0 %v2454
    %2816 = vmatpush.bf16.msra.mxu0 %v2450
    %2817 = vmatpush.bf16.msra.mxu0 %v2446
    %2818 = vmatpush.bf16.msra.mxu0 %v2442
    %2819 = vmatpush.bf16.msra.mxu0 %v2438
    %2820 = vmatpush.bf16.msra.mxu0 %v2434
    %2821 = vmatmul.bf16.gmra.mxu0 %v1175
    %v2822 = vpop.f32.mrf.mxu0
    %v2823 = vadd.f32 %v2810, %v2822
    %v2824 = vpop.f32.mrf.mxu0
    %2825 = vdwg.mxu0
    %2826 = vmatpush.bf16.msra.mxu0 %v2239
    %2827 = vmatpush.bf16.msra.mxu0 %v2235
    %2828 = vmatpush.bf16.msra.mxu0 %v2231
    %2829 = vmatpush.bf16.msra.mxu0 %v2227
    %2830 = vmatpush.bf16.msra.mxu0 %v2223
    %2831 = vmatpush.bf16.msra.mxu0 %v2219
    %2832 = vmatpush.bf16.msra.mxu0 %v2215
    %2833 = vmatpush.bf16.msra.mxu0 %v2211
    %2834 = vmatmul.bf16.gmra.mxu0 %v1168
    %v2835 = vpop.f32.mrf.mxu0
    %v2836 = vadd.f32 %v1435, %v2835
    %v2837 = vpop.f32.mrf.mxu0
    %2838 = vdwg.mxu0
    %2839 = vmatpush.bf16.msra.mxu0 %v2271
    %2840 = vmatpush.bf16.msra.mxu0 %v2267
    %2841 = vmatpush.bf16.msra.mxu0 %v2263
    %2842 = vmatpush.bf16.msra.mxu0 %v2259
    %2843 = vmatpush.bf16.msra.mxu0 %v2255
    %2844 = vmatpush.bf16.msra.mxu0 %v2251
    %2845 = vmatpush.bf16.msra.mxu0 %v2247
    %2846 = vmatpush.bf16.msra.mxu0 %v2243
    %2847 = vmatmul.bf16.gmra.mxu0 %v1169
    %v2848 = vpop.f32.mrf.mxu0
    %v2849 = vadd.f32 %v2836, %v2848
    %v2850 = vpop.f32.mrf.mxu0
    %2851 = vdwg.mxu0
    %2852 = vmatpush.bf16.msra.mxu0 %v2303
    %2853 = vmatpush.bf16.msra.mxu0 %v2299
    %2854 = vmatpush.bf16.msra.mxu0 %v2295
    %2855 = vmatpush.bf16.msra.mxu0 %v2291
    %2856 = vmatpush.bf16.msra.mxu0 %v2287
    %2857 = vmatpush.bf16.msra.mxu0 %v2283
    %2858 = vmatpush.bf16.msra.mxu0 %v2279
    %2859 = vmatpush.bf16.msra.mxu0 %v2275
    %2860 = vmatmul.bf16.gmra.mxu0 %v1170
    %v2861 = vpop.f32.mrf.mxu0
    %v2862 = vadd.f32 %v2849, %v2861
    %v2863 = vpop.f32.mrf.mxu0
    %2864 = vdwg.mxu0
    %2865 = vmatpush.bf16.msra.mxu0 %v2335
    %2866 = vmatpush.bf16.msra.mxu0 %v2331
    %2867 = vmatpush.bf16.msra.mxu0 %v2327
    %2868 = vmatpush.bf16.msra.mxu0 %v2323
    %2869 = vmatpush.bf16.msra.mxu0 %v2319
    %2870 = vmatpush.bf16.msra.mxu0 %v2315
    %2871 = vmatpush.bf16.msra.mxu0 %v2311
    %2872 = vmatpush.bf16.msra.mxu0 %v2307
    %2873 = vmatmul.bf16.gmra.mxu0 %v1171
    %v2874 = vpop.f32.mrf.mxu0
    %v2875 = vadd.f32 %v2862, %v2874
    %v2876 = vpop.f32.mrf.mxu0
    %2877 = vdwg.mxu0
    %2878 = vmatpush.bf16.msra.mxu0 %v2367
    %2879 = vmatpush.bf16.msra.mxu0 %v2363
    %2880 = vmatpush.bf16.msra.mxu0 %v2359
    %2881 = vmatpush.bf16.msra.mxu0 %v2355
    %2882 = vmatpush.bf16.msra.mxu0 %v2351
    %2883 = vmatpush.bf16.msra.mxu0 %v2347
    %2884 = vmatpush.bf16.msra.mxu0 %v2343
    %2885 = vmatpush.bf16.msra.mxu0 %v2339
    %2886 = vmatmul.bf16.gmra.mxu0 %v1172
    %v2887 = vpop.f32.mrf.mxu0
    %v2888 = vadd.f32 %v2875, %v2887
    %v2889 = vpop.f32.mrf.mxu0
    %2890 = vdwg.mxu0
    %2891 = vmatpush.bf16.msra.mxu0 %v2399
    %2892 = vmatpush.bf16.msra.mxu0 %v2395
    %2893 = vmatpush.bf16.msra.mxu0 %v2391
    %2894 = vmatpush.bf16.msra.mxu0 %v2387
    %2895 = vmatpush.bf16.msra.mxu0 %v2383
    %2896 = vmatpush.bf16.msra.mxu0 %v2379
    %2897 = vmatpush.bf16.msra.mxu0 %v2375
    %2898 = vmatpush.bf16.msra.mxu0 %v2371
    %2899 = vmatmul.bf16.gmra.mxu0 %v1173
    %v2900 = vpop.f32.mrf.mxu0
    %v2901 = vadd.f32 %v2888, %v2900
    %v2902 = vpop.f32.mrf.mxu0
    %2903 = vdwg.mxu0
    %2904 = vmatpush.bf16.msra.mxu0 %v2431
    %2905 = vmatpush.bf16.msra.mxu0 %v2427
    %2906 = vmatpush.bf16.msra.mxu0 %v2423
    %2907 = vmatpush.bf16.msra.mxu0 %v2419
    %2908 = vmatpush.bf16.msra.mxu0 %v2415
    %2909 = vmatpush.bf16.msra.mxu0 %v2411
    %2910 = vmatpush.bf16.msra.mxu0 %v2407
    %2911 = vmatpush.bf16.msra.mxu0 %v2403
    %2912 = vmatmul.bf16.gmra.mxu0 %v1174
    %v2913 = vpop.f32.mrf.mxu0
    %v2914 = vadd.f32 %v2901, %v2913
    %v2915 = vpop.f32.mrf.mxu0
    %2916 = vdwg.mxu0
    %2917 = vmatpush.bf16.msra.mxu0 %v2463
    %2918 = vmatpush.bf16.msra.mxu0 %v2459
    %2919 = vmatpush.bf16.msra.mxu0 %v2455
    %2920 = vmatpush.bf16.msra.mxu0 %v2451
    %2921 = vmatpush.bf16.msra.mxu0 %v2447
    %2922 = vmatpush.bf16.msra.mxu0 %v2443
    %2923 = vmatpush.bf16.msra.mxu0 %v2439
    %2924 = vmatpush.bf16.msra.mxu0 %v2435
    %2925 = vmatmul.bf16.gmra.mxu0 %v1175
    %v2926 = vpop.f32.mrf.mxu0
    %v2927 = vadd.f32 %v2914, %v2926
    %v2928 = vpop.f32.mrf.mxu0
    %2929 = vdwg.mxu0
    %2930 = vmatpush.bf16.msra.mxu0 %v2240
    %2931 = vmatpush.bf16.msra.mxu0 %v2236
    %2932 = vmatpush.bf16.msra.mxu0 %v2232
    %2933 = vmatpush.bf16.msra.mxu0 %v2228
    %2934 = vmatpush.bf16.msra.mxu0 %v2224
    %2935 = vmatpush.bf16.msra.mxu0 %v2220
    %2936 = vmatpush.bf16.msra.mxu0 %v2216
    %2937 = vmatpush.bf16.msra.mxu0 %v2212
    %2938 = vmatmul.bf16.gmra.mxu0 %v1168
    %v2939 = vpop.f32.mrf.mxu0
    %v2940 = vadd.f32 %v1436, %v2939
    %v2941 = vpop.f32.mrf.mxu0
    %2942 = vdwg.mxu0
    %2943 = vmatpush.bf16.msra.mxu0 %v2272
    %2944 = vmatpush.bf16.msra.mxu0 %v2268
    %2945 = vmatpush.bf16.msra.mxu0 %v2264
    %2946 = vmatpush.bf16.msra.mxu0 %v2260
    %2947 = vmatpush.bf16.msra.mxu0 %v2256
    %2948 = vmatpush.bf16.msra.mxu0 %v2252
    %2949 = vmatpush.bf16.msra.mxu0 %v2248
    %2950 = vmatpush.bf16.msra.mxu0 %v2244
    %2951 = vmatmul.bf16.gmra.mxu0 %v1169
    %v2952 = vpop.f32.mrf.mxu0
    %v2953 = vadd.f32 %v2940, %v2952
    %v2954 = vpop.f32.mrf.mxu0
    %2955 = vdwg.mxu0
    %2956 = vmatpush.bf16.msra.mxu0 %v2304
    %2957 = vmatpush.bf16.msra.mxu0 %v2300
    %2958 = vmatpush.bf16.msra.mxu0 %v2296
    %2959 = vmatpush.bf16.msra.mxu0 %v2292
    %2960 = vmatpush.bf16.msra.mxu0 %v2288
    %2961 = vmatpush.bf16.msra.mxu0 %v2284
    %2962 = vmatpush.bf16.msra.mxu0 %v2280
    %2963 = vmatpush.bf16.msra.mxu0 %v2276
    %2964 = vmatmul.bf16.gmra.mxu0 %v1170
    %v2965 = vpop.f32.mrf.mxu0
    %v2966 = vadd.f32 %v2953, %v2965
    %v2967 = vpop.f32.mrf.mxu0
    %2968 = vdwg.mxu0
    %2969 = vmatpush.bf16.msra.mxu0 %v2336
    %2970 = vmatpush.bf16.msra.mxu0 %v2332
    %2971 = vmatpush.bf16.msra.mxu0 %v2328
    %2972 = vmatpush.bf16.msra.mxu0 %v2324
    %2973 = vmatpush.bf16.msra.mxu0 %v2320
    %2974 = vmatpush.bf16.msra.mxu0 %v2316
    %2975 = vmatpush.bf16.msra.mxu0 %v2312
    %2976 = vmatpush.bf16.msra.mxu0 %v2308
    %2977 = vmatmul.bf16.gmra.mxu0 %v1171
    %v2978 = vpop.f32.mrf.mxu0
    %v2979 = vadd.f32 %v2966, %v2978
    %v2980 = vpop.f32.mrf.mxu0
    %2981 = vdwg.mxu0
    %2982 = vmatpush.bf16.msra.mxu0 %v2368
    %2983 = vmatpush.bf16.msra.mxu0 %v2364
    %2984 = vmatpush.bf16.msra.mxu0 %v2360
    %2985 = vmatpush.bf16.msra.mxu0 %v2356
    %2986 = vmatpush.bf16.msra.mxu0 %v2352
    %2987 = vmatpush.bf16.msra.mxu0 %v2348
    %2988 = vmatpush.bf16.msra.mxu0 %v2344
    %2989 = vmatpush.bf16.msra.mxu0 %v2340
    %2990 = vmatmul.bf16.gmra.mxu0 %v1172
    %v2991 = vpop.f32.mrf.mxu0
    %v2992 = vadd.f32 %v2979, %v2991
    %v2993 = vpop.f32.mrf.mxu0
    %2994 = vdwg.mxu0
    %2995 = vmatpush.bf16.msra.mxu0 %v2400
    %2996 = vmatpush.bf16.msra.mxu0 %v2396
    %2997 = vmatpush.bf16.msra.mxu0 %v2392
    %2998 = vmatpush.bf16.msra.mxu0 %v2388
    %2999 = vmatpush.bf16.msra.mxu0 %v2384
    %3000 = vmatpush.bf16.msra.mxu0 %v2380
    %3001 = vmatpush.bf16.msra.mxu0 %v2376
    %3002 = vmatpush.bf16.msra.mxu0 %v2372
    %3003 = vmatmul.bf16.gmra.mxu0 %v1173
    %v3004 = vpop.f32.mrf.mxu0
    %v3005 = vadd.f32 %v2992, %v3004
    %v3006 = vpop.f32.mrf.mxu0
    %3007 = vdwg.mxu0
    %3008 = vmatpush.bf16.msra.mxu0 %v2432
    %3009 = vmatpush.bf16.msra.mxu0 %v2428
    %3010 = vmatpush.bf16.msra.mxu0 %v2424
    %3011 = vmatpush.bf16.msra.mxu0 %v2420
    %3012 = vmatpush.bf16.msra.mxu0 %v2416
    %3013 = vmatpush.bf16.msra.mxu0 %v2412
    %3014 = vmatpush.bf16.msra.mxu0 %v2408
    %3015 = vmatpush.bf16.msra.mxu0 %v2404
    %3016 = vmatmul.bf16.gmra.mxu0 %v1174
    %v3017 = vpop.f32.mrf.mxu0
    %v3018 = vadd.f32 %v3005, %v3017
    %v3019 = vpop.f32.mrf.mxu0
    %3020 = vdwg.mxu0
    %3021 = vmatpush.bf16.msra.mxu0 %v2464
    %3022 = vmatpush.bf16.msra.mxu0 %v2460
    %3023 = vmatpush.bf16.msra.mxu0 %v2456
    %3024 = vmatpush.bf16.msra.mxu0 %v2452
    %3025 = vmatpush.bf16.msra.mxu0 %v2448
    %3026 = vmatpush.bf16.msra.mxu0 %v2444
    %3027 = vmatpush.bf16.msra.mxu0 %v2440
    %3028 = vmatpush.bf16.msra.mxu0 %v2436
    %3029 = vmatmul.bf16.gmra.mxu0 %v1175
    %v3030 = vpop.f32.mrf.mxu0
    %v3031 = vadd.f32 %v3018, %v3030
    %v3032 = vpop.f32.mrf.mxu0
    %3033 = vdwg.mxu0
    %3034 = vmatpush.bf16.msra.mxu0 %v2241
    %3035 = vmatpush.bf16.msra.mxu0 %v2237
    %3036 = vmatpush.bf16.msra.mxu0 %v2233
    %3037 = vmatpush.bf16.msra.mxu0 %v2229
    %3038 = vmatpush.bf16.msra.mxu0 %v2225
    %3039 = vmatpush.bf16.msra.mxu0 %v2221
    %3040 = vmatpush.bf16.msra.mxu0 %v2217
    %3041 = vmatpush.bf16.msra.mxu0 %v2213
    %3042 = vmatmul.bf16.gmra.mxu0 %v1168
    %v3043 = vpop.f32.mrf.mxu0
    %v3044 = vadd.f32 %v1437, %v3043
    %v3045 = vpop.f32.mrf.mxu0
    %3046 = vdwg.mxu0
    %3047 = vmatpush.bf16.msra.mxu0 %v2273
    %3048 = vmatpush.bf16.msra.mxu0 %v2269
    %3049 = vmatpush.bf16.msra.mxu0 %v2265
    %3050 = vmatpush.bf16.msra.mxu0 %v2261
    %3051 = vmatpush.bf16.msra.mxu0 %v2257
    %3052 = vmatpush.bf16.msra.mxu0 %v2253
    %3053 = vmatpush.bf16.msra.mxu0 %v2249
    %3054 = vmatpush.bf16.msra.mxu0 %v2245
    %3055 = vmatmul.bf16.gmra.mxu0 %v1169
    %v3056 = vpop.f32.mrf.mxu0
    %v3057 = vadd.f32 %v3044, %v3056
    %v3058 = vpop.f32.mrf.mxu0
    %3059 = vdwg.mxu0
    %3060 = vmatpush.bf16.msra.mxu0 %v2305
    %3061 = vmatpush.bf16.msra.mxu0 %v2301
    %3062 = vmatpush.bf16.msra.mxu0 %v2297
    %3063 = vmatpush.bf16.msra.mxu0 %v2293
    %3064 = vmatpush.bf16.msra.mxu0 %v2289
    %3065 = vmatpush.bf16.msra.mxu0 %v2285
    %3066 = vmatpush.bf16.msra.mxu0 %v2281
    %3067 = vmatpush.bf16.msra.mxu0 %v2277
    %3068 = vmatmul.bf16.gmra.mxu0 %v1170
    %v3069 = vpop.f32.mrf.mxu0
    %v3070 = vadd.f32 %v3057, %v3069
    %v3071 = vpop.f32.mrf.mxu0
    %3072 = vdwg.mxu0
    %3073 = vmatpush.bf16.msra.mxu0 %v2337
    %3074 = vmatpush.bf16.msra.mxu0 %v2333
    %3075 = vmatpush.bf16.msra.mxu0 %v2329
    %3076 = vmatpush.bf16.msra.mxu0 %v2325
    %3077 = vmatpush.bf16.msra.mxu0 %v2321
    %3078 = vmatpush.bf16.msra.mxu0 %v2317
    %3079 = vmatpush.bf16.msra.mxu0 %v2313
    %3080 = vmatpush.bf16.msra.mxu0 %v2309
    %3081 = vmatmul.bf16.gmra.mxu0 %v1171
    %v3082 = vpop.f32.mrf.mxu0
    %v3083 = vadd.f32 %v3070, %v3082
    %v3084 = vpop.f32.mrf.mxu0
    %3085 = vdwg.mxu0
    %3086 = vmatpush.bf16.msra.mxu0 %v2369
    %3087 = vmatpush.bf16.msra.mxu0 %v2365
    %3088 = vmatpush.bf16.msra.mxu0 %v2361
    %3089 = vmatpush.bf16.msra.mxu0 %v2357
    %3090 = vmatpush.bf16.msra.mxu0 %v2353
    %3091 = vmatpush.bf16.msra.mxu0 %v2349
    %3092 = vmatpush.bf16.msra.mxu0 %v2345
    %3093 = vmatpush.bf16.msra.mxu0 %v2341
    %3094 = vmatmul.bf16.gmra.mxu0 %v1172
    %v3095 = vpop.f32.mrf.mxu0
    %v3096 = vadd.f32 %v3083, %v3095
    %v3097 = vpop.f32.mrf.mxu0
    %3098 = vdwg.mxu0
    %3099 = vmatpush.bf16.msra.mxu0 %v2401
    %3100 = vmatpush.bf16.msra.mxu0 %v2397
    %3101 = vmatpush.bf16.msra.mxu0 %v2393
    %3102 = vmatpush.bf16.msra.mxu0 %v2389
    %3103 = vmatpush.bf16.msra.mxu0 %v2385
    %3104 = vmatpush.bf16.msra.mxu0 %v2381
    %3105 = vmatpush.bf16.msra.mxu0 %v2377
    %3106 = vmatpush.bf16.msra.mxu0 %v2373
    %3107 = vmatmul.bf16.gmra.mxu0 %v1173
    %v3108 = vpop.f32.mrf.mxu0
    %v3109 = vadd.f32 %v3096, %v3108
    %v3110 = vpop.f32.mrf.mxu0
    %3111 = vdwg.mxu0
    %3112 = vmatpush.bf16.msra.mxu0 %v2433
    %3113 = vmatpush.bf16.msra.mxu0 %v2429
    %3114 = vmatpush.bf16.msra.mxu0 %v2425
    %3115 = vmatpush.bf16.msra.mxu0 %v2421
    %3116 = vmatpush.bf16.msra.mxu0 %v2417
    %3117 = vmatpush.bf16.msra.mxu0 %v2413
    %3118 = vmatpush.bf16.msra.mxu0 %v2409
    %3119 = vmatpush.bf16.msra.mxu0 %v2405
    %3120 = vmatmul.bf16.gmra.mxu0 %v1174
    %v3121 = vpop.f32.mrf.mxu0
    %v3122 = vadd.f32 %v3109, %v3121
    %v3123 = vpop.f32.mrf.mxu0
    %3124 = vdwg.mxu0
    %3125 = vmatpush.bf16.msra.mxu0 %v2465
    %3126 = vmatpush.bf16.msra.mxu0 %v2461
    %3127 = vmatpush.bf16.msra.mxu0 %v2457
    %3128 = vmatpush.bf16.msra.mxu0 %v2453
    %3129 = vmatpush.bf16.msra.mxu0 %v2449
    %3130 = vmatpush.bf16.msra.mxu0 %v2445
    %3131 = vmatpush.bf16.msra.mxu0 %v2441
    %3132 = vmatpush.bf16.msra.mxu0 %v2437
    %3133 = vmatmul.bf16.gmra.mxu0 %v1175
    %v3134 = vpop.f32.mrf.mxu0
    %v3135 = vadd.f32 %v3122, %v3134
    %v3136 = vpop.f32.mrf.mxu0
    %3137 = vdwg.mxu0
    %v3138 = vmax.f32 %v2823, 0.0
    %v3139 = vmax.f32 %v2927, 0.0
    %v3140 = vmax.f32 %v3031, 0.0
    %v3141 = vmax.f32 %v3135, 0.0
    %v3142 = vpack.c.bf16 %v3138, %v3138
    %v3143 = vpack.c.bf16 %v3139, %v3139
    %v3144 = vpack.c.bf16 %v3140, %v3140
    %v3145 = vpack.c.bf16 %v3141, %v3141
    %v3146 = vld [vmem:[#allocation11] sm:$0xff]
    %v3147 = vld [vmem:[#allocation11 + $0x8] sm:$0xff]
    %v3148 = vld [vmem:[#allocation11 + $0x10] sm:$0xff]
    %v3149 = vld [vmem:[#allocation11 + $0x18] sm:$0xff]
    %v3150 = vld [vmem:[#allocation11 + $0x20] sm:$0xff]
    %v3151 = vld [vmem:[#allocation11 + $0x28] sm:$0xff]
    %v3152 = vld [vmem:[#allocation11 + $0x30] sm:$0xff]
    %v3153 = vld [vmem:[#allocation11 + $0x38] sm:$0xff]
    %v3154 = vld [vmem:[#allocation11 + $0x40] sm:$0xff]
    %v3155 = vld [vmem:[#allocation11 + $0x48] sm:$0xff]
    %v3156 = vld [vmem:[#allocation11 + $0x50] sm:$0xff]
    %v3157 = vld [vmem:[#allocation11 + $0x58] sm:$0xff]
    %v3158 = vld [vmem:[#allocation11 + $0x60] sm:$0xff]
    %v3159 = vld [vmem:[#allocation11 + $0x68] sm:$0xff]
    %v3160 = vld [vmem:[#allocation11 + $0x70] sm:$0xff]
    %v3161 = vld [vmem:[#allocation11 + $0x78] sm:$0xff]
    %v3162 = vld [vmem:[#allocation11 + $0x80] sm:$0xff]
    %v3163 = vld [vmem:[#allocation11 + $0x88] sm:$0xff]
    %v3164 = vld [vmem:[#allocation11 + $0x90] sm:$0xff]
    %v3165 = vld [vmem:[#allocation11 + $0x98] sm:$0xff]
    %v3166 = vld [vmem:[#allocation11 + $0xa0] sm:$0xff]
    %v3167 = vld [vmem:[#allocation11 + $0xa8] sm:$0xff]
    %v3168 = vld [vmem:[#allocation11 + $0xb0] sm:$0xff]
    %v3169 = vld [vmem:[#allocation11 + $0xb8] sm:$0xff]
    %v3170 = vld [vmem:[#allocation11 + $0xc0] sm:$0xff]
    %v3171 = vld [vmem:[#allocation11 + $0xc8] sm:$0xff]
    %v3172 = vld [vmem:[#allocation11 + $0xd0] sm:$0xff]
    %v3173 = vld [vmem:[#allocation11 + $0xd8] sm:$0xff]
    %v3174 = vld [vmem:[#allocation11 + $0xe0] sm:$0xff]
    %v3175 = vld [vmem:[#allocation11 + $0xe8] sm:$0xff]
    %v3176 = vld [vmem:[#allocation11 + $0xf0] sm:$0xff]
    %v3177 = vld [vmem:[#allocation11 + $0xf8] sm:$0xff]
    %v3178 = vld [vmem:[#allocation11 + $0x100] sm:$0xff]
    %v3179 = vld [vmem:[#allocation11 + $0x108] sm:$0xff]
    %v3180 = vld [vmem:[#allocation11 + $0x110] sm:$0xff]
    %v3181 = vld [vmem:[#allocation11 + $0x118] sm:$0xff]
    %v3182 = vld [vmem:[#allocation11 + $0x120] sm:$0xff]
    %v3183 = vld [vmem:[#allocation11 + $0x128] sm:$0xff]
    %v3184 = vld [vmem:[#allocation11 + $0x130] sm:$0xff]
    %v3185 = vld [vmem:[#allocation11 + $0x138] sm:$0xff]
    %v3186 = vld [vmem:[#allocation11 + $0x140] sm:$0xff]
    %v3187 = vld [vmem:[#allocation11 + $0x148] sm:$0xff]
    %v3188 = vld [vmem:[#allocation11 + $0x150] sm:$0xff]
    %v3189 = vld [vmem:[#allocation11 + $0x158] sm:$0xff]
    %v3190 = vld [vmem:[#allocation11 + $0x160] sm:$0xff]
    %v3191 = vld [vmem:[#allocation11 + $0x168] sm:$0xff]
    %v3192 = vld [vmem:[#allocation11 + $0x170] sm:$0xff]
    %v3193 = vld [vmem:[#allocation11 + $0x178] sm:$0xff]
    %v3194 = vld [vmem:[#allocation11 + $0x180] sm:$0xff]
    %v3195 = vld [vmem:[#allocation11 + $0x188] sm:$0xff]
    %v3196 = vld [vmem:[#allocation11 + $0x190] sm:$0xff]
    %v3197 = vld [vmem:[#allocation11 + $0x198] sm:$0xff]
    %v3198 = vld [vmem:[#allocation11 + $0x1a0] sm:$0xff]
    %v3199 = vld [vmem:[#allocation11 + $0x1a8] sm:$0xff]
    %v3200 = vld [vmem:[#allocation11 + $0x1b0] sm:$0xff]
    %v3201 = vld [vmem:[#allocation11 + $0x1b8] sm:$0xff]
    %v3202 = vld [vmem:[#allocation11 + $0x1c0] sm:$0xff]
    %v3203 = vld [vmem:[#allocation11 + $0x1c8] sm:$0xff]
    %v3204 = vld [vmem:[#allocation11 + $0x1d0] sm:$0xff]
    %v3205 = vld [vmem:[#allocation11 + $0x1d8] sm:$0xff]
    %v3206 = vld [vmem:[#allocation11 + $0x1e0] sm:$0xff]
    %v3207 = vld [vmem:[#allocation11 + $0x1e8] sm:$0xff]
    %v3208 = vld [vmem:[#allocation11 + $0x1f0] sm:$0xff]
    %v3209 = vld [vmem:[#allocation11 + $0x1f8] sm:$0xff]
    %v3210 = vld [vmem:[%s6] sm:$0x3]
    %v3212 = vperm.slane %v3210, 0
    %v3213 = vperm.slane %v3210, 1
    %v3280 = vunpack.c.l.b16 %v3146
    %v3281 = vunpack.c.h.b16 %v3146
    %v3282 = vunpack.c.l.b16 %v3147
    %v3283 = vunpack.c.h.b16 %v3147
    %v3284 = vunpack.c.l.b16 %v3148
    %v3285 = vunpack.c.h.b16 %v3148
    %v3286 = vunpack.c.l.b16 %v3149
    %v3287 = vunpack.c.h.b16 %v3149
    %v3288 = vunpack.c.l.b16 %v3150
    %v3289 = vunpack.c.h.b16 %v3150
    %v3290 = vunpack.c.l.b16 %v3151
    %v3291 = vunpack.c.h.b16 %v3151
    %v3292 = vunpack.c.l.b16 %v3152
    %v3293 = vunpack.c.h.b16 %v3152
    %v3294 = vunpack.c.l.b16 %v3153
    %v3295 = vunpack.c.h.b16 %v3153
    %v3296 = vunpack.c.l.b16 %v3154
    %v3297 = vunpack.c.h.b16 %v3154
    %v3298 = vunpack.c.l.b16 %v3155
    %v3299 = vunpack.c.h.b16 %v3155
    %v3300 = vunpack.c.l.b16 %v3156
    %v3301 = vunpack.c.h.b16 %v3156
    %v3302 = vunpack.c.l.b16 %v3157
    %v3303 = vunpack.c.h.b16 %v3157
    %v3304 = vunpack.c.l.b16 %v3158
    %v3305 = vunpack.c.h.b16 %v3158
    %v3306 = vunpack.c.l.b16 %v3159
    %v3307 = vunpack.c.h.b16 %v3159
    %v3308 = vunpack.c.l.b16 %v3160
    %v3309 = vunpack.c.h.b16 %v3160
    %v3310 = vunpack.c.l.b16 %v3161
    %v3311 = vunpack.c.h.b16 %v3161
    %v3312 = vunpack.c.l.b16 %v3162
    %v3313 = vunpack.c.h.b16 %v3162
    %v3314 = vunpack.c.l.b16 %v3163
    %v3315 = vunpack.c.h.b16 %v3163
    %v3316 = vunpack.c.l.b16 %v3164
    %v3317 = vunpack.c.h.b16 %v3164
    %v3318 = vunpack.c.l.b16 %v3165
    %v3319 = vunpack.c.h.b16 %v3165
    %v3320 = vunpack.c.l.b16 %v3166
    %v3321 = vunpack.c.h.b16 %v3166
    %v3322 = vunpack.c.l.b16 %v3167
    %v3323 = vunpack.c.h.b16 %v3167
    %v3324 = vunpack.c.l.b16 %v3168
    %v3325 = vunpack.c.h.b16 %v3168
    %v3326 = vunpack.c.l.b16 %v3169
    %v3327 = vunpack.c.h.b16 %v3169
    %v3328 = vunpack.c.l.b16 %v3170
    %v3329 = vunpack.c.h.b16 %v3170
    %v3330 = vunpack.c.l.b16 %v3171
    %v3331 = vunpack.c.h.b16 %v3171
    %v3332 = vunpack.c.l.b16 %v3172
    %v3333 = vunpack.c.h.b16 %v3172
    %v3334 = vunpack.c.l.b16 %v3173
    %v3335 = vunpack.c.h.b16 %v3173
    %v3336 = vunpack.c.l.b16 %v3174
    %v3337 = vunpack.c.h.b16 %v3174
    %v3338 = vunpack.c.l.b16 %v3175
    %v3339 = vunpack.c.h.b16 %v3175
    %v3340 = vunpack.c.l.b16 %v3176
    %v3341 = vunpack.c.h.b16 %v3176
    %v3342 = vunpack.c.l.b16 %v3177
    %v3343 = vunpack.c.h.b16 %v3177
    %v3344 = vunpack.c.l.b16 %v3178
    %v3345 = vunpack.c.h.b16 %v3178
    %v3346 = vunpack.c.l.b16 %v3179
    %v3347 = vunpack.c.h.b16 %v3179
    %v3348 = vunpack.c.l.b16 %v3180
    %v3349 = vunpack.c.h.b16 %v3180
    %v3350 = vunpack.c.l.b16 %v3181
    %v3351 = vunpack.c.h.b16 %v3181
    %v3352 = vunpack.c.l.b16 %v3182
    %v3353 = vunpack.c.h.b16 %v3182
    %v3354 = vunpack.c.l.b16 %v3183
    %v3355 = vunpack.c.h.b16 %v3183
    %v3356 = vunpack.c.l.b16 %v3184
    %v3357 = vunpack.c.h.b16 %v3184
    %v3358 = vunpack.c.l.b16 %v3185
    %v3359 = vunpack.c.h.b16 %v3185
    %v3360 = vunpack.c.l.b16 %v3186
    %v3361 = vunpack.c.h.b16 %v3186
    %v3362 = vunpack.c.l.b16 %v3187
    %v3363 = vunpack.c.h.b16 %v3187
    %v3364 = vunpack.c.l.b16 %v3188
    %v3365 = vunpack.c.h.b16 %v3188
    %v3366 = vunpack.c.l.b16 %v3189
    %v3367 = vunpack.c.h.b16 %v3189
    %v3368 = vunpack.c.l.b16 %v3190
    %v3369 = vunpack.c.h.b16 %v3190
    %v3370 = vunpack.c.l.b16 %v3191
    %v3371 = vunpack.c.h.b16 %v3191
    %v3372 = vunpack.c.l.b16 %v3192
    %v3373 = vunpack.c.h.b16 %v3192
    %v3374 = vunpack.c.l.b16 %v3193
    %v3375 = vunpack.c.h.b16 %v3193
    %v3376 = vunpack.c.l.b16 %v3194
    %v3377 = vunpack.c.h.b16 %v3194
    %v3378 = vunpack.c.l.b16 %v3195
    %v3379 = vunpack.c.h.b16 %v3195
    %v3380 = vunpack.c.l.b16 %v3196
    %v3381 = vunpack.c.h.b16 %v3196
    %v3382 = vunpack.c.l.b16 %v3197
    %v3383 = vunpack.c.h.b16 %v3197
    %v3384 = vunpack.c.l.b16 %v3198
    %v3385 = vunpack.c.h.b16 %v3198
    %v3386 = vunpack.c.l.b16 %v3199
    %v3387 = vunpack.c.h.b16 %v3199
    %v3388 = vunpack.c.l.b16 %v3200
    %v3389 = vunpack.c.h.b16 %v3200
    %v3390 = vunpack.c.l.b16 %v3201
    %v3391 = vunpack.c.h.b16 %v3201
    %v3392 = vunpack.c.l.b16 %v3202
    %v3393 = vunpack.c.h.b16 %v3202
    %v3394 = vunpack.c.l.b16 %v3203
    %v3395 = vunpack.c.h.b16 %v3203
    %v3396 = vunpack.c.l.b16 %v3204
    %v3397 = vunpack.c.h.b16 %v3204
    %v3398 = vunpack.c.l.b16 %v3205
    %v3399 = vunpack.c.h.b16 %v3205
    %v3400 = vunpack.c.l.b16 %v3206
    %v3401 = vunpack.c.h.b16 %v3206
    %v3402 = vunpack.c.l.b16 %v3207
    %v3403 = vunpack.c.h.b16 %v3207
    %v3404 = vunpack.c.l.b16 %v3208
    %v3405 = vunpack.c.h.b16 %v3208
    %v3406 = vunpack.c.l.b16 %v3209
    %v3407 = vunpack.c.h.b16 %v3209
    %v3408 = vpack.c.b16 %v3282, %v3280
    %v3409 = vpack.c.b16 %v3283, %v3281
    %v3410 = vpack.c.b16 %v3286, %v3284
    %v3411 = vpack.c.b16 %v3287, %v3285
    %v3412 = vpack.c.b16 %v3290, %v3288
    %v3413 = vpack.c.b16 %v3291, %v3289
    %v3414 = vpack.c.b16 %v3294, %v3292
    %v3415 = vpack.c.b16 %v3295, %v3293
    %v3416 = vpack.c.b16 %v3298, %v3296
    %v3417 = vpack.c.b16 %v3299, %v3297
    %v3418 = vpack.c.b16 %v3302, %v3300
    %v3419 = vpack.c.b16 %v3303, %v3301
    %v3420 = vpack.c.b16 %v3306, %v3304
    %v3421 = vpack.c.b16 %v3307, %v3305
    %v3422 = vpack.c.b16 %v3310, %v3308
    %v3423 = vpack.c.b16 %v3311, %v3309
    %v3424 = vpack.c.b16 %v3314, %v3312
    %v3425 = vpack.c.b16 %v3315, %v3313
    %v3426 = vpack.c.b16 %v3318, %v3316
    %v3427 = vpack.c.b16 %v3319, %v3317
    %v3428 = vpack.c.b16 %v3322, %v3320
    %v3429 = vpack.c.b16 %v3323, %v3321
    %v3430 = vpack.c.b16 %v3326, %v3324
    %v3431 = vpack.c.b16 %v3327, %v3325
    %v3432 = vpack.c.b16 %v3330, %v3328
    %v3433 = vpack.c.b16 %v3331, %v3329
    %v3434 = vpack.c.b16 %v3334, %v3332
    %v3435 = vpack.c.b16 %v3335, %v3333
    %v3436 = vpack.c.b16 %v3338, %v3336
    %v3437 = vpack.c.b16 %v3339, %v3337
    %v3438 = vpack.c.b16 %v3342, %v3340
    %v3439 = vpack.c.b16 %v3343, %v3341
    %v3440 = vpack.c.b16 %v3346, %v3344
    %v3441 = vpack.c.b16 %v3347, %v3345
    %v3442 = vpack.c.b16 %v3350, %v3348
    %v3443 = vpack.c.b16 %v3351, %v3349
    %v3444 = vpack.c.b16 %v3354, %v3352
    %v3445 = vpack.c.b16 %v3355, %v3353
    %v3446 = vpack.c.b16 %v3358, %v3356
    %v3447 = vpack.c.b16 %v3359, %v3357
    %v3448 = vpack.c.b16 %v3362, %v3360
    %v3449 = vpack.c.b16 %v3363, %v3361
    %v3450 = vpack.c.b16 %v3366, %v3364
    %v3451 = vpack.c.b16 %v3367, %v3365
    %v3452 = vpack.c.b16 %v3370, %v3368
    %v3453 = vpack.c.b16 %v3371, %v3369
    %v3454 = vpack.c.b16 %v3374, %v3372
    %v3455 = vpack.c.b16 %v3375, %v3373
    %v3456 = vpack.c.b16 %v3378, %v3376
    %v3457 = vpack.c.b16 %v3379, %v3377
    %v3458 = vpack.c.b16 %v3382, %v3380
    %v3459 = vpack.c.b16 %v3383, %v3381
    %v3460 = vpack.c.b16 %v3386, %v3384
    %v3461 = vpack.c.b16 %v3387, %v3385
    %v3462 = vpack.c.b16 %v3390, %v3388
    %v3463 = vpack.c.b16 %v3391, %v3389
    %v3464 = vpack.c.b16 %v3394, %v3392
    %v3465 = vpack.c.b16 %v3395, %v3393
    %v3466 = vpack.c.b16 %v3398, %v3396
    %v3467 = vpack.c.b16 %v3399, %v3397
    %v3468 = vpack.c.b16 %v3402, %v3400
    %v3469 = vpack.c.b16 %v3403, %v3401
    %v3470 = vpack.c.b16 %v3406, %v3404
    %v3471 = vpack.c.b16 %v3407, %v3405
    %3536 = vmatpush.bf16.msra.mxu0 %v3422
    %3537 = vmatpush.bf16.msra.mxu0 %v3420
    %3538 = vmatpush.bf16.msra.mxu0 %v3418
    %3539 = vmatpush.bf16.msra.mxu0 %v3416
    %3540 = vmatpush.bf16.msra.mxu0 %v3414
    %3541 = vmatpush.bf16.msra.mxu0 %v3412
    %3542 = vmatpush.bf16.msra.mxu0 %v3410
    %3543 = vmatpush.bf16.msra.mxu0 %v3408
    %3544 = vmatmul.bf16.gmra.mxu0 %v3142
    %v3545 = vpop.f32.mrf.mxu0
    %v3546 = vadd.f32 %v3212, %v3545
    %v3547 = vpop.f32.mrf.mxu0
    %3548 = vdwg.mxu0
    %3549 = vmatpush.bf16.msra.mxu0 %v3438
    %3550 = vmatpush.bf16.msra.mxu0 %v3436
    %3551 = vmatpush.bf16.msra.mxu0 %v3434
    %3552 = vmatpush.bf16.msra.mxu0 %v3432
    %3553 = vmatpush.bf16.msra.mxu0 %v3430
    %3554 = vmatpush.bf16.msra.mxu0 %v3428
    %3555 = vmatpush.bf16.msra.mxu0 %v3426
    %3556 = vmatpush.bf16.msra.mxu0 %v3424
    %3557 = vmatmul.bf16.gmra.mxu0 %v3143
    %v3558 = vpop.f32.mrf.mxu0
    %v3559 = vadd.f32 %v3546, %v3558
    %v3560 = vpop.f32.mrf.mxu0
    %3561 = vdwg.mxu0
    %3562 = vmatpush.bf16.msra.mxu0 %v3454
    %3563 = vmatpush.bf16.msra.mxu0 %v3452
    %3564 = vmatpush.bf16.msra.mxu0 %v3450
    %3565 = vmatpush.bf16.msra.mxu0 %v3448
    %3566 = vmatpush.bf16.msra.mxu0 %v3446
    %3567 = vmatpush.bf16.msra.mxu0 %v3444
    %3568 = vmatpush.bf16.msra.mxu0 %v3442
    %3569 = vmatpush.bf16.msra.mxu0 %v3440
    %3570 = vmatmul.bf16.gmra.mxu0 %v3144
    %v3571 = vpop.f32.mrf.mxu0
    %v3572 = vadd.f32 %v3559, %v3571
    %v3573 = vpop.f32.mrf.mxu0
    %3574 = vdwg.mxu0
    %3575 = vmatpush.bf16.msra.mxu0 %v3470
    %3576 = vmatpush.bf16.msra.mxu0 %v3468
    %3577 = vmatpush.bf16.msra.mxu0 %v3466
    %3578 = vmatpush.bf16.msra.mxu0 %v3464
    %3579 = vmatpush.bf16.msra.mxu0 %v3462
    %3580 = vmatpush.bf16.msra.mxu0 %v3460
    %3581 = vmatpush.bf16.msra.mxu0 %v3458
    %3582 = vmatpush.bf16.msra.mxu0 %v3456
    %3583 = vmatmul.bf16.gmra.mxu0 %v3145
    %v3584 = vpop.f32.mrf.mxu0
    %v3585 = vadd.f32 %v3572, %v3584
    %v3586 = vpop.f32.mrf.mxu0
    %3587 = vdwg.mxu0
    %3588 = vmatpush.bf16.msra.mxu0 %v3423
    %3589 = vmatpush.bf16.msra.mxu0 %v3421
    %3590 = vmatpush.bf16.msra.mxu0 %v3419
    %3591 = vmatpush.bf16.msra.mxu0 %v3417
    %3592 = vmatpush.bf16.msra.mxu0 %v3415
    %3593 = vmatpush.bf16.msra.mxu0 %v3413
    %3594 = vmatpush.bf16.msra.mxu0 %v3411
    %3595 = vmatpush.bf16.msra.mxu0 %v3409
    %3596 = vmatmul.bf16.gmra.mxu0 %v3142
    %v3597 = vpop.f32.mrf.mxu0
    %v3598 = vadd.f32 %v3213, %v3597
    %v3599 = vpop.f32.mrf.mxu0
    %3600 = vdwg.mxu0
    %3601 = vmatpush.bf16.msra.mxu0 %v3439
    %3602 = vmatpush.bf16.msra.mxu0 %v3437
    %3603 = vmatpush.bf16.msra.mxu0 %v3435
    %3604 = vmatpush.bf16.msra.mxu0 %v3433
    %3605 = vmatpush.bf16.msra.mxu0 %v3431
    %3606 = vmatpush.bf16.msra.mxu0 %v3429
    %3607 = vmatpush.bf16.msra.mxu0 %v3427
    %3608 = vmatpush.bf16.msra.mxu0 %v3425
    %3609 = vmatmul.bf16.gmra.mxu0 %v3143
    %v3610 = vpop.f32.mrf.mxu0
    %v3611 = vadd.f32 %v3598, %v3610
    %v3612 = vpop.f32.mrf.mxu0
    %3613 = vdwg.mxu0
    %3614 = vmatpush.bf16.msra.mxu0 %v3455
    %3615 = vmatpush.bf16.msra.mxu0 %v3453
    %3616 = vmatpush.bf16.msra.mxu0 %v3451
    %3617 = vmatpush.bf16.msra.mxu0 %v3449
    %3618 = vmatpush.bf16.msra.mxu0 %v3447
    %3619 = vmatpush.bf16.msra.mxu0 %v3445
    %3620 = vmatpush.bf16.msra.mxu0 %v3443
    %3621 = vmatpush.bf16.msra.mxu0 %v3441
    %3622 = vmatmul.bf16.gmra.mxu0 %v3144
    %v3623 = vpop.f32.mrf.mxu0
    %v3624 = vadd.f32 %v3611, %v3623
    %v3625 = vpop.f32.mrf.mxu0
    %3626 = vdwg.mxu0
    %3627 = vmatpush.bf16.msra.mxu0 %v3471
    %3628 = vmatpush.bf16.msra.mxu0 %v3469
    %3629 = vmatpush.bf16.msra.mxu0 %v3467
    %3630 = vmatpush.bf16.msra.mxu0 %v3465
    %3631 = vmatpush.bf16.msra.mxu0 %v3463
    %3632 = vmatpush.bf16.msra.mxu0 %v3461
    %3633 = vmatpush.bf16.msra.mxu0 %v3459
    %3634 = vmatpush.bf16.msra.mxu0 %v3457
    %3635 = vmatmul.bf16.gmra.mxu0 %v3145
    %v3636 = vpop.f32.mrf.mxu0
    %v3637 = vadd.f32 %v3624, %v3636
    %v3638 = vpop.f32.mrf.mxu0
    %3639 = vdwg.mxu0
    %v3640 = vmax.f32 %v3585, 0.0
    %v3641 = vmax.f32 %v3637, 0.0
    %v3642 = vpack.c.bf16 %v3640, %v3640
    %v3643 = vpack.c.bf16 %v3641, %v3641
    %v3644 = vld [vmem:[#allocation13] sm:$0xf]
    %v3645 = vld [vmem:[#allocation13 + $0x4] sm:$0xf]
    %v3646 = vld [vmem:[#allocation13 + $0x8] sm:$0xf]
    %v3647 = vld [vmem:[#allocation13 + $0xc] sm:$0xf]
    %v3648 = vld [vmem:[#allocation13 + $0x10] sm:$0xf]
    %v3649 = vld [vmem:[#allocation13 + $0x14] sm:$0xf]
    %v3650 = vld [vmem:[#allocation13 + $0x18] sm:$0xf]
    %v3651 = vld [vmem:[#allocation13 + $0x1c] sm:$0xf]
    %v3652 = vld [vmem:[#allocation13 + $0x20] sm:$0xf]
    %v3653 = vld [vmem:[#allocation13 + $0x24] sm:$0xf]
    %v3654 = vld [vmem:[#allocation13 + $0x28] sm:$0xf]
    %v3655 = vld [vmem:[#allocation13 + $0x2c] sm:$0xf]
    %v3656 = vld [vmem:[#allocation13 + $0x30] sm:$0xf]
    %v3657 = vld [vmem:[#allocation13 + $0x34] sm:$0xf]
    %v3658 = vld [vmem:[#allocation13 + $0x38] sm:$0xf]
    %v3659 = vld [vmem:[#allocation13 + $0x3c] sm:$0xf]
    %v3660 = vld [vmem:[#allocation13 + $0x40] sm:$0xf]
    %v3661 = vld [vmem:[#allocation13 + $0x44] sm:$0xf]
    %v3662 = vld [vmem:[#allocation13 + $0x48] sm:$0xf]
    %v3663 = vld [vmem:[#allocation13 + $0x4c] sm:$0xf]
    %v3664 = vld [vmem:[#allocation13 + $0x50] sm:$0xf]
    %v3665 = vld [vmem:[#allocation13 + $0x54] sm:$0xf]
    %v3666 = vld [vmem:[#allocation13 + $0x58] sm:$0xf]
    %v3667 = vld [vmem:[#allocation13 + $0x5c] sm:$0xf]
    %v3668 = vld [vmem:[#allocation13 + $0x60] sm:$0xf]
    %v3669 = vld [vmem:[#allocation13 + $0x64] sm:$0xf]
    %v3670 = vld [vmem:[#allocation13 + $0x68] sm:$0xf]
    %v3671 = vld [vmem:[#allocation13 + $0x6c] sm:$0xf]
    %v3672 = vld [vmem:[#allocation13 + $0x70] sm:$0xf]
    %v3673 = vld [vmem:[#allocation13 + $0x74] sm:$0xf]
    %v3674 = vld [vmem:[#allocation13 + $0x78] sm:$0xf]
    %v3675 = vld [vmem:[#allocation13 + $0x7c] sm:$0xf]
    %v3676 = vld [vmem:[%s8] sm:$0x1]
    %v3678 = vperm.slane %v3676, 0
    %v3712 = vunpack.c.l.b16 %v3644
    %v3713 = vunpack.c.l.b16 %v3645
    %v3714 = vunpack.c.l.b16 %v3646
    %v3715 = vunpack.c.l.b16 %v3647
    %v3716 = vunpack.c.l.b16 %v3648
    %v3717 = vunpack.c.l.b16 %v3649
    %v3718 = vunpack.c.l.b16 %v3650
    %v3719 = vunpack.c.l.b16 %v3651
    %v3720 = vunpack.c.l.b16 %v3652
    %v3721 = vunpack.c.l.b16 %v3653
    %v3722 = vunpack.c.l.b16 %v3654
    %v3723 = vunpack.c.l.b16 %v3655
    %v3724 = vunpack.c.l.b16 %v3656
    %v3725 = vunpack.c.l.b16 %v3657
    %v3726 = vunpack.c.l.b16 %v3658
    %v3727 = vunpack.c.l.b16 %v3659
    %v3728 = vunpack.c.l.b16 %v3660
    %v3729 = vunpack.c.l.b16 %v3661
    %v3730 = vunpack.c.l.b16 %v3662
    %v3731 = vunpack.c.l.b16 %v3663
    %v3732 = vunpack.c.l.b16 %v3664
    %v3733 = vunpack.c.l.b16 %v3665
    %v3734 = vunpack.c.l.b16 %v3666
    %v3735 = vunpack.c.l.b16 %v3667
    %v3736 = vunpack.c.l.b16 %v3668
    %v3737 = vunpack.c.l.b16 %v3669
    %v3738 = vunpack.c.l.b16 %v3670
    %v3739 = vunpack.c.l.b16 %v3671
    %v3740 = vunpack.c.l.b16 %v3672
    %v3741 = vunpack.c.l.b16 %v3673
    %v3742 = vunpack.c.l.b16 %v3674
    %v3743 = vunpack.c.l.b16 %v3675
    %v3744 = vpack.c.b16 %v3713, %v3712
    %v3745 = vpack.c.b16 %v3715, %v3714
    %v3746 = vpack.c.b16 %v3717, %v3716
    %v3747 = vpack.c.b16 %v3719, %v3718
    %v3748 = vpack.c.b16 %v3721, %v3720
    %v3749 = vpack.c.b16 %v3723, %v3722
    %v3750 = vpack.c.b16 %v3725, %v3724
    %v3751 = vpack.c.b16 %v3727, %v3726
    %v3752 = vpack.c.b16 %v3729, %v3728
    %v3753 = vpack.c.b16 %v3731, %v3730
    %v3754 = vpack.c.b16 %v3733, %v3732
    %v3755 = vpack.c.b16 %v3735, %v3734
    %v3756 = vpack.c.b16 %v3737, %v3736
    %v3757 = vpack.c.b16 %v3739, %v3738
    %v3758 = vpack.c.b16 %v3741, %v3740
    %v3759 = vpack.c.b16 %v3743, %v3742
    %3776 = vmatpush.bf16.msra.mxu0 %v3751
    %3777 = vmatpush.bf16.msra.mxu0 %v3750
    %3778 = vmatpush.bf16.msra.mxu0 %v3749
    %3779 = vmatpush.bf16.msra.mxu0 %v3748
    %3780 = vmatpush.bf16.msra.mxu0 %v3747
    %3781 = vmatpush.bf16.msra.mxu0 %v3746
    %3782 = vmatpush.bf16.msra.mxu0 %v3745
    %3783 = vmatpush.bf16.msra.mxu0 %v3744
    %3784 = vmatmul.bf16.gmra.mxu0 %v3642
    %v3785 = vpop.f32.mrf.mxu0
    %v3786 = vadd.f32 %v3678, %v3785
    %v3787 = vpop.f32.mrf.mxu0
    %3788 = vdwg.mxu0
    %3789 = vmatpush.bf16.msra.mxu0 %v3759
    %3790 = vmatpush.bf16.msra.mxu0 %v3758
    %3791 = vmatpush.bf16.msra.mxu0 %v3757
    %3792 = vmatpush.bf16.msra.mxu0 %v3756
    %3793 = vmatpush.bf16.msra.mxu0 %v3755
    %3794 = vmatpush.bf16.msra.mxu0 %v3754
    %3795 = vmatpush.bf16.msra.mxu0 %v3753
    %3796 = vmatpush.bf16.msra.mxu0 %v3752
    %3797 = vmatmul.bf16.gmra.mxu0 %v3643
    %v3798 = vpop.f32.mrf.mxu0
    %v3799 = vadd.f32 %v3786, %v3798
    %v3800 = vpop.f32.mrf.mxu0
    %3801 = vdwg.mxu0
    %v3802 = vmax.f32 %v3799, 0.0
    %v3803 = vpack.c.bf16 %v3802, %v3802
    %v3804 = vld [vmem:[#allocation14] sm:$0xf]
    %v3805 = vld [vmem:[#allocation14 + $0x4] sm:$0xf]
    %v3806 = vld [vmem:[#allocation14 + $0x8] sm:$0xf]
    %v3807 = vld [vmem:[#allocation14 + $0xc] sm:$0xf]
    %v3808 = vld [vmem:[#allocation14 + $0x10] sm:$0xf]
    %v3809 = vld [vmem:[#allocation14 + $0x14] sm:$0xf]
    %v3810 = vld [vmem:[#allocation14 + $0x18] sm:$0xf]
    %v3811 = vld [vmem:[#allocation14 + $0x1c] sm:$0xf]
    %v3812 = vld [vmem:[#allocation14 + $0x20] sm:$0xf]
    %v3813 = vld [vmem:[#allocation14 + $0x24] sm:$0xf]
    %v3814 = vld [vmem:[#allocation14 + $0x28] sm:$0xf]
    %v3815 = vld [vmem:[#allocation14 + $0x2c] sm:$0xf]
    %v3816 = vld [vmem:[#allocation14 + $0x30] sm:$0xf]
    %v3817 = vld [vmem:[#allocation14 + $0x34] sm:$0xf]
    %v3818 = vld [vmem:[#allocation14 + $0x38] sm:$0xf]
    %v3819 = vld [vmem:[#allocation14 + $0x3c] sm:$0xf]
    %v3820 = vld [vmem:[%s10] sm:$0x1]
    %v3822 = vperm.slane %v3820, 0
    %v3840 = vunpack.c.l.b16 %v3804
    %v3841 = vunpack.c.l.b16 %v3805
    %v3842 = vunpack.c.l.b16 %v3806
    %v3843 = vunpack.c.l.b16 %v3807
    %v3844 = vunpack.c.l.b16 %v3808
    %v3845 = vunpack.c.l.b16 %v3809
    %v3846 = vunpack.c.l.b16 %v3810
    %v3847 = vunpack.c.l.b16 %v3811
    %v3848 = vunpack.c.l.b16 %v3812
    %v3849 = vunpack.c.l.b16 %v3813
    %v3850 = vunpack.c.l.b16 %v3814
    %v3851 = vunpack.c.l.b16 %v3815
    %v3852 = vunpack.c.l.b16 %v3816
    %v3853 = vunpack.c.l.b16 %v3817
    %v3854 = vunpack.c.l.b16 %v3818
    %v3855 = vunpack.c.l.b16 %v3819
    %v3856 = vpack.c.b16 %v3841, %v3840
    %v3857 = vpack.c.b16 %v3843, %v3842
    %v3858 = vpack.c.b16 %v3845, %v3844
    %v3859 = vpack.c.b16 %v3847, %v3846
    %v3860 = vpack.c.b16 %v3849, %v3848
    %v3861 = vpack.c.b16 %v3851, %v3850
    %v3862 = vpack.c.b16 %v3853, %v3852
    %v3863 = vpack.c.b16 %v3855, %v3854
    %3872 = vmatpush.bf16.msra.mxu0 %v3863
    %3873 = vmatpush.bf16.msra.mxu0 %v3862
    %3874 = vmatpush.bf16.msra.mxu0 %v3861
    %3875 = vmatpush.bf16.msra.mxu0 %v3860
    %3876 = vmatpush.bf16.msra.mxu0 %v3859
    %3877 = vmatpush.bf16.msra.mxu0 %v3858
    %3878 = vmatpush.bf16.msra.mxu0 %v3857
    %3879 = vmatpush.bf16.msra.mxu0 %v3856
    %3880 = vmatmul.bf16.gmra.mxu0 %v3803
    %v3881 = vpop.f32.mrf.mxu0
    %v3882 = vadd.f32 %v3822, %v3881
    %v3883 = vpop.f32.mrf.mxu0
    %3884 = vdwg.mxu0
    %3885 = vst [vmem:[#allocation16] sm:$0xff] %v3882
    // Predicated region
    $region78: #{tpu_custom_call.1} parent=1 // pred_check
      _
    $region79: #{tpu_custom_call.1} parent=1 // pred_check_branch
      %3887 = sbr.rel (0) target = $region81
    $region80: #{tpu_custom_call.1} parent=1 // pred_region
      %3889 = vsyncadd [#allocation4], 0
      %s3891 = sshll.u32 [#allocation16], 4
      %s3892 = int_to_ptr.vmem [resolvable:$true] %s3891
      %s3893 = sshll.u32 %s11, 4
      %s3894 = int_to_ptr.hbm [resolvable:$true] %s3893
      %3896 = dma.vmem_to_hbm [thread:$0]  %s3892, 128, %s3894, [#allocation4]
    $region81: #{tpu_custom_call.1} parent=1 // pred_fallthru
      _
    // Predicated region
    $region82: #{tpu_custom_call.1} parent=1 // pred_check
      _
    $region83: #{tpu_custom_call.1} parent=1 // pred_check_branch
      %3898 = sbr.rel (0) target = $region85
    $region84: #{tpu_custom_call.1} parent=1 // pred_region
      %3900 = dma.done [#allocation4], 128
    $region85: #{tpu_custom_call.1} parent=1 // pred_fallthru
      _
    %3901 = vsyncpa [#allocation3], 1
    %3902 = vsyncpa [#allocation6], 1
    %3903 = vsyncpa [#allocation9], 1
    %3904 = vsyncpa [#allocation12], 1
    %3905 = vsyncpa [#allocation15], 1
    %3906 = vsyncpa [#allocation4], 1

</llo_original>
